<compile_context>
chip_gen: v5e
topology: v5e:2x2
jax: 0.10.0
libtpu: 0.0.40
codegen_flags: <defaults>
</compile_context>

<pallas_src>
import numpy as np
import jax
import jax.numpy as jnp
from jax import lax
from jax.experimental import pallas as pl
from jax.experimental.pallas import tpu as pltpu

VOCAB = 50        # len(config.dnn_ws)
PAD = 0           # config.dnn_ws.PAD
EMB = 300         # embedding_dim
HID = 32          # config.dnnsort_hidden_size
NEG_INF = -1e30   # stands in for float('-inf') additive mask (same softmax result)
HP = lax.Precision.HIGHEST


def _sigmoid(x):
    return 1.0 / (1.0 + jnp.exp(-x))


def _elu(x):
    return jnp.where(x > 0, x, jnp.exp(x) - 1.0)


def _lstm_cell(gx_t, h, c, u, tanh_lanes, H):
    """One LSTM step. gx_t = x_t @ W_ih + b (precomputed outside the loop), u = W_hh."""
    g = gx_t + jnp.dot(h, u, preferred_element_type=jnp.float32)        # [B, 4H]
    # Full-vreg nonlinearity: tanh on the g-gate lanes, sigmoid elsewhere
    # (one EUP pass each over the whole [B, 4H] vreg instead of 4 sub-vreg slices).
    act = jnp.where(tanh_lanes, jnp.tanh(g), _sigmoid(g))
    i = act[:, 0:H]
    f = act[:, H:2 * H]
    gg = act[:, 2 * H:3 * H]
    o = act[:, 3 * H:4 * H]
    c = f * c + i * gg
    h = o * jnp.tanh(c)
    return h, c


# ----------------------------------------------------------------------------
# Kernel 1: fused bidirectional layer-1 LSTM (one grid step per sentence)
# ----------------------------------------------------------------------------
def _lstm1_kernel(x_ref, wf_ref, uf_ref, bf_ref, wb_ref, ub_ref, bb_ref, o_ref):
    # x_ref [1, B, L, EMB] (embeddings of one sentence), o_ref [1, B, L, 2H].
    x = x_ref[0]                                        # [B, L, EMB]
    B, L, D = x.shape
    H = uf_ref.shape[0]

    # Hoisted input projections: one [B*L, D] x [D, 4H] matmul per direction,
    # pipelines on the MXU instead of L tiny pushes inside the serial recurrence.
    x2d = x.reshape(B * L, D)
    gxf = (jnp.dot(x2d, wf_ref[...], preferred_element_type=jnp.float32)
           + bf_ref[...]).reshape(B, L, 4 * H)
    gxb = (jnp.dot(x2d, wb_ref[...], preferred_element_type=jnp.float32)
           + bb_ref[...]).reshape(B, L, 4 * H)

    uf = uf_ref[...]
    ub = ub_ref[...]
    lane = lax.broadcasted_iota(jnp.int32, (B, 4 * H), 1)     # hoisted out of the loop
    tanh_lanes = (lane >= 2 * H) & (lane < 3 * H)

    # Backward direction first (sequence reversal handled in-kernel), collect h_t.
    hb = jnp.zeros((B, H), jnp.float32)
    cb = jnp.zeros((B, H), jnp.float32)
    yb = [None] * L
    for k in range(L):                       # static unrolled loop (L small & static)
        t = L - 1 - k
        hb, cb = _lstm_cell(gxb[:, t, :], hb, cb, ub, tanh_lanes, H)
        yb[t] = hb

    # Forward direction; store one full [B, 2H] row per step (both directions
    # concatenated -> lane-dense w.r.t. the output width, no half-row stores).
    hf = jnp.zeros((B, H), jnp.float32)
    cf = jnp.zeros((B, H), jnp.float32)
    for t in range(L):
        hf, cf = _lstm_cell(gxf[:, t, :], hf, cf, uf, tanh_lanes, H)
        o_ref[0, :, t, :] = jnp.concatenate([hf, yb[t]], axis=-1)


# ----------------------------------------------------------------------------
# Kernel 2: soft attention + layer-2 LSTM (both sentences) + pooling + FC head
# ----------------------------------------------------------------------------
def _attn_lstm2_head_kernel(o_ref, m_ref,
                            wih2_ref, whh2_ref, b2_ref,
                            bn1s_ref, bn1b_ref, w1_ref, b1_ref,
                            bn2s_ref, bn2b_ref, w2_ref, b2l_ref,
                            bn3s_ref, bn3b_ref, w3_ref, b3_ref, out_ref):
    # o_ref [2, B, L, 2H] (layer-1 output), m_ref [2, B, L] additive masks, out [B, 2].
    x1 = o_ref[0]                                       # [B, L, 2H]
    x2 = o_ref[1]
    m1 = m_ref[0]                                       # [B, L]
    m2 = m_ref[1]
    B, L, _ = x1.shape
    H = whh2_ref.shape[0]

    def softmax_last(s):
        s = s - jnp.max(s, axis=-1, keepdims=True)
        p = jnp.exp(s)
        return p * pl.reciprocal(jnp.sum(p, axis=-1, keepdims=True), approx=False)

    # soft_attention_align: energies[b,k,q] = <x2[b,k], x1[b,q]>  (torch.bmm).
    e = jnp.einsum('bkd,bqd->bkq', x2, x1, preferred_element_type=jnp.float32)  # [B,L2,L1]
    w_a = softmax_last(e + m1[:, None, :])
    x2_align = jnp.einsum('bkq,bqd->bkd', w_a, x1, preferred_element_type=jnp.float32)
    # TODO(synk): at larger L replace this duplicate QK^T with a transpose of `e`.
    et = jnp.einsum('bqd,bkd->bqk', x1, x2, preferred_element_type=jnp.float32)  # [B,L1,L2]
    w_b = softmax_last(et + m2[:, None, :])
    x1_align = jnp.einsum('bqk,bkd->bqd', w_b, x2, preferred_element_type=jnp.float32)

    f1 = jnp.concatenate([x1, x1_align, x1 - x1_align, x1 * x1_align], axis=-1)  # [B,L,8H]
    f2 = jnp.concatenate([x2, x2_align, x2 - x2_align, x2 * x2_align], axis=-1)

    wih2 = wih2_ref[...]
    whh2 = whh2_ref[...]
    b2 = b2_ref[...]
    lane = lax.broadcasted_iota(jnp.int32, (B, 4 * H), 1)
    tanh_lanes = (lane >= 2 * H) & (lane < 3 * H)

    def lstm2_pool(feat):
        # Unidirectional LSTM over [B, L, 8H] with hoisted input projection,
        # fused with (mean, max) pooling over the time axis (includes PAD steps,
        # matching the PyTorch module which does not pack padded sequences).
        gx = (jnp.dot(feat.reshape(B * L, feat.shape[-1]), wih2,
                      preferred_element_type=jnp.float32) + b2).reshape(B, L, 4 * H)
        h = jnp.zeros((B, H), jnp.float32)
        c = jnp.zeros((B, H), jnp.float32)
        s = jnp.zeros((B, H), jnp.float32)
        mx = None
        for t in range(L):                   # static unrolled loop
            h, c = _lstm_cell(gx[:, t, :], h, c, whh2, tanh_lanes, H)
            s = s + h
            mx = h if mx is None else jnp.maximum(mx, h)
        return jnp.concatenate([s * (1.0 / L), mx], axis=-1)            # [B, 2H]

    z = jnp.concatenate([lstm2_pool(f1), lstm2_pool(f2)], axis=-1)      # [B, 4H]
    # FC head: BatchNorm1d folded to per-feature scale/shift (eval mode), dropout = id.
    z = z * bn1s_ref[...] + bn1b_ref[...]
    z = _elu(jnp.dot(z, w1_ref[...], preferred_element_type=jnp.float32) + b1_ref[...])
    z = z * bn2s_ref[...] + bn2b_ref[...]
    z = _elu(jnp.dot(z, w2_ref[...], preferred_element_type=jnp.float32) + b2l_ref[...])
    z = z * bn3s_ref[...] + bn3b_ref[...]
    out_ref[...] = jnp.dot(z, w3_ref[...], preferred_element_type=jnp.float32) + b3_ref[...]


# ----------------------------------------------------------------------------
# Pallas wrappers
# ----------------------------------------------------------------------------
def lstm1_pallas(e, P):
    S, B, L, D = e.shape
    H = P['l1f']['whh'].shape[0]
    return pl.pallas_call(
        _lstm1_kernel,
        grid=(S,),
        in_specs=[
            pl.BlockSpec((1, B, L, D), lambda s: (s, 0, 0, 0)),
            pl.BlockSpec((D, 4 * H), lambda s: (0, 0)),
            pl.BlockSpec((H, 4 * H), lambda s: (0, 0)),
            pl.BlockSpec((1, 4 * H), lambda s: (0, 0)),
            pl.BlockSpec((D, 4 * H), lambda s: (0, 0)),
            pl.BlockSpec((H, 4 * H), lambda s: (0, 0)),
            pl.BlockSpec((1, 4 * H), lambda s: (0, 0)),
        ],
        out_specs=pl.BlockSpec((1, B, L, 2 * H), lambda s: (s, 0, 0, 0)),
        out_shape=jax.ShapeDtypeStruct((S, B, L, 2 * H), jnp.float32),
        compiler_params=pltpu.CompilerParams(
            dimension_semantics=("parallel",)),   # sentences run on both TCs on v7x
    )(e, P['l1f']['wih'], P['l1f']['whh'], P['l1f']['b'],
      P['l1b']['wih'], P['l1b']['whh'], P['l1b']['b'])


def attn_lstm2_head_pallas(o, masks, P):
    B = o.shape[1]
    return pl.pallas_call(
        _attn_lstm2_head_kernel,
        out_shape=jax.ShapeDtypeStruct((B, 2), jnp.float32),
    )(o, masks,
      P['l2']['wih'], P['l2']['whh'], P['l2']['b'],
      P['bn1_s'], P['bn1_b'], P['w1'], P['b1'],
      P['bn2_s'], P['bn2_b'], P['w2'], P['b2'],
      P['bn3_s'], P['bn3_b'], P['w3'], P['b3'])


def forward_pallas(sent1, sent2, P):
    sents = jnp.stack([sent1, sent2])                               # [2, B, L]
    masks = jnp.where(sents == PAD, NEG_INF, 0.0).astype(jnp.float32)
    # TODO(synk): embedding lookup is a data-dependent gather; kept in plain JAX
    # (a Pallas version would need a manual DMA gather).
    emb = jnp.take(P['emb'], sents, axis=0)                         # [2, B, L, EMB]
    o = lstm1_pallas(emb, P)                                        # [2, B, L, 2H]
    return attn_lstm2_head_pallas(o, masks, P)                      # [B, 2]


# ----------------------------------------------------------------------------
# Deterministic parameter init (shapes from DnnSort.__init__)
# ----------------------------------------------------------------------------
def init_params(key):
    ks = jax.random.split(key, 8)
    emb = 0.1 * jax.random.normal(ks[0], (VOCAB, EMB), jnp.float32)
    emb = emb.at[PAD].set(0.0)      # padding_idx

    def lstm_p(k, in_dim, hidden):
        ka, kb, kc, kd = jax.random.split(k, 4)
        s = 1.0 / np.sqrt(hidden)
        u = lambda kk, shp: jax.random.uniform(kk, shp, jnp.float32, -s, s)
        return dict(wih=u(ka, (in_dim, 4 * hidden)),
                    whh=u(kb, (hidden, 4 * hidden)),
                    b=u(kc, (1, 4 * hidden)) + u(kd, (1, 4 * hidden)))  # b_ih + b_hh

    def linear_p(k, fin, fout):
        ka, kb = jax.random.split(k)
        s = 1.0 / np.sqrt(fin)
        return (jax.random.uniform(ka, (fin, fout), jnp.float32, -s, s),
                jax.random.uniform(kb, (1, fout), jnp.float32, -s, s))

    def bn_eval(feat):
        gamma = jnp.ones((1, feat), jnp.float32)
        beta = jnp.zeros((1, feat), jnp.float32)
        mean = jnp.zeros((1, feat), jnp.float32)
        var = jnp.ones((1, feat), jnp.float32)
        scale = gamma / jnp.sqrt(var + 1e-5)
        return scale, beta - mean * scale

    w1, b1 = linear_p(ks[4], 4 * HID, 2 * HID)
    w2, b2 = linear_p(ks[5], 2 * HID, 2 * HID)
    w3, b3 = linear_p(ks[6], 2 * HID, 2)
    bn1_s, bn1_b = bn_eval(4 * HID)
    bn2_s, bn2_b = bn_eval(2 * HID)
    bn3_s, bn3_b = bn_eval(2 * HID)
    return dict(emb=emb,
                l1f=lstm_p(ks[1], EMB, HID),
                l1b=lstm_p(ks[2], EMB, HID),
                l2=lstm_p(ks[3], 8 * HID, HID),
                bn1_s=bn1_s, bn1_b=bn1_b, w1=w1, b1=b1,
                bn2_s=bn2_s, bn2_b=bn2_b, w2=w2, b2=b2,
                bn3_s=bn3_s, bn3_b=bn3_b, w3=w3, b3=b3)


# ----------------------------------------------------------------------------
# Pure-JAX reference (mirrors the PyTorch forward, eval mode) for validation
# ----------------------------------------------------------------------------
def lstm_ref(x, p, reverse=False):
    B, _, _ = x.shape
    H = p['whh'].shape[0]

    def step(carry, x_t):
        h, c = carry
        g = (jnp.dot(x_t, p['wih'], precision=HP)
             + jnp.dot(h, p['whh'], precision=HP) + p['b'])
        i = _sigmoid(g[:, 0:H])
        f = _sigmoid(g[:, H:2 * H])
        gg = jnp.tanh(g[:, 2 * H:3 * H])
        o = _sigmoid(g[:, 3 * H:4 * H])
        c = f * c + i * gg
        h = o * jnp.tanh(c)
        return (h, c), h

    xs = jnp.transpose(x, (1, 0, 2))
    if reverse:
        xs = xs[::-1]
    _, ys = lax.scan(step, (jnp.zeros((B, H), jnp.float32),
                            jnp.zeros((B, H), jnp.float32)), xs)
    if reverse:
        ys = ys[::-1]
    return jnp.transpose(ys, (1, 0, 2))


def forward_ref(sent1, sent2, P):
    mask1 = sent1 == PAD
    mask2 = sent2 == PAD
    e1 = jnp.take(P['emb'], sent1, axis=0)
    e2 = jnp.take(P['emb'], sent2, axis=0)
    o1 = jnp.concatenate([lstm_ref(e1, P['l1f'], False),
                          lstm_ref(e1, P['l1b'], True)], axis=-1)
    o2 = jnp.concatenate([lstm_ref(e2, P['l1f'], False),
                          lstm_ref(e2, P['l1b'], True)], axis=-1)
    m1 = jnp.where(mask1, NEG_INF, 0.0).astype(jnp.float32)[:, None, :]
    m2 = jnp.where(mask2, NEG_INF, 0.0).astype(jnp.float32)[:, None, :]
    e = jnp.einsum('bkd,bqd->bkq', o2, o1, precision=HP)          # [B, L2, L1]
    w1 = jax.nn.softmax(e + m1, axis=-1)
    o2_align = jnp.einsum('bkq,bqd->bkd', w1, o1, precision=HP)
    w2 = jax.nn.softmax(jnp.swapaxes(e, 1, 2) + m2, axis=-1)
    o1_align = jnp.einsum('bqk,bkd->bqd', w2, o2, precision=HP)
    f1 = jnp.concatenate([o1, o1_align, o1 - o1_align, o1 * o1_align], axis=-1)
    f2 = jnp.concatenate([o2, o2_align, o2 - o2_align, o2 * o2_align], axis=-1)
    c1 = lstm_ref(f1, P['l2'], False)
    c2 = lstm_ref(f2, P['l2'], False)

    def pool(y):
        return jnp.concatenate([jnp.mean(y, axis=1), jnp.max(y, axis=1)], axis=-1)

    x = jnp.concatenate([pool(c1), pool(c2)], axis=-1)
    x = x * P['bn1_s'] + P['bn1_b']
    x = _elu(jnp.dot(x, P['w1'], precision=HP) + P['b1'])
    x = x * P['bn2_s'] + P['bn2_b']
    x = _elu(jnp.dot(x, P['w2'], precision=HP) + P['b2'])
    x = x * P['bn3_s'] + P['bn3_b']
    return jnp.dot(x, P['w3'], precision=HP) + P['b3']


# ----------------------------------------------------------------------------
if __name__ == "__main__":
    B, L = 2, 8
    key = jax.random.PRNGKey(0)
    kp, k1, k2 = jax.random.split(key, 3)
    params = init_params(kp)

    sent1 = jax.random.randint(k1, (B, L), 1, VOCAB, dtype=jnp.int32)
    sent2 = jax.random.randint(k2, (B, L), 1, VOCAB, dtype=jnp.int32)
    sent1 = sent1.at[:, -2:].set(PAD)    # trailing PAD tokens
    sent2 = sent2.at[:, -3:].set(PAD)

    logits = jax.jit(lambda a, b: forward_pallas(a, b, params))(sent1, sent2)
    logits = jax.block_until_ready(logits)

    ref = forward_ref(sent1, sent2, params)
    assert logits.shape == (B, 2)
    assert bool(jnp.all(jnp.isfinite(logits)))
    np.testing.assert_allclose(np.asarray(logits), np.asarray(ref), atol=2e-3, rtol=2e-3)
    print("KERNEL_OK")
</pallas_src>

<mosaic_0001>
module attributes {stable_mosaic.version = 11 : i64} {
  func.func @_lstm1_kernel(%arg0: i32, %arg1: memref<1x2x8x300xf32, #tpu.memory_space<vmem>>, %arg2: memref<300x128xf32, #tpu.memory_space<vmem>>, %arg3: memref<32x128xf32, #tpu.memory_space<vmem>>, %arg4: memref<1x128xf32, #tpu.memory_space<vmem>>, %arg5: memref<300x128xf32, #tpu.memory_space<vmem>>, %arg6: memref<32x128xf32, #tpu.memory_space<vmem>>, %arg7: memref<1x128xf32, #tpu.memory_space<vmem>>, %arg8: memref<1x2x8x64xf32, #tpu.memory_space<vmem>>) attributes {dimension_semantics = [#tpu.dimension_semantics<parallel>], iteration_bounds = array<i64: 2>, scalar_prefetch = 0 : i64, scratch_operands = 0 : i64, tpu.core_type = #tpu.core_type<tc>, window_params = [{transform_indices = @transform_0, window_bounds = array<i64: 1, 2, 8, 300>}, {pipeline_mode = #tpu.pipeline_mode<synchronous>, transform_indices = @transform_1, window_bounds = array<i64: 300, 128>}, {pipeline_mode = #tpu.pipeline_mode<synchronous>, transform_indices = @transform_2, window_bounds = array<i64: 32, 128>}, {pipeline_mode = #tpu.pipeline_mode<synchronous>, transform_indices = @transform_3, window_bounds = array<i64: 1, 128>}, {pipeline_mode = #tpu.pipeline_mode<synchronous>, transform_indices = @transform_4, window_bounds = array<i64: 300, 128>}, {pipeline_mode = #tpu.pipeline_mode<synchronous>, transform_indices = @transform_5, window_bounds = array<i64: 32, 128>}, {pipeline_mode = #tpu.pipeline_mode<synchronous>, transform_indices = @transform_6, window_bounds = array<i64: 1, 128>}, {transform_indices = @transform_7, window_bounds = array<i64: 1, 2, 8, 64>}]} {
    %c0 = arith.constant 0 : index
    %c0_0 = arith.constant 0 : index
    %c0_1 = arith.constant 0 : index
    %c0_2 = arith.constant 0 : index
    %0 = vector.load %arg1[%c0, %c0_0, %c0_1, %c0_2] : memref<1x2x8x300xf32, #tpu.memory_space<vmem>>, vector<1x2x8x300xf32>
    %1 = vector.shape_cast %0 : vector<1x2x8x300xf32> to vector<2x8x300xf32>
    %2 = vector.shape_cast %1 : vector<2x8x300xf32> to vector<16x300xf32>
    %c0_3 = arith.constant 0 : index
    %c0_4 = arith.constant 0 : index
    %3 = vector.load %arg2[%c0_3, %c0_4] : memref<300x128xf32, #tpu.memory_space<vmem>>, vector<300x128xf32>
    %cst = arith.constant dense<0.000000e+00> : vector<16x128xf32>
    %4 = tpu.matmul %2, %3, %cst {dimension_numbers = #tpu.dot_dimension_numbers<[1], [0], [0], [1], [0, 0, 1, 1], [], []>} : vector<16x300xf32>, vector<300x128xf32>, vector<16x128xf32> -> vector<16x128xf32>
    %c0_5 = arith.constant 0 : index
    %c0_6 = arith.constant 0 : index
    %5 = vector.load %arg4[%c0_5, %c0_6] : memref<1x128xf32, #tpu.memory_space<vmem>>, vector<1x128xf32>
    %6 = vector.broadcast %5 : vector<1x128xf32> to vector<16x128xf32>
    %7 = arith.addf %4, %6 : vector<16x128xf32>
    %8 = vector.shape_cast %7 : vector<16x128xf32> to vector<2x8x128xf32>
    %c0_7 = arith.constant 0 : index
    %c0_8 = arith.constant 0 : index
    %9 = vector.load %arg5[%c0_7, %c0_8] : memref<300x128xf32, #tpu.memory_space<vmem>>, vector<300x128xf32>
    %cst_9 = arith.constant dense<0.000000e+00> : vector<16x128xf32>
    %10 = tpu.matmul %2, %9, %cst_9 {dimension_numbers = #tpu.dot_dimension_numbers<[1], [0], [0], [1], [0, 0, 1, 1], [], []>} : vector<16x300xf32>, vector<300x128xf32>, vector<16x128xf32> -> vector<16x128xf32>
    %c0_10 = arith.constant 0 : index
    %c0_11 = arith.constant 0 : index
    %11 = vector.load %arg7[%c0_10, %c0_11] : memref<1x128xf32, #tpu.memory_space<vmem>>, vector<1x128xf32>
    %12 = vector.broadcast %11 : vector<1x128xf32> to vector<16x128xf32>
    %13 = arith.addf %10, %12 : vector<16x128xf32>
    %14 = vector.shape_cast %13 : vector<16x128xf32> to vector<2x8x128xf32>
    %c0_12 = arith.constant 0 : index
    %c0_13 = arith.constant 0 : index
    %15 = vector.load %arg3[%c0_12, %c0_13] : memref<32x128xf32, #tpu.memory_space<vmem>>, vector<32x128xf32>
    %c0_14 = arith.constant 0 : index
    %c0_15 = arith.constant 0 : index
    %16 = vector.load %arg6[%c0_14, %c0_15] : memref<32x128xf32, #tpu.memory_space<vmem>>, vector<32x128xf32>
    %17 = tpu.iota {dimensions = array<i32: 1>} : vector<2x128xi32>
    %c64_i32 = arith.constant 64 : i32
    %18 = vector.broadcast %c64_i32 : i32 to vector<2x128xi32>
    %19 = arith.cmpi sge, %17, %18 : vector<2x128xi32>
    %c96_i32 = arith.constant 96 : i32
    %20 = vector.broadcast %c96_i32 : i32 to vector<2x128xi32>
    %21 = arith.cmpi slt, %17, %20 : vector<2x128xi32>
    %22 = arith.andi %19, %21 : vector<2x128xi1>
    %cst_16 = arith.constant 0.000000e+00 : f32
    %23 = vector.broadcast %cst_16 : f32 to vector<2x32xf32>
    %cst_17 = arith.constant 0.000000e+00 : f32
    %24 = vector.broadcast %cst_17 : f32 to vector<2x32xf32>
    %25 = vector.extract_strided_slice %14 {offsets = [0, 7, 0], sizes = [2, 1, 128], strides = [1, 1, 1]} : vector<2x8x128xf32> to vector<2x1x128xf32>
    %26 = vector.shape_cast %25 : vector<2x1x128xf32> to vector<2x128xf32>
    %cst_18 = arith.constant dense<0.000000e+00> : vector<2x128xf32>
    %27 = tpu.matmul %23, %16, %cst_18 {dimension_numbers = #tpu.dot_dimension_numbers<[1], [0], [0], [1], [0, 0, 1, 1], [], []>} : vector<2x32xf32>, vector<32x128xf32>, vector<2x128xf32> -> vector<2x128xf32>
    %28 = arith.addf %26, %27 : vector<2x128xf32>
    %29 = math.tanh %28 : vector<2x128xf32>
    %cst_19 = arith.constant 0.000000e+00 : f32
    %30 = vector.broadcast %cst_19 : f32 to vector<2x128xf32>
    %31 = arith.subf %30, %28 : vector<2x128xf32>
    %32 = math.exp %31 : vector<2x128xf32>
    %cst_20 = arith.constant 1.000000e+00 : f32
    %33 = vector.broadcast %cst_20 : f32 to vector<2x128xf32>
    %34 = arith.addf %33, %32 : vector<2x128xf32>
    %cst_21 = arith.constant 1.000000e+00 : f32
    %35 = vector.broadcast %cst_21 : f32 to vector<2x128xf32>
    %36 = arith.divf %35, %34 : vector<2x128xf32>
    %37 = arith.select %22, %29, %36 : vector<2x128xi1>, vector<2x128xf32>
    %38 = vector.extract_strided_slice %37 {offsets = [0, 0], sizes = [2, 32], strides = [1, 1]} : vector<2x128xf32> to vector<2x32xf32>
    %39 = vector.extract_strided_slice %37 {offsets = [0, 32], sizes = [2, 32], strides = [1, 1]} : vector<2x128xf32> to vector<2x32xf32>
    %40 = vector.extract_strided_slice %37 {offsets = [0, 64], sizes = [2, 32], strides = [1, 1]} : vector<2x128xf32> to vector<2x32xf32>
    %41 = vector.extract_strided_slice %37 {offsets = [0, 96], sizes = [2, 32], strides = [1, 1]} : vector<2x128xf32> to vector<2x32xf32>
    %42 = arith.mulf %39, %24 : vector<2x32xf32>
    %43 = arith.mulf %38, %40 : vector<2x32xf32>
    %44 = arith.addf %42, %43 : vector<2x32xf32>
    %45 = math.tanh %44 : vector<2x32xf32>
    %46 = arith.mulf %41, %45 : vector<2x32xf32>
    %47 = vector.extract_strided_slice %14 {offsets = [0, 6, 0], sizes = [2, 1, 128], strides = [1, 1, 1]} : vector<2x8x128xf32> to vector<2x1x128xf32>
    %48 = vector.shape_cast %47 : vector<2x1x128xf32> to vector<2x128xf32>
    %cst_22 = arith.constant dense<0.000000e+00> : vector<2x128xf32>
    %49 = tpu.matmul %46, %16, %cst_22 {dimension_numbers = #tpu.dot_dimension_numbers<[1], [0], [0], [1], [0, 0, 1, 1], [], []>} : vector<2x32xf32>, vector<32x128xf32>, vector<2x128xf32> -> vector<2x128xf32>
    %50 = arith.addf %48, %49 : vector<2x128xf32>
    %51 = math.tanh %50 : vector<2x128xf32>
    %cst_23 = arith.constant 0.000000e+00 : f32
    %52 = vector.broadcast %cst_23 : f32 to vector<2x128xf32>
    %53 = arith.subf %52, %50 : vector<2x128xf32>
    %54 = math.exp %53 : vector<2x128xf32>
    %cst_24 = arith.constant 1.000000e+00 : f32
    %55 = vector.broadcast %cst_24 : f32 to vector<2x128xf32>
    %56 = arith.addf %55, %54 : vector<2x128xf32>
    %cst_25 = arith.constant 1.000000e+00 : f32
    %57 = vector.broadcast %cst_25 : f32 to vector<2x128xf32>
    %58 = arith.divf %57, %56 : vector<2x128xf32>
    %59 = arith.select %22, %51, %58 : vector<2x128xi1>, vector<2x128xf32>
    %60 = vector.extract_strided_slice %59 {offsets = [0, 0], sizes = [2, 32], strides = [1, 1]} : vector<2x128xf32> to vector<2x32xf32>
    %61 = vector.extract_strided_slice %59 {offsets = [0, 32], sizes = [2, 32], strides = [1, 1]} : vector<2x128xf32> to vector<2x32xf32>
    %62 = vector.extract_strided_slice %59 {offsets = [0, 64], sizes = [2, 32], strides = [1, 1]} : vector<2x128xf32> to vector<2x32xf32>
    %63 = vector.extract_strided_slice %59 {offsets = [0, 96], sizes = [2, 32], strides = [1, 1]} : vector<2x128xf32> to vector<2x32xf32>
    %64 = arith.mulf %61, %44 : vector<2x32xf32>
    %65 = arith.mulf %60, %62 : vector<2x32xf32>
    %66 = arith.addf %64, %65 : vector<2x32xf32>
    %67 = math.tanh %66 : vector<2x32xf32>
    %68 = arith.mulf %63, %67 : vector<2x32xf32>
    %69 = vector.extract_strided_slice %14 {offsets = [0, 5, 0], sizes = [2, 1, 128], strides = [1, 1, 1]} : vector<2x8x128xf32> to vector<2x1x128xf32>
    %70 = vector.shape_cast %69 : vector<2x1x128xf32> to vector<2x128xf32>
    %cst_26 = arith.constant dense<0.000000e+00> : vector<2x128xf32>
    %71 = tpu.matmul %68, %16, %cst_26 {dimension_numbers = #tpu.dot_dimension_numbers<[1], [0], [0], [1], [0, 0, 1, 1], [], []>} : vector<2x32xf32>, vector<32x128xf32>, vector<2x128xf32> -> vector<2x128xf32>
    %72 = arith.addf %70, %71 : vector<2x128xf32>
    %73 = math.tanh %72 : vector<2x128xf32>
    %cst_27 = arith.constant 0.000000e+00 : f32
    %74 = vector.broadcast %cst_27 : f32 to vector<2x128xf32>
    %75 = arith.subf %74, %72 : vector<2x128xf32>
    %76 = math.exp %75 : vector<2x128xf32>
    %cst_28 = arith.constant 1.000000e+00 : f32
    %77 = vector.broadcast %cst_28 : f32 to vector<2x128xf32>
    %78 = arith.addf %77, %76 : vector<2x128xf32>
    %cst_29 = arith.constant 1.000000e+00 : f32
    %79 = vector.broadcast %cst_29 : f32 to vector<2x128xf32>
    %80 = arith.divf %79, %78 : vector<2x128xf32>
    %81 = arith.select %22, %73, %80 : vector<2x128xi1>, vector<2x128xf32>
    %82 = vector.extract_strided_slice %81 {offsets = [0, 0], sizes = [2, 32], strides = [1, 1]} : vector<2x128xf32> to vector<2x32xf32>
    %83 = vector.extract_strided_slice %81 {offsets = [0, 32], sizes = [2, 32], strides = [1, 1]} : vector<2x128xf32> to vector<2x32xf32>
    %84 = vector.extract_strided_slice %81 {offsets = [0, 64], sizes = [2, 32], strides = [1, 1]} : vector<2x128xf32> to vector<2x32xf32>
    %85 = vector.extract_strided_slice %81 {offsets = [0, 96], sizes = [2, 32], strides = [1, 1]} : vector<2x128xf32> to vector<2x32xf32>
    %86 = arith.mulf %83, %66 : vector<2x32xf32>
    %87 = arith.mulf %82, %84 : vector<2x32xf32>
    %88 = arith.addf %86, %87 : vector<2x32xf32>
    %89 = math.tanh %88 : vector<2x32xf32>
    %90 = arith.mulf %85, %89 : vector<2x32xf32>
    %91 = vector.extract_strided_slice %14 {offsets = [0, 4, 0], sizes = [2, 1, 128], strides = [1, 1, 1]} : vector<2x8x128xf32> to vector<2x1x128xf32>
    %92 = vector.shape_cast %91 : vector<2x1x128xf32> to vector<2x128xf32>
    %cst_30 = arith.constant dense<0.000000e+00> : vector<2x128xf32>
    %93 = tpu.matmul %90, %16, %cst_30 {dimension_numbers = #tpu.dot_dimension_numbers<[1], [0], [0], [1], [0, 0, 1, 1], [], []>} : vector<2x32xf32>, vector<32x128xf32>, vector<2x128xf32> -> vector<2x128xf32>
    %94 = arith.addf %92, %93 : vector<2x128xf32>
    %95 = math.tanh %94 : vector<2x128xf32>
    %cst_31 = arith.constant 0.000000e+00 : f32
    %96 = vector.broadcast %cst_31 : f32 to vector<2x128xf32>
    %97 = arith.subf %96, %94 : vector<2x128xf32>
    %98 = math.exp %97 : vector<2x128xf32>
    %cst_32 = arith.constant 1.000000e+00 : f32
    %99 = vector.broadcast %cst_32 : f32 to vector<2x128xf32>
    %100 = arith.addf %99, %98 : vector<2x128xf32>
    %cst_33 = arith.constant 1.000000e+00 : f32
    %101 = vector.broadcast %cst_33 : f32 to vector<2x128xf32>
    %102 = arith.divf %101, %100 : vector<2x128xf32>
    %103 = arith.select %22, %95, %102 : vector<2x128xi1>, vector<2x128xf32>
    %104 = vector.extract_strided_slice %103 {offsets = [0, 0], sizes = [2, 32], strides = [1, 1]} : vector<2x128xf32> to vector<2x32xf32>
    %105 = vector.extract_strided_slice %103 {offsets = [0, 32], sizes = [2, 32], strides = [1, 1]} : vector<2x128xf32> to vector<2x32xf32>
    %106 = vector.extract_strided_slice %103 {offsets = [0, 64], sizes = [2, 32], strides = [1, 1]} : vector<2x128xf32> to vector<2x32xf32>
    %107 = vector.extract_strided_slice %103 {offsets = [0, 96], sizes = [2, 32], strides = [1, 1]} : vector<2x128xf32> to vector<2x32xf32>
    %108 = arith.mulf %105, %88 : vector<2x32xf32>
    %109 = arith.mulf %104, %106 : vector<2x32xf32>
    %110 = arith.addf %108, %109 : vector<2x32xf32>
    %111 = math.tanh %110 : vector<2x32xf32>
    %112 = arith.mulf %107, %111 : vector<2x32xf32>
    %113 = vector.extract_strided_slice %14 {offsets = [0, 3, 0], sizes = [2, 1, 128], strides = [1, 1, 1]} : vector<2x8x128xf32> to vector<2x1x128xf32>
    %114 = vector.shape_cast %113 : vector<2x1x128xf32> to vector<2x128xf32>
    %cst_34 = arith.constant dense<0.000000e+00> : vector<2x128xf32>
    %115 = tpu.matmul %112, %16, %cst_34 {dimension_numbers = #tpu.dot_dimension_numbers<[1], [0], [0], [1], [0, 0, 1, 1], [], []>} : vector<2x32xf32>, vector<32x128xf32>, vector<2x128xf32> -> vector<2x128xf32>
    %116 = arith.addf %114, %115 : vector<2x128xf32>
    %117 = math.tanh %116 : vector<2x128xf32>
    %cst_35 = arith.constant 0.000000e+00 : f32
    %118 = vector.broadcast %cst_35 : f32 to vector<2x128xf32>
    %119 = arith.subf %118, %116 : vector<2x128xf32>
    %120 = math.exp %119 : vector<2x128xf32>
    %cst_36 = arith.constant 1.000000e+00 : f32
    %121 = vector.broadcast %cst_36 : f32 to vector<2x128xf32>
    %122 = arith.addf %121, %120 : vector<2x128xf32>
    %cst_37 = arith.constant 1.000000e+00 : f32
    %123 = vector.broadcast %cst_37 : f32 to vector<2x128xf32>
    %124 = arith.divf %123, %122 : vector<2x128xf32>
    %125 = arith.select %22, %117, %124 : vector<2x128xi1>, vector<2x128xf32>
    %126 = vector.extract_strided_slice %125 {offsets = [0, 0], sizes = [2, 32], strides = [1, 1]} : vector<2x128xf32> to vector<2x32xf32>
    %127 = vector.extract_strided_slice %125 {offsets = [0, 32], sizes = [2, 32], strides = [1, 1]} : vector<2x128xf32> to vector<2x32xf32>
    %128 = vector.extract_strided_slice %125 {offsets = [0, 64], sizes = [2, 32], strides = [1, 1]} : vector<2x128xf32> to vector<2x32xf32>
    %129 = vector.extract_strided_slice %125 {offsets = [0, 96], sizes = [2, 32], strides = [1, 1]} : vector<2x128xf32> to vector<2x32xf32>
    %130 = arith.mulf %127, %110 : vector<2x32xf32>
    %131 = arith.mulf %126, %128 : vector<2x32xf32>
    %132 = arith.addf %130, %131 : vector<2x32xf32>
    %133 = math.tanh %132 : vector<2x32xf32>
    %134 = arith.mulf %129, %133 : vector<2x32xf32>
    %135 = vector.extract_strided_slice %14 {offsets = [0, 2, 0], sizes = [2, 1, 128], strides = [1, 1, 1]} : vector<2x8x128xf32> to vector<2x1x128xf32>
    %136 = vector.shape_cast %135 : vector<2x1x128xf32> to vector<2x128xf32>
    %cst_38 = arith.constant dense<0.000000e+00> : vector<2x128xf32>
    %137 = tpu.matmul %134, %16, %cst_38 {dimension_numbers = #tpu.dot_dimension_numbers<[1], [0], [0], [1], [0, 0, 1, 1], [], []>} : vector<2x32xf32>, vector<32x128xf32>, vector<2x128xf32> -> vector<2x128xf32>
    %138 = arith.addf %136, %137 : vector<2x128xf32>
    %139 = math.tanh %138 : vector<2x128xf32>
    %cst_39 = arith.constant 0.000000e+00 : f32
    %140 = vector.broadcast %cst_39 : f32 to vector<2x128xf32>
    %141 = arith.subf %140, %138 : vector<2x128xf32>
    %142 = math.exp %141 : vector<2x128xf32>
    %cst_40 = arith.constant 1.000000e+00 : f32
    %143 = vector.broadcast %cst_40 : f32 to vector<2x128xf32>
    %144 = arith.addf %143, %142 : vector<2x128xf32>
    %cst_41 = arith.constant 1.000000e+00 : f32
    %145 = vector.broadcast %cst_41 : f32 to vector<2x128xf32>
    %146 = arith.divf %145, %144 : vector<2x128xf32>
    %147 = arith.select %22, %139, %146 : vector<2x128xi1>, vector<2x128xf32>
    %148 = vector.extract_strided_slice %147 {offsets = [0, 0], sizes = [2, 32], strides = [1, 1]} : vector<2x128xf32> to vector<2x32xf32>
    %149 = vector.extract_strided_slice %147 {offsets = [0, 32], sizes = [2, 32], strides = [1, 1]} : vector<2x128xf32> to vector<2x32xf32>
    %150 = vector.extract_strided_slice %147 {offsets = [0, 64], sizes = [2, 32], strides = [1, 1]} : vector<2x128xf32> to vector<2x32xf32>
    %151 = vector.extract_strided_slice %147 {offsets = [0, 96], sizes = [2, 32], strides = [1, 1]} : vector<2x128xf32> to vector<2x32xf32>
    %152 = arith.mulf %149, %132 : vector<2x32xf32>
    %153 = arith.mulf %148, %150 : vector<2x32xf32>
    %154 = arith.addf %152, %153 : vector<2x32xf32>
    %155 = math.tanh %154 : vector<2x32xf32>
    %156 = arith.mulf %151, %155 : vector<2x32xf32>
    %157 = vector.extract_strided_slice %14 {offsets = [0, 1, 0], sizes = [2, 1, 128], strides = [1, 1, 1]} : vector<2x8x128xf32> to vector<2x1x128xf32>
    %158 = vector.shape_cast %157 : vector<2x1x128xf32> to vector<2x128xf32>
    %cst_42 = arith.constant dense<0.000000e+00> : vector<2x128xf32>
    %159 = tpu.matmul %156, %16, %cst_42 {dimension_numbers = #tpu.dot_dimension_numbers<[1], [0], [0], [1], [0, 0, 1, 1], [], []>} : vector<2x32xf32>, vector<32x128xf32>, vector<2x128xf32> -> vector<2x128xf32>
    %160 = arith.addf %158, %159 : vector<2x128xf32>
    %161 = math.tanh %160 : vector<2x128xf32>
    %cst_43 = arith.constant 0.000000e+00 : f32
    %162 = vector.broadcast %cst_43 : f32 to vector<2x128xf32>
    %163 = arith.subf %162, %160 : vector<2x128xf32>
    %164 = math.exp %163 : vector<2x128xf32>
    %cst_44 = arith.constant 1.000000e+00 : f32
    %165 = vector.broadcast %cst_44 : f32 to vector<2x128xf32>
    %166 = arith.addf %165, %164 : vector<2x128xf32>
    %cst_45 = arith.constant 1.000000e+00 : f32
    %167 = vector.broadcast %cst_45 : f32 to vector<2x128xf32>
    %168 = arith.divf %167, %166 : vector<2x128xf32>
    %169 = arith.select %22, %161, %168 : vector<2x128xi1>, vector<2x128xf32>
    %170 = vector.extract_strided_slice %169 {offsets = [0, 0], sizes = [2, 32], strides = [1, 1]} : vector<2x128xf32> to vector<2x32xf32>
    %171 = vector.extract_strided_slice %169 {offsets = [0, 32], sizes = [2, 32], strides = [1, 1]} : vector<2x128xf32> to vector<2x32xf32>
    %172 = vector.extract_strided_slice %169 {offsets = [0, 64], sizes = [2, 32], strides = [1, 1]} : vector<2x128xf32> to vector<2x32xf32>
    %173 = vector.extract_strided_slice %169 {offsets = [0, 96], sizes = [2, 32], strides = [1, 1]} : vector<2x128xf32> to vector<2x32xf32>
    %174 = arith.mulf %171, %154 : vector<2x32xf32>
    %175 = arith.mulf %170, %172 : vector<2x32xf32>
    %176 = arith.addf %174, %175 : vector<2x32xf32>
    %177 = math.tanh %176 : vector<2x32xf32>
    %178 = arith.mulf %173, %177 : vector<2x32xf32>
    %179 = vector.extract_strided_slice %14 {offsets = [0, 0, 0], sizes = [2, 1, 128], strides = [1, 1, 1]} : vector<2x8x128xf32> to vector<2x1x128xf32>
    %180 = vector.shape_cast %179 : vector<2x1x128xf32> to vector<2x128xf32>
    %cst_46 = arith.constant dense<0.000000e+00> : vector<2x128xf32>
    %181 = tpu.matmul %178, %16, %cst_46 {dimension_numbers = #tpu.dot_dimension_numbers<[1], [0], [0], [1], [0, 0, 1, 1], [], []>} : vector<2x32xf32>, vector<32x128xf32>, vector<2x128xf32> -> vector<2x128xf32>
    %182 = arith.addf %180, %181 : vector<2x128xf32>
    %183 = math.tanh %182 : vector<2x128xf32>
    %cst_47 = arith.constant 0.000000e+00 : f32
    %184 = vector.broadcast %cst_47 : f32 to vector<2x128xf32>
    %185 = arith.subf %184, %182 : vector<2x128xf32>
    %186 = math.exp %185 : vector<2x128xf32>
    %cst_48 = arith.constant 1.000000e+00 : f32
    %187 = vector.broadcast %cst_48 : f32 to vector<2x128xf32>
    %188 = arith.addf %187, %186 : vector<2x128xf32>
    %cst_49 = arith.constant 1.000000e+00 : f32
    %189 = vector.broadcast %cst_49 : f32 to vector<2x128xf32>
    %190 = arith.divf %189, %188 : vector<2x128xf32>
    %191 = arith.select %22, %183, %190 : vector<2x128xi1>, vector<2x128xf32>
    %192 = vector.extract_strided_slice %191 {offsets = [0, 0], sizes = [2, 32], strides = [1, 1]} : vector<2x128xf32> to vector<2x32xf32>
    %193 = vector.extract_strided_slice %191 {offsets = [0, 32], sizes = [2, 32], strides = [1, 1]} : vector<2x128xf32> to vector<2x32xf32>
    %194 = vector.extract_strided_slice %191 {offsets = [0, 64], sizes = [2, 32], strides = [1, 1]} : vector<2x128xf32> to vector<2x32xf32>
    %195 = vector.extract_strided_slice %191 {offsets = [0, 96], sizes = [2, 32], strides = [1, 1]} : vector<2x128xf32> to vector<2x32xf32>
    %196 = arith.mulf %193, %176 : vector<2x32xf32>
    %197 = arith.mulf %192, %194 : vector<2x32xf32>
    %198 = arith.addf %196, %197 : vector<2x32xf32>
    %199 = math.tanh %198 : vector<2x32xf32>
    %200 = arith.mulf %195, %199 : vector<2x32xf32>
    %cst_50 = arith.constant 0.000000e+00 : f32
    %201 = vector.broadcast %cst_50 : f32 to vector<2x32xf32>
    %cst_51 = arith.constant 0.000000e+00 : f32
    %202 = vector.broadcast %cst_51 : f32 to vector<2x32xf32>
    %203 = vector.extract_strided_slice %8 {offsets = [0, 0, 0], sizes = [2, 1, 128], strides = [1, 1, 1]} : vector<2x8x128xf32> to vector<2x1x128xf32>
    %204 = vector.shape_cast %203 : vector<2x1x128xf32> to vector<2x128xf32>
    %cst_52 = arith.constant dense<0.000000e+00> : vector<2x128xf32>
    %205 = tpu.matmul %201, %15, %cst_52 {dimension_numbers = #tpu.dot_dimension_numbers<[1], [0], [0], [1], [0, 0, 1, 1], [], []>} : vector<2x32xf32>, vector<32x128xf32>, vector<2x128xf32> -> vector<2x128xf32>
    %206 = arith.addf %204, %205 : vector<2x128xf32>
    %207 = math.tanh %206 : vector<2x128xf32>
    %cst_53 = arith.constant 0.000000e+00 : f32
    %208 = vector.broadcast %cst_53 : f32 to vector<2x128xf32>
    %209 = arith.subf %208, %206 : vector<2x128xf32>
    %210 = math.exp %209 : vector<2x128xf32>
    %cst_54 = arith.constant 1.000000e+00 : f32
    %211 = vector.broadcast %cst_54 : f32 to vector<2x128xf32>
    %212 = arith.addf %211, %210 : vector<2x128xf32>
    %cst_55 = arith.constant 1.000000e+00 : f32
    %213 = vector.broadcast %cst_55 : f32 to vector<2x128xf32>
    %214 = arith.divf %213, %212 : vector<2x128xf32>
    %215 = arith.select %22, %207, %214 : vector<2x128xi1>, vector<2x128xf32>
    %216 = vector.extract_strided_slice %215 {offsets = [0, 0], sizes = [2, 32], strides = [1, 1]} : vector<2x128xf32> to vector<2x32xf32>
    %217 = vector.extract_strided_slice %215 {offsets = [0, 32], sizes = [2, 32], strides = [1, 1]} : vector<2x128xf32> to vector<2x32xf32>
    %218 = vector.extract_strided_slice %215 {offsets = [0, 64], sizes = [2, 32], strides = [1, 1]} : vector<2x128xf32> to vector<2x32xf32>
    %219 = vector.extract_strided_slice %215 {offsets = [0, 96], sizes = [2, 32], strides = [1, 1]} : vector<2x128xf32> to vector<2x32xf32>
    %220 = arith.mulf %217, %202 : vector<2x32xf32>
    %221 = arith.mulf %216, %218 : vector<2x32xf32>
    %222 = arith.addf %220, %221 : vector<2x32xf32>
    %223 = math.tanh %222 : vector<2x32xf32>
    %224 = arith.mulf %219, %223 : vector<2x32xf32>
    %225 = tpu.concatenate %224, %200 in 1 : vector<2x32xf32>, vector<2x32xf32> -> vector<2x64xf32>
    %c0_56 = arith.constant 0 : index
    %c0_57 = arith.constant 0 : index
    %c0_58 = arith.constant 0 : index
    %c0_59 = arith.constant 0 : index
    %226 = vector.load %arg8[%c0_56, %c0_57, %c0_58, %c0_59] : memref<1x2x8x64xf32, #tpu.memory_space<vmem>>, vector<1x2x1x64xf32>
    %227 = vector.shape_cast %226 : vector<1x2x1x64xf32> to vector<2x64xf32>
    %228 = vector.shape_cast %225 : vector<2x64xf32> to vector<1x2x1x64xf32>
    tpu.vector_store %arg8[%c0_56, %c0_57, %c0_58, %c0_59], %228 {strides = array<i32>} : memref<1x2x8x64xf32, #tpu.memory_space<vmem>>, vector<1x2x1x64xf32>,
    %229 = vector.extract_strided_slice %8 {offsets = [0, 1, 0], sizes = [2, 1, 128], strides = [1, 1, 1]} : vector<2x8x128xf32> to vector<2x1x128xf32>
    %230 = vector.shape_cast %229 : vector<2x1x128xf32> to vector<2x128xf32>
    %cst_60 = arith.constant dense<0.000000e+00> : vector<2x128xf32>
    %231 = tpu.matmul %224, %15, %cst_60 {dimension_numbers = #tpu.dot_dimension_numbers<[1], [0], [0], [1], [0, 0, 1, 1], [], []>} : vector<2x32xf32>, vector<32x128xf32>, vector<2x128xf32> -> vector<2x128xf32>
    %232 = arith.addf %230, %231 : vector<2x128xf32>
    %233 = math.tanh %232 : vector<2x128xf32>
    %cst_61 = arith.constant 0.000000e+00 : f32
    %234 = vector.broadcast %cst_61 : f32 to vector<2x128xf32>
    %235 = arith.subf %234, %232 : vector<2x128xf32>
    %236 = math.exp %235 : vector<2x128xf32>
    %cst_62 = arith.constant 1.000000e+00 : f32
    %237 = vector.broadcast %cst_62 : f32 to vector<2x128xf32>
    %238 = arith.addf %237, %236 : vector<2x128xf32>
    %cst_63 = arith.constant 1.000000e+00 : f32
    %239 = vector.broadcast %cst_63 : f32 to vector<2x128xf32>
    %240 = arith.divf %239, %238 : vector<2x128xf32>
    %241 = arith.select %22, %233, %240 : vector<2x128xi1>, vector<2x128xf32>
    %242 = vector.extract_strided_slice %241 {offsets = [0, 0], sizes = [2, 32], strides = [1, 1]} : vector<2x128xf32> to vector<2x32xf32>
    %243 = vector.extract_strided_slice %241 {offsets = [0, 32], sizes = [2, 32], strides = [1, 1]} : vector<2x128xf32> to vector<2x32xf32>
    %244 = vector.extract_strided_slice %241 {offsets = [0, 64], sizes = [2, 32], strides = [1, 1]} : vector<2x128xf32> to vector<2x32xf32>
    %245 = vector.extract_strided_slice %241 {offsets = [0, 96], sizes = [2, 32], strides = [1, 1]} : vector<2x128xf32> to vector<2x32xf32>
    %246 = arith.mulf %243, %222 : vector<2x32xf32>
    %247 = arith.mulf %242, %244 : vector<2x32xf32>
    %248 = arith.addf %246, %247 : vector<2x32xf32>
    %249 = math.tanh %248 : vector<2x32xf32>
    %250 = arith.mulf %245, %249 : vector<2x32xf32>
    %251 = tpu.concatenate %250, %178 in 1 : vector<2x32xf32>, vector<2x32xf32> -> vector<2x64xf32>
    %c0_64 = arith.constant 0 : index
    %c0_65 = arith.constant 0 : index
    %c1 = arith.constant 1 : index
    %c0_66 = arith.constant 0 : index
    %252 = vector.load %arg8[%c0_64, %c0_65, %c1, %c0_66] : memref<1x2x8x64xf32, #tpu.memory_space<vmem>>, vector<1x2x1x64xf32>
    %253 = vector.shape_cast %252 : vector<1x2x1x64xf32> to vector<2x64xf32>
    %254 = vector.shape_cast %251 : vector<2x64xf32> to vector<1x2x1x64xf32>
    tpu.vector_store %arg8[%c0_64, %c0_65, %c1, %c0_66], %254 {strides = array<i32>} : memref<1x2x8x64xf32, #tpu.memory_space<vmem>>, vector<1x2x1x64xf32>,
    %255 = vector.extract_strided_slice %8 {offsets = [0, 2, 0], sizes = [2, 1, 128], strides = [1, 1, 1]} : vector<2x8x128xf32> to vector<2x1x128xf32>
    %256 = vector.shape_cast %255 : vector<2x1x128xf32> to vector<2x128xf32>
    %cst_67 = arith.constant dense<0.000000e+00> : vector<2x128xf32>
    %257 = tpu.matmul %250, %15, %cst_67 {dimension_numbers = #tpu.dot_dimension_numbers<[1], [0], [0], [1], [0, 0, 1, 1], [], []>} : vector<2x32xf32>, vector<32x128xf32>, vector<2x128xf32> -> vector<2x128xf32>
    %258 = arith.addf %256, %257 : vector<2x128xf32>
    %259 = math.tanh %258 : vector<2x128xf32>
    %cst_68 = arith.constant 0.000000e+00 : f32
    %260 = vector.broadcast %cst_68 : f32 to vector<2x128xf32>
    %261 = arith.subf %260, %258 : vector<2x128xf32>
    %262 = math.exp %261 : vector<2x128xf32>
    %cst_69 = arith.constant 1.000000e+00 : f32
    %263 = vector.broadcast %cst_69 : f32 to vector<2x128xf32>
    %264 = arith.addf %263, %262 : vector<2x128xf32>
    %cst_70 = arith.constant 1.000000e+00 : f32
    %265 = vector.broadcast %cst_70 : f32 to vector<2x128xf32>
    %266 = arith.divf %265, %264 : vector<2x128xf32>
    %267 = arith.select %22, %259, %266 : vector<2x128xi1>, vector<2x128xf32>
    %268 = vector.extract_strided_slice %267 {offsets = [0, 0], sizes = [2, 32], strides = [1, 1]} : vector<2x128xf32> to vector<2x32xf32>
    %269 = vector.extract_strided_slice %267 {offsets = [0, 32], sizes = [2, 32], strides = [1, 1]} : vector<2x128xf32> to vector<2x32xf32>
    %270 = vector.extract_strided_slice %267 {offsets = [0, 64], sizes = [2, 32], strides = [1, 1]} : vector<2x128xf32> to vector<2x32xf32>
    %271 = vector.extract_strided_slice %267 {offsets = [0, 96], sizes = [2, 32], strides = [1, 1]} : vector<2x128xf32> to vector<2x32xf32>
    %272 = arith.mulf %269, %248 : vector<2x32xf32>
    %273 = arith.mulf %268, %270 : vector<2x32xf32>
    %274 = arith.addf %272, %273 : vector<2x32xf32>
    %275 = math.tanh %274 : vector<2x32xf32>
    %276 = arith.mulf %271, %275 : vector<2x32xf32>
    %277 = tpu.concatenate %276, %156 in 1 : vector<2x32xf32>, vector<2x32xf32> -> vector<2x64xf32>
    %c0_71 = arith.constant 0 : index
    %c0_72 = arith.constant 0 : index
    %c2 = arith.constant 2 : index
    %c0_73 = arith.constant 0 : index
    %278 = vector.load %arg8[%c0_71, %c0_72, %c2, %c0_73] : memref<1x2x8x64xf32, #tpu.memory_space<vmem>>, vector<1x2x1x64xf32>
    %279 = vector.shape_cast %278 : vector<1x2x1x64xf32> to vector<2x64xf32>
    %280 = vector.shape_cast %277 : vector<2x64xf32> to vector<1x2x1x64xf32>
    tpu.vector_store %arg8[%c0_71, %c0_72, %c2, %c0_73], %280 {strides = array<i32>} : memref<1x2x8x64xf32, #tpu.memory_space<vmem>>, vector<1x2x1x64xf32>,
    %281 = vector.extract_strided_slice %8 {offsets = [0, 3, 0], sizes = [2, 1, 128], strides = [1, 1, 1]} : vector<2x8x128xf32> to vector<2x1x128xf32>
    %282 = vector.shape_cast %281 : vector<2x1x128xf32> to vector<2x128xf32>
    %cst_74 = arith.constant dense<0.000000e+00> : vector<2x128xf32>
    %283 = tpu.matmul %276, %15, %cst_74 {dimension_numbers = #tpu.dot_dimension_numbers<[1], [0], [0], [1], [0, 0, 1, 1], [], []>} : vector<2x32xf32>, vector<32x128xf32>, vector<2x128xf32> -> vector<2x128xf32>
    %284 = arith.addf %282, %283 : vector<2x128xf32>
    %285 = math.tanh %284 : vector<2x128xf32>
    %cst_75 = arith.constant 0.000000e+00 : f32
    %286 = vector.broadcast %cst_75 : f32 to vector<2x128xf32>
    %287 = arith.subf %286, %284 : vector<2x128xf32>
    %288 = math.exp %287 : vector<2x128xf32>
    %cst_76 = arith.constant 1.000000e+00 : f32
    %289 = vector.broadcast %cst_76 : f32 to vector<2x128xf32>
    %290 = arith.addf %289, %288 : vector<2x128xf32>
    %cst_77 = arith.constant 1.000000e+00 : f32
    %291 = vector.broadcast %cst_77 : f32 to vector<2x128xf32>
    %292 = arith.divf %291, %290 : vector<2x128xf32>
    %293 = arith.select %22, %285, %292 : vector<2x128xi1>, vector<2x128xf32>
    %294 = vector.extract_strided_slice %293 {offsets = [0, 0], sizes = [2, 32], strides = [1, 1]} : vector<2x128xf32> to vector<2x32xf32>
    %295 = vector.extract_strided_slice %293 {offsets = [0, 32], sizes = [2, 32], strides = [1, 1]} : vector<2x128xf32> to vector<2x32xf32>
    %296 = vector.extract_strided_slice %293 {offsets = [0, 64], sizes = [2, 32], strides = [1, 1]} : vector<2x128xf32> to vector<2x32xf32>
    %297 = vector.extract_strided_slice %293 {offsets = [0, 96], sizes = [2, 32], strides = [1, 1]} : vector<2x128xf32> to vector<2x32xf32>
    %298 = arith.mulf %295, %274 : vector<2x32xf32>
    %299 = arith.mulf %294, %296 : vector<2x32xf32>
    %300 = arith.addf %298, %299 : vector<2x32xf32>
    %301 = math.tanh %300 : vector<2x32xf32>
    %302 = arith.mulf %297, %301 : vector<2x32xf32>
    %303 = tpu.concatenate %302, %134 in 1 : vector<2x32xf32>, vector<2x32xf32> -> vector<2x64xf32>
    %c0_78 = arith.constant 0 : index
    %c0_79 = arith.constant 0 : index
    %c3 = arith.constant 3 : index
    %c0_80 = arith.constant 0 : index
    %304 = vector.load %arg8[%c0_78, %c0_79, %c3, %c0_80] : memref<1x2x8x64xf32, #tpu.memory_space<vmem>>, vector<1x2x1x64xf32>
    %305 = vector.shape_cast %304 : vector<1x2x1x64xf32> to vector<2x64xf32>
    %306 = vector.shape_cast %303 : vector<2x64xf32> to vector<1x2x1x64xf32>
    tpu.vector_store %arg8[%c0_78, %c0_79, %c3, %c0_80], %306 {strides = array<i32>} : memref<1x2x8x64xf32, #tpu.memory_space<vmem>>, vector<1x2x1x64xf32>,
    %307 = vector.extract_strided_slice %8 {offsets = [0, 4, 0], sizes = [2, 1, 128], strides = [1, 1, 1]} : vector<2x8x128xf32> to vector<2x1x128xf32>
    %308 = vector.shape_cast %307 : vector<2x1x128xf32> to vector<2x128xf32>
    %cst_81 = arith.constant dense<0.000000e+00> : vector<2x128xf32>
    %309 = tpu.matmul %302, %15, %cst_81 {dimension_numbers = #tpu.dot_dimension_numbers<[1], [0], [0], [1], [0, 0, 1, 1], [], []>} : vector<2x32xf32>, vector<32x128xf32>, vector<2x128xf32> -> vector<2x128xf32>
    %310 = arith.addf %308, %309 : vector<2x128xf32>
    %311 = math.tanh %310 : vector<2x128xf32>
    %cst_82 = arith.constant 0.000000e+00 : f32
    %312 = vector.broadcast %cst_82 : f32 to vector<2x128xf32>
    %313 = arith.subf %312, %310 : vector<2x128xf32>
    %314 = math.exp %313 : vector<2x128xf32>
    %cst_83 = arith.constant 1.000000e+00 : f32
    %315 = vector.broadcast %cst_83 : f32 to vector<2x128xf32>
    %316 = arith.addf %315, %314 : vector<2x128xf32>
    %cst_84 = arith.constant 1.000000e+00 : f32
    %317 = vector.broadcast %cst_84 : f32 to vector<2x128xf32>
    %318 = arith.divf %317, %316 : vector<2x128xf32>
    %319 = arith.select %22, %311, %318 : vector<2x128xi1>, vector<2x128xf32>
    %320 = vector.extract_strided_slice %319 {offsets = [0, 0], sizes = [2, 32], strides = [1, 1]} : vector<2x128xf32> to vector<2x32xf32>
    %321 = vector.extract_strided_slice %319 {offsets = [0, 32], sizes = [2, 32], strides = [1, 1]} : vector<2x128xf32> to vector<2x32xf32>
    %322 = vector.extract_strided_slice %319 {offsets = [0, 64], sizes = [2, 32], strides = [1, 1]} : vector<2x128xf32> to vector<2x32xf32>
    %323 = vector.extract_strided_slice %319 {offsets = [0, 96], sizes = [2, 32], strides = [1, 1]} : vector<2x128xf32> to vector<2x32xf32>
    %324 = arith.mulf %321, %300 : vector<2x32xf32>
    %325 = arith.mulf %320, %322 : vector<2x32xf32>
    %326 = arith.addf %324, %325 : vector<2x32xf32>
    %327 = math.tanh %326 : vector<2x32xf32>
    %328 = arith.mulf %323, %327 : vector<2x32xf32>
    %329 = tpu.concatenate %328, %112 in 1 : vector<2x32xf32>, vector<2x32xf32> -> vector<2x64xf32>
    %c0_85 = arith.constant 0 : index
    %c0_86 = arith.constant 0 : index
    %c4 = arith.constant 4 : index
    %c0_87 = arith.constant 0 : index
    %330 = vector.load %arg8[%c0_85, %c0_86, %c4, %c0_87] : memref<1x2x8x64xf32, #tpu.memory_space<vmem>>, vector<1x2x1x64xf32>
    %331 = vector.shape_cast %330 : vector<1x2x1x64xf32> to vector<2x64xf32>
    %332 = vector.shape_cast %329 : vector<2x64xf32> to vector<1x2x1x64xf32>
    tpu.vector_store %arg8[%c0_85, %c0_86, %c4, %c0_87], %332 {strides = array<i32>} : memref<1x2x8x64xf32, #tpu.memory_space<vmem>>, vector<1x2x1x64xf32>,
    %333 = vector.extract_strided_slice %8 {offsets = [0, 5, 0], sizes = [2, 1, 128], strides = [1, 1, 1]} : vector<2x8x128xf32> to vector<2x1x128xf32>
    %334 = vector.shape_cast %333 : vector<2x1x128xf32> to vector<2x128xf32>
    %cst_88 = arith.constant dense<0.000000e+00> : vector<2x128xf32>
    %335 = tpu.matmul %328, %15, %cst_88 {dimension_numbers = #tpu.dot_dimension_numbers<[1], [0], [0], [1], [0, 0, 1, 1], [], []>} : vector<2x32xf32>, vector<32x128xf32>, vector<2x128xf32> -> vector<2x128xf32>
    %336 = arith.addf %334, %335 : vector<2x128xf32>
    %337 = math.tanh %336 : vector<2x128xf32>
    %cst_89 = arith.constant 0.000000e+00 : f32
    %338 = vector.broadcast %cst_89 : f32 to vector<2x128xf32>
    %339 = arith.subf %338, %336 : vector<2x128xf32>
    %340 = math.exp %339 : vector<2x128xf32>
    %cst_90 = arith.constant 1.000000e+00 : f32
    %341 = vector.broadcast %cst_90 : f32 to vector<2x128xf32>
    %342 = arith.addf %341, %340 : vector<2x128xf32>
    %cst_91 = arith.constant 1.000000e+00 : f32
    %343 = vector.broadcast %cst_91 : f32 to vector<2x128xf32>
    %344 = arith.divf %343, %342 : vector<2x128xf32>
    %345 = arith.select %22, %337, %344 : vector<2x128xi1>, vector<2x128xf32>
    %346 = vector.extract_strided_slice %345 {offsets = [0, 0], sizes = [2, 32], strides = [1, 1]} : vector<2x128xf32> to vector<2x32xf32>
    %347 = vector.extract_strided_slice %345 {offsets = [0, 32], sizes = [2, 32], strides = [1, 1]} : vector<2x128xf32> to vector<2x32xf32>
    %348 = vector.extract_strided_slice %345 {offsets = [0, 64], sizes = [2, 32], strides = [1, 1]} : vector<2x128xf32> to vector<2x32xf32>
    %349 = vector.extract_strided_slice %345 {offsets = [0, 96], sizes = [2, 32], strides = [1, 1]} : vector<2x128xf32> to vector<2x32xf32>
    %350 = arith.mulf %347, %326 : vector<2x32xf32>
    %351 = arith.mulf %346, %348 : vector<2x32xf32>
    %352 = arith.addf %350, %351 : vector<2x32xf32>
    %353 = math.tanh %352 : vector<2x32xf32>
    %354 = arith.mulf %349, %353 : vector<2x32xf32>
    %355 = tpu.concatenate %354, %90 in 1 : vector<2x32xf32>, vector<2x32xf32> -> vector<2x64xf32>
    %c0_92 = arith.constant 0 : index
    %c0_93 = arith.constant 0 : index
    %c5 = arith.constant 5 : index
    %c0_94 = arith.constant 0 : index
    %356 = vector.load %arg8[%c0_92, %c0_93, %c5, %c0_94] : memref<1x2x8x64xf32, #tpu.memory_space<vmem>>, vector<1x2x1x64xf32>
    %357 = vector.shape_cast %356 : vector<1x2x1x64xf32> to vector<2x64xf32>
    %358 = vector.shape_cast %355 : vector<2x64xf32> to vector<1x2x1x64xf32>
    tpu.vector_store %arg8[%c0_92, %c0_93, %c5, %c0_94], %358 {strides = array<i32>} : memref<1x2x8x64xf32, #tpu.memory_space<vmem>>, vector<1x2x1x64xf32>,
    %359 = vector.extract_strided_slice %8 {offsets = [0, 6, 0], sizes = [2, 1, 128], strides = [1, 1, 1]} : vector<2x8x128xf32> to vector<2x1x128xf32>
    %360 = vector.shape_cast %359 : vector<2x1x128xf32> to vector<2x128xf32>
    %cst_95 = arith.constant dense<0.000000e+00> : vector<2x128xf32>
    %361 = tpu.matmul %354, %15, %cst_95 {dimension_numbers = #tpu.dot_dimension_numbers<[1], [0], [0], [1], [0, 0, 1, 1], [], []>} : vector<2x32xf32>, vector<32x128xf32>, vector<2x128xf32> -> vector<2x128xf32>
    %362 = arith.addf %360, %361 : vector<2x128xf32>
    %363 = math.tanh %362 : vector<2x128xf32>
    %cst_96 = arith.constant 0.000000e+00 : f32
    %364 = vector.broadcast %cst_96 : f32 to vector<2x128xf32>
    %365 = arith.subf %364, %362 : vector<2x128xf32>
    %366 = math.exp %365 : vector<2x128xf32>
    %cst_97 = arith.constant 1.000000e+00 : f32
    %367 = vector.broadcast %cst_97 : f32 to vector<2x128xf32>
    %368 = arith.addf %367, %366 : vector<2x128xf32>
    %cst_98 = arith.constant 1.000000e+00 : f32
    %369 = vector.broadcast %cst_98 : f32 to vector<2x128xf32>
    %370 = arith.divf %369, %368 : vector<2x128xf32>
    %371 = arith.select %22, %363, %370 : vector<2x128xi1>, vector<2x128xf32>
    %372 = vector.extract_strided_slice %371 {offsets = [0, 0], sizes = [2, 32], strides = [1, 1]} : vector<2x128xf32> to vector<2x32xf32>
    %373 = vector.extract_strided_slice %371 {offsets = [0, 32], sizes = [2, 32], strides = [1, 1]} : vector<2x128xf32> to vector<2x32xf32>
    %374 = vector.extract_strided_slice %371 {offsets = [0, 64], sizes = [2, 32], strides = [1, 1]} : vector<2x128xf32> to vector<2x32xf32>
    %375 = vector.extract_strided_slice %371 {offsets = [0, 96], sizes = [2, 32], strides = [1, 1]} : vector<2x128xf32> to vector<2x32xf32>
    %376 = arith.mulf %373, %352 : vector<2x32xf32>
    %377 = arith.mulf %372, %374 : vector<2x32xf32>
    %378 = arith.addf %376, %377 : vector<2x32xf32>
    %379 = math.tanh %378 : vector<2x32xf32>
    %380 = arith.mulf %375, %379 : vector<2x32xf32>
    %381 = tpu.concatenate %380, %68 in 1 : vector<2x32xf32>, vector<2x32xf32> -> vector<2x64xf32>
    %c0_99 = arith.constant 0 : index
    %c0_100 = arith.constant 0 : index
    %c6 = arith.constant 6 : index
    %c0_101 = arith.constant 0 : index
    %382 = vector.load %arg8[%c0_99, %c0_100, %c6, %c0_101] : memref<1x2x8x64xf32, #tpu.memory_space<vmem>>, vector<1x2x1x64xf32>
    %383 = vector.shape_cast %382 : vector<1x2x1x64xf32> to vector<2x64xf32>
    %384 = vector.shape_cast %381 : vector<2x64xf32> to vector<1x2x1x64xf32>
    tpu.vector_store %arg8[%c0_99, %c0_100, %c6, %c0_101], %384 {strides = array<i32>} : memref<1x2x8x64xf32, #tpu.memory_space<vmem>>, vector<1x2x1x64xf32>,
    %385 = vector.extract_strided_slice %8 {offsets = [0, 7, 0], sizes = [2, 1, 128], strides = [1, 1, 1]} : vector<2x8x128xf32> to vector<2x1x128xf32>
    %386 = vector.shape_cast %385 : vector<2x1x128xf32> to vector<2x128xf32>
    %cst_102 = arith.constant dense<0.000000e+00> : vector<2x128xf32>
    %387 = tpu.matmul %380, %15, %cst_102 {dimension_numbers = #tpu.dot_dimension_numbers<[1], [0], [0], [1], [0, 0, 1, 1], [], []>} : vector<2x32xf32>, vector<32x128xf32>, vector<2x128xf32> -> vector<2x128xf32>
    %388 = arith.addf %386, %387 : vector<2x128xf32>
    %389 = math.tanh %388 : vector<2x128xf32>
    %cst_103 = arith.constant 0.000000e+00 : f32
    %390 = vector.broadcast %cst_103 : f32 to vector<2x128xf32>
    %391 = arith.subf %390, %388 : vector<2x128xf32>
    %392 = math.exp %391 : vector<2x128xf32>
    %cst_104 = arith.constant 1.000000e+00 : f32
    %393 = vector.broadcast %cst_104 : f32 to vector<2x128xf32>
    %394 = arith.addf %393, %392 : vector<2x128xf32>
    %cst_105 = arith.constant 1.000000e+00 : f32
    %395 = vector.broadcast %cst_105 : f32 to vector<2x128xf32>
    %396 = arith.divf %395, %394 : vector<2x128xf32>
    %397 = arith.select %22, %389, %396 : vector<2x128xi1>, vector<2x128xf32>
    %398 = vector.extract_strided_slice %397 {offsets = [0, 0], sizes = [2, 32], strides = [1, 1]} : vector<2x128xf32> to vector<2x32xf32>
    %399 = vector.extract_strided_slice %397 {offsets = [0, 32], sizes = [2, 32], strides = [1, 1]} : vector<2x128xf32> to vector<2x32xf32>
    %400 = vector.extract_strided_slice %397 {offsets = [0, 64], sizes = [2, 32], strides = [1, 1]} : vector<2x128xf32> to vector<2x32xf32>
    %401 = vector.extract_strided_slice %397 {offsets = [0, 96], sizes = [2, 32], strides = [1, 1]} : vector<2x128xf32> to vector<2x32xf32>
    %402 = arith.mulf %399, %378 : vector<2x32xf32>
    %403 = arith.mulf %398, %400 : vector<2x32xf32>
    %404 = arith.addf %402, %403 : vector<2x32xf32>
    %405 = math.tanh %404 : vector<2x32xf32>
    %406 = arith.mulf %401, %405 : vector<2x32xf32>
    %407 = tpu.concatenate %406, %46 in 1 : vector<2x32xf32>, vector<2x32xf32> -> vector<2x64xf32>
    %c0_106 = arith.constant 0 : index
    %c0_107 = arith.constant 0 : index
    %c7 = arith.constant 7 : index
    %c0_108 = arith.constant 0 : index
    %408 = vector.load %arg8[%c0_106, %c0_107, %c7, %c0_108] : memref<1x2x8x64xf32, #tpu.memory_space<vmem>>, vector<1x2x1x64xf32>
    %409 = vector.shape_cast %408 : vector<1x2x1x64xf32> to vector<2x64xf32>
    %410 = vector.shape_cast %407 : vector<2x64xf32> to vector<1x2x1x64xf32>
    tpu.vector_store %arg8[%c0_106, %c0_107, %c7, %c0_108], %410 {strides = array<i32>} : memref<1x2x8x64xf32, #tpu.memory_space<vmem>>, vector<1x2x1x64xf32>,
    return
  }
  func.func @transform_0(%arg0: i32) -> (i32, i32, i32, i32) {
    %c0_i32 = arith.constant 0 : i32
    %c0_i32_0 = arith.constant 0 : i32
    %c0_i32_1 = arith.constant 0 : i32
    %c0_i32_2 = arith.constant 0 : i32
    return %arg0, %c0_i32, %c0_i32_0, %c0_i32_1 : i32, i32, i32, i32
  }
  func.func @transform_1(%arg0: i32) -> (i32, i32) {
    %c0_i32 = arith.constant 0 : i32
    %c0_i32_0 = arith.constant 0 : i32
    %c0_i32_1 = arith.constant 0 : i32
    return %c0_i32, %c0_i32_0 : i32, i32
  }
  func.func @transform_2(%arg0: i32) -> (i32, i32) {
    %c0_i32 = arith.constant 0 : i32
    %c0_i32_0 = arith.constant 0 : i32
    %c0_i32_1 = arith.constant 0 : i32
    return %c0_i32, %c0_i32_0 : i32, i32
  }
  func.func @transform_3(%arg0: i32) -> (i32, i32) {
    %c0_i32 = arith.constant 0 : i32
    %c0_i32_0 = arith.constant 0 : i32
    %c0_i32_1 = arith.constant 0 : i32
    return %c0_i32, %c0_i32_0 : i32, i32
  }
  func.func @transform_4(%arg0: i32) -> (i32, i32) {
    %c0_i32 = arith.constant 0 : i32
    %c0_i32_0 = arith.constant 0 : i32
    %c0_i32_1 = arith.constant 0 : i32
    return %c0_i32, %c0_i32_0 : i32, i32
  }
  func.func @transform_5(%arg0: i32) -> (i32, i32) {
    %c0_i32 = arith.constant 0 : i32
    %c0_i32_0 = arith.constant 0 : i32
    %c0_i32_1 = arith.constant 0 : i32
    return %c0_i32, %c0_i32_0 : i32, i32
  }
  func.func @transform_6(%arg0: i32) -> (i32, i32) {
    %c0_i32 = arith.constant 0 : i32
    %c0_i32_0 = arith.constant 0 : i32
    %c0_i32_1 = arith.constant 0 : i32
    return %c0_i32, %c0_i32_0 : i32, i32
  }
  func.func @transform_7(%arg0: i32) -> (i32, i32, i32, i32) {
    %c0_i32 = arith.constant 0 : i32
    %c0_i32_0 = arith.constant 0 : i32
    %c0_i32_1 = arith.constant 0 : i32
    %c0_i32_2 = arith.constant 0 : i32
    return %arg0, %c0_i32, %c0_i32_0, %c0_i32_1 : i32, i32, i32, i32
  }
}

module attributes {stable_mosaic.version = 11 : i64} {
  func.func @_attn_lstm2_head_kernel(%arg0: memref<2x2x8x64xf32, #tpu.memory_space<vmem>>, %arg1: memref<2x2x8xf32, #tpu.memory_space<vmem>>, %arg2: memref<256x128xf32, #tpu.memory_space<vmem>>, %arg3: memref<32x128xf32, #tpu.memory_space<vmem>>, %arg4: memref<1x128xf32, #tpu.memory_space<vmem>>, %arg5: memref<1x128xf32, #tpu.memory_space<vmem>>, %arg6: memref<1x128xf32, #tpu.memory_space<vmem>>, %arg7: memref<128x64xf32, #tpu.memory_space<vmem>>, %arg8: memref<1x64xf32, #tpu.memory_space<vmem>>, %arg9: memref<1x64xf32, #tpu.memory_space<vmem>>, %arg10: memref<1x64xf32, #tpu.memory_space<vmem>>, %arg11: memref<64x64xf32, #tpu.memory_space<vmem>>, %arg12: memref<1x64xf32, #tpu.memory_space<vmem>>, %arg13: memref<1x64xf32, #tpu.memory_space<vmem>>, %arg14: memref<1x64xf32, #tpu.memory_space<vmem>>, %arg15: memref<64x2xf32, #tpu.memory_space<vmem>>, %arg16: memref<1x2xf32, #tpu.memory_space<vmem>>, %arg17: memref<2x2xf32, #tpu.memory_space<vmem>>) attributes {dimension_semantics = [], scalar_prefetch = 0 : i64, scratch_operands = 0 : i64, tpu.core_type = #tpu.core_type<tc>} {
    %c0 = arith.constant 0 : index
    %c0_0 = arith.constant 0 : index
    %c0_1 = arith.constant 0 : index
    %c0_2 = arith.constant 0 : index
    %0 = vector.load %arg0[%c0, %c0_0, %c0_1, %c0_2] : memref<2x2x8x64xf32, #tpu.memory_space<vmem>>, vector<1x2x8x64xf32>
    %1 = vector.shape_cast %0 : vector<1x2x8x64xf32> to vector<2x8x64xf32>
    %c1 = arith.constant 1 : index
    %c0_3 = arith.constant 0 : index
    %c0_4 = arith.constant 0 : index
    %c0_5 = arith.constant 0 : index
    %2 = vector.load %arg0[%c1, %c0_3, %c0_4, %c0_5] : memref<2x2x8x64xf32, #tpu.memory_space<vmem>>, vector<1x2x8x64xf32>
    %3 = vector.shape_cast %2 : vector<1x2x8x64xf32> to vector<2x8x64xf32>
    %c0_6 = arith.constant 0 : index
    %c0_7 = arith.constant 0 : index
    %c0_8 = arith.constant 0 : index
    %4 = vector.load %arg1[%c0_6, %c0_7, %c0_8] : memref<2x2x8xf32, #tpu.memory_space<vmem>>, vector<1x2x8xf32>
    %5 = vector.shape_cast %4 : vector<1x2x8xf32> to vector<2x8xf32>
    %c1_9 = arith.constant 1 : index
    %c0_10 = arith.constant 0 : index
    %c0_11 = arith.constant 0 : index
    %6 = vector.load %arg1[%c1_9, %c0_10, %c0_11] : memref<2x2x8xf32, #tpu.memory_space<vmem>>, vector<1x2x8xf32>
    %7 = vector.shape_cast %6 : vector<1x2x8xf32> to vector<2x8xf32>
    "tpu.trace_start"() <{level = 10 : i32, message = "bkd,bqd->bkq"}> : () -> ()
    %cst = arith.constant dense<0.000000e+00> : vector<2x8x8xf32>
    %8 = tpu.matmul %3, %1, %cst {dimension_numbers = #tpu.dot_dimension_numbers<[2], [2], [1], [1], [0, 0, 0, 1, 1, 1], [0], [0]>} : vector<2x8x64xf32>, vector<2x8x64xf32>, vector<2x8x8xf32> -> vector<2x8x8xf32>
    "tpu.trace_stop"() : () -> ()
    %9 = vector.shape_cast %5 : vector<2x8xf32> to vector<2x1x8xf32>
    %10 = vector.broadcast %9 : vector<2x1x8xf32> to vector<2x8x8xf32>
    %11 = arith.addf %8, %10 : vector<2x8x8xf32>
    %cst_12 = arith.constant dense<0xFF800000> : vector<2x8xf32>
    %12 = vector.multi_reduction <maximumf>, %11, %cst_12 [2] : vector<2x8x8xf32> to vector<2x8xf32>
    %13 = vector.shape_cast %12 : vector<2x8xf32> to vector<2x8x1xf32>
    %14 = vector.broadcast %13 : vector<2x8x1xf32> to vector<2x8x8xf32>
    %15 = arith.subf %11, %14 : vector<2x8x8xf32>
    %16 = math.exp %15 : vector<2x8x8xf32>
    %cst_13 = arith.constant dense<0.000000e+00> : vector<2x8xf32>
    %17 = vector.multi_reduction <add>, %16, %cst_13 [2] : vector<2x8x8xf32> to vector<2x8xf32>
    %18 = vector.shape_cast %17 : vector<2x8xf32> to vector<2x8x1xf32>
    %19 = tpu.reciprocal %18 : vector<2x8x1xf32> -> vector<2x8x1xf32>
    %20 = vector.broadcast %19 : vector<2x8x1xf32> to vector<2x8x8xf32>
    %21 = arith.mulf %16, %20 : vector<2x8x8xf32>
    "tpu.trace_start"() <{level = 10 : i32, message = "bkq,bqd->bkd"}> : () -> ()
    %cst_14 = arith.constant dense<0.000000e+00> : vector<2x8x64xf32>
    %22 = tpu.matmul %21, %1, %cst_14 {dimension_numbers = #tpu.dot_dimension_numbers<[2], [1], [1], [2], [0, 0, 0, 1, 1, 2], [0], [0]>} : vector<2x8x8xf32>, vector<2x8x64xf32>, vector<2x8x64xf32> -> vector<2x8x64xf32>
    "tpu.trace_stop"() : () -> ()
    "tpu.trace_start"() <{level = 10 : i32, message = "bqd,bkd->bqk"}> : () -> ()
    %cst_15 = arith.constant dense<0.000000e+00> : vector<2x8x8xf32>
    %23 = tpu.matmul %1, %3, %cst_15 {dimension_numbers = #tpu.dot_dimension_numbers<[2], [2], [1], [1], [0, 0, 0, 1, 1, 1], [0], [0]>} : vector<2x8x64xf32>, vector<2x8x64xf32>, vector<2x8x8xf32> -> vector<2x8x8xf32>
    "tpu.trace_stop"() : () -> ()
    %24 = vector.shape_cast %7 : vector<2x8xf32> to vector<2x1x8xf32>
    %25 = vector.broadcast %24 : vector<2x1x8xf32> to vector<2x8x8xf32>
    %26 = arith.addf %23, %25 : vector<2x8x8xf32>
    %cst_16 = arith.constant dense<0xFF800000> : vector<2x8xf32>
    %27 = vector.multi_reduction <maximumf>, %26, %cst_16 [2] : vector<2x8x8xf32> to vector<2x8xf32>
    %28 = vector.shape_cast %27 : vector<2x8xf32> to vector<2x8x1xf32>
    %29 = vector.broadcast %28 : vector<2x8x1xf32> to vector<2x8x8xf32>
    %30 = arith.subf %26, %29 : vector<2x8x8xf32>
    %31 = math.exp %30 : vector<2x8x8xf32>
    %cst_17 = arith.constant dense<0.000000e+00> : vector<2x8xf32>
    %32 = vector.multi_reduction <add>, %31, %cst_17 [2] : vector<2x8x8xf32> to vector<2x8xf32>
    %33 = vector.shape_cast %32 : vector<2x8xf32> to vector<2x8x1xf32>
    %34 = tpu.reciprocal %33 : vector<2x8x1xf32> -> vector<2x8x1xf32>
    %35 = vector.broadcast %34 : vector<2x8x1xf32> to vector<2x8x8xf32>
    %36 = arith.mulf %31, %35 : vector<2x8x8xf32>
    "tpu.trace_start"() <{level = 10 : i32, message = "bqk,bkd->bqd"}> : () -> ()
    %cst_18 = arith.constant dense<0.000000e+00> : vector<2x8x64xf32>
    %37 = tpu.matmul %36, %3, %cst_18 {dimension_numbers = #tpu.dot_dimension_numbers<[2], [1], [1], [2], [0, 0, 0, 1, 1, 2], [0], [0]>} : vector<2x8x8xf32>, vector<2x8x64xf32>, vector<2x8x64xf32> -> vector<2x8x64xf32>
    "tpu.trace_stop"() : () -> ()
    %38 = arith.subf %1, %37 : vector<2x8x64xf32>
    %39 = arith.mulf %1, %37 : vector<2x8x64xf32>
    %40 = tpu.concatenate %1, %37, %38, %39 in 2 : vector<2x8x64xf32>, vector<2x8x64xf32>, vector<2x8x64xf32>, vector<2x8x64xf32> -> vector<2x8x256xf32>
    %41 = arith.subf %3, %22 : vector<2x8x64xf32>
    %42 = arith.mulf %3, %22 : vector<2x8x64xf32>
    %43 = tpu.concatenate %3, %22, %41, %42 in 2 : vector<2x8x64xf32>, vector<2x8x64xf32>, vector<2x8x64xf32>, vector<2x8x64xf32> -> vector<2x8x256xf32>
    %c0_19 = arith.constant 0 : index
    %c0_20 = arith.constant 0 : index
    %44 = vector.load %arg2[%c0_19, %c0_20] : memref<256x128xf32, #tpu.memory_space<vmem>>, vector<256x128xf32>
    %c0_21 = arith.constant 0 : index
    %c0_22 = arith.constant 0 : index
    %45 = vector.load %arg3[%c0_21, %c0_22] : memref<32x128xf32, #tpu.memory_space<vmem>>, vector<32x128xf32>
    %c0_23 = arith.constant 0 : index
    %c0_24 = arith.constant 0 : index
    %46 = vector.load %arg4[%c0_23, %c0_24] : memref<1x128xf32, #tpu.memory_space<vmem>>, vector<1x128xf32>
    %47 = tpu.iota {dimensions = array<i32: 1>} : vector<2x128xi32>
    %c64_i32 = arith.constant 64 : i32
    %48 = vector.broadcast %c64_i32 : i32 to vector<2x128xi32>
    %49 = arith.cmpi sge, %47, %48 : vector<2x128xi32>
    %c96_i32 = arith.constant 96 : i32
    %50 = vector.broadcast %c96_i32 : i32 to vector<2x128xi32>
    %51 = arith.cmpi slt, %47, %50 : vector<2x128xi32>
    %52 = arith.andi %49, %51 : vector<2x128xi1>
    %53 = vector.shape_cast %40 : vector<2x8x256xf32> to vector<16x256xf32>
    %cst_25 = arith.constant dense<0.000000e+00> : vector<16x128xf32>
    %54 = tpu.matmul %53, %44, %cst_25 {dimension_numbers = #tpu.dot_dimension_numbers<[1], [0], [0], [1], [0, 0, 1, 1], [], []>} : vector<16x256xf32>, vector<256x128xf32>, vector<16x128xf32> -> vector<16x128xf32>
    %55 = vector.broadcast %46 : vector<1x128xf32> to vector<16x128xf32>
    %56 = arith.addf %54, %55 : vector<16x128xf32>
    %57 = vector.shape_cast %56 : vector<16x128xf32> to vector<2x8x128xf32>
    %cst_26 = arith.constant 0.000000e+00 : f32
    %58 = vector.broadcast %cst_26 : f32 to vector<2x32xf32>
    %cst_27 = arith.constant 0.000000e+00 : f32
    %59 = vector.broadcast %cst_27 : f32 to vector<2x32xf32>
    %cst_28 = arith.constant 0.000000e+00 : f32
    %60 = vector.broadcast %cst_28 : f32 to vector<2x32xf32>
    %61 = vector.extract_strided_slice %57 {offsets = [0, 0, 0], sizes = [2, 1, 128], strides = [1, 1, 1]} : vector<2x8x128xf32> to vector<2x1x128xf32>
    %62 = vector.shape_cast %61 : vector<2x1x128xf32> to vector<2x128xf32>
    %cst_29 = arith.constant dense<0.000000e+00> : vector<2x128xf32>
    %63 = tpu.matmul %58, %45, %cst_29 {dimension_numbers = #tpu.dot_dimension_numbers<[1], [0], [0], [1], [0, 0, 1, 1], [], []>} : vector<2x32xf32>, vector<32x128xf32>, vector<2x128xf32> -> vector<2x128xf32>
    %64 = arith.addf %62, %63 : vector<2x128xf32>
    %65 = math.tanh %64 : vector<2x128xf32>
    %cst_30 = arith.constant 0.000000e+00 : f32
    %66 = vector.broadcast %cst_30 : f32 to vector<2x128xf32>
    %67 = arith.subf %66, %64 : vector<2x128xf32>
    %68 = math.exp %67 : vector<2x128xf32>
    %cst_31 = arith.constant 1.000000e+00 : f32
    %69 = vector.broadcast %cst_31 : f32 to vector<2x128xf32>
    %70 = arith.addf %69, %68 : vector<2x128xf32>
    %cst_32 = arith.constant 1.000000e+00 : f32
    %71 = vector.broadcast %cst_32 : f32 to vector<2x128xf32>
    %72 = arith.divf %71, %70 : vector<2x128xf32>
    %73 = arith.select %52, %65, %72 : vector<2x128xi1>, vector<2x128xf32>
    %74 = vector.extract_strided_slice %73 {offsets = [0, 0], sizes = [2, 32], strides = [1, 1]} : vector<2x128xf32> to vector<2x32xf32>
    %75 = vector.extract_strided_slice %73 {offsets = [0, 32], sizes = [2, 32], strides = [1, 1]} : vector<2x128xf32> to vector<2x32xf32>
    %76 = vector.extract_strided_slice %73 {offsets = [0, 64], sizes = [2, 32], strides = [1, 1]} : vector<2x128xf32> to vector<2x32xf32>
    %77 = vector.extract_strided_slice %73 {offsets = [0, 96], sizes = [2, 32], strides = [1, 1]} : vector<2x128xf32> to vector<2x32xf32>
    %78 = arith.mulf %75, %59 : vector<2x32xf32>
    %79 = arith.mulf %74, %76 : vector<2x32xf32>
    %80 = arith.addf %78, %79 : vector<2x32xf32>
    %81 = math.tanh %80 : vector<2x32xf32>
    %82 = arith.mulf %77, %81 : vector<2x32xf32>
    %83 = arith.addf %60, %82 : vector<2x32xf32>
    %84 = vector.extract_strided_slice %57 {offsets = [0, 1, 0], sizes = [2, 1, 128], strides = [1, 1, 1]} : vector<2x8x128xf32> to vector<2x1x128xf32>
    %85 = vector.shape_cast %84 : vector<2x1x128xf32> to vector<2x128xf32>
    %cst_33 = arith.constant dense<0.000000e+00> : vector<2x128xf32>
    %86 = tpu.matmul %82, %45, %cst_33 {dimension_numbers = #tpu.dot_dimension_numbers<[1], [0], [0], [1], [0, 0, 1, 1], [], []>} : vector<2x32xf32>, vector<32x128xf32>, vector<2x128xf32> -> vector<2x128xf32>
    %87 = arith.addf %85, %86 : vector<2x128xf32>
    %88 = math.tanh %87 : vector<2x128xf32>
    %cst_34 = arith.constant 0.000000e+00 : f32
    %89 = vector.broadcast %cst_34 : f32 to vector<2x128xf32>
    %90 = arith.subf %89, %87 : vector<2x128xf32>
    %91 = math.exp %90 : vector<2x128xf32>
    %cst_35 = arith.constant 1.000000e+00 : f32
    %92 = vector.broadcast %cst_35 : f32 to vector<2x128xf32>
    %93 = arith.addf %92, %91 : vector<2x128xf32>
    %cst_36 = arith.constant 1.000000e+00 : f32
    %94 = vector.broadcast %cst_36 : f32 to vector<2x128xf32>
    %95 = arith.divf %94, %93 : vector<2x128xf32>
    %96 = arith.select %52, %88, %95 : vector<2x128xi1>, vector<2x128xf32>
    %97 = vector.extract_strided_slice %96 {offsets = [0, 0], sizes = [2, 32], strides = [1, 1]} : vector<2x128xf32> to vector<2x32xf32>
    %98 = vector.extract_strided_slice %96 {offsets = [0, 32], sizes = [2, 32], strides = [1, 1]} : vector<2x128xf32> to vector<2x32xf32>
    %99 = vector.extract_strided_slice %96 {offsets = [0, 64], sizes = [2, 32], strides = [1, 1]} : vector<2x128xf32> to vector<2x32xf32>
    %100 = vector.extract_strided_slice %96 {offsets = [0, 96], sizes = [2, 32], strides = [1, 1]} : vector<2x128xf32> to vector<2x32xf32>
    %101 = arith.mulf %98, %80 : vector<2x32xf32>
    %102 = arith.mulf %97, %99 : vector<2x32xf32>
    %103 = arith.addf %101, %102 : vector<2x32xf32>
    %104 = math.tanh %103 : vector<2x32xf32>
    %105 = arith.mulf %100, %104 : vector<2x32xf32>
    %106 = arith.addf %83, %105 : vector<2x32xf32>
    %107 = arith.maximumf %82, %105 : vector<2x32xf32>
    %108 = vector.extract_strided_slice %57 {offsets = [0, 2, 0], sizes = [2, 1, 128], strides = [1, 1, 1]} : vector<2x8x128xf32> to vector<2x1x128xf32>
    %109 = vector.shape_cast %108 : vector<2x1x128xf32> to vector<2x128xf32>
    %cst_37 = arith.constant dense<0.000000e+00> : vector<2x128xf32>
    %110 = tpu.matmul %105, %45, %cst_37 {dimension_numbers = #tpu.dot_dimension_numbers<[1], [0], [0], [1], [0, 0, 1, 1], [], []>} : vector<2x32xf32>, vector<32x128xf32>, vector<2x128xf32> -> vector<2x128xf32>
    %111 = arith.addf %109, %110 : vector<2x128xf32>
    %112 = math.tanh %111 : vector<2x128xf32>
    %cst_38 = arith.constant 0.000000e+00 : f32
    %113 = vector.broadcast %cst_38 : f32 to vector<2x128xf32>
    %114 = arith.subf %113, %111 : vector<2x128xf32>
    %115 = math.exp %114 : vector<2x128xf32>
    %cst_39 = arith.constant 1.000000e+00 : f32
    %116 = vector.broadcast %cst_39 : f32 to vector<2x128xf32>
    %117 = arith.addf %116, %115 : vector<2x128xf32>
    %cst_40 = arith.constant 1.000000e+00 : f32
    %118 = vector.broadcast %cst_40 : f32 to vector<2x128xf32>
    %119 = arith.divf %118, %117 : vector<2x128xf32>
    %120 = arith.select %52, %112, %119 : vector<2x128xi1>, vector<2x128xf32>
    %121 = vector.extract_strided_slice %120 {offsets = [0, 0], sizes = [2, 32], strides = [1, 1]} : vector<2x128xf32> to vector<2x32xf32>
    %122 = vector.extract_strided_slice %120 {offsets = [0, 32], sizes = [2, 32], strides = [1, 1]} : vector<2x128xf32> to vector<2x32xf32>
    %123 = vector.extract_strided_slice %120 {offsets = [0, 64], sizes = [2, 32], strides = [1, 1]} : vector<2x128xf32> to vector<2x32xf32>
    %124 = vector.extract_strided_slice %120 {offsets = [0, 96], sizes = [2, 32], strides = [1, 1]} : vector<2x128xf32> to vector<2x32xf32>
    %125 = arith.mulf %122, %103 : vector<2x32xf32>
    %126 = arith.mulf %121, %123 : vector<2x32xf32>
    %127 = arith.addf %125, %126 : vector<2x32xf32>
    %128 = math.tanh %127 : vector<2x32xf32>
    %129 = arith.mulf %124, %128 : vector<2x32xf32>
    %130 = arith.addf %106, %129 : vector<2x32xf32>
    %131 = arith.maximumf %107, %129 : vector<2x32xf32>
    %132 = vector.extract_strided_slice %57 {offsets = [0, 3, 0], sizes = [2, 1, 128], strides = [1, 1, 1]} : vector<2x8x128xf32> to vector<2x1x128xf32>
    %133 = vector.shape_cast %132 : vector<2x1x128xf32> to vector<2x128xf32>
    %cst_41 = arith.constant dense<0.000000e+00> : vector<2x128xf32>
    %134 = tpu.matmul %129, %45, %cst_41 {dimension_numbers = #tpu.dot_dimension_numbers<[1], [0], [0], [1], [0, 0, 1, 1], [], []>} : vector<2x32xf32>, vector<32x128xf32>, vector<2x128xf32> -> vector<2x128xf32>
    %135 = arith.addf %133, %134 : vector<2x128xf32>
    %136 = math.tanh %135 : vector<2x128xf32>
    %cst_42 = arith.constant 0.000000e+00 : f32
    %137 = vector.broadcast %cst_42 : f32 to vector<2x128xf32>
    %138 = arith.subf %137, %135 : vector<2x128xf32>
    %139 = math.exp %138 : vector<2x128xf32>
    %cst_43 = arith.constant 1.000000e+00 : f32
    %140 = vector.broadcast %cst_43 : f32 to vector<2x128xf32>
    %141 = arith.addf %140, %139 : vector<2x128xf32>
    %cst_44 = arith.constant 1.000000e+00 : f32
    %142 = vector.broadcast %cst_44 : f32 to vector<2x128xf32>
    %143 = arith.divf %142, %141 : vector<2x128xf32>
    %144 = arith.select %52, %136, %143 : vector<2x128xi1>, vector<2x128xf32>
    %145 = vector.extract_strided_slice %144 {offsets = [0, 0], sizes = [2, 32], strides = [1, 1]} : vector<2x128xf32> to vector<2x32xf32>
    %146 = vector.extract_strided_slice %144 {offsets = [0, 32], sizes = [2, 32], strides = [1, 1]} : vector<2x128xf32> to vector<2x32xf32>
    %147 = vector.extract_strided_slice %144 {offsets = [0, 64], sizes = [2, 32], strides = [1, 1]} : vector<2x128xf32> to vector<2x32xf32>
    %148 = vector.extract_strided_slice %144 {offsets = [0, 96], sizes = [2, 32], strides = [1, 1]} : vector<2x128xf32> to vector<2x32xf32>
    %149 = arith.mulf %146, %127 : vector<2x32xf32>
    %150 = arith.mulf %145, %147 : vector<2x32xf32>
    %151 = arith.addf %149, %150 : vector<2x32xf32>
    %152 = math.tanh %151 : vector<2x32xf32>
    %153 = arith.mulf %148, %152 : vector<2x32xf32>
    %154 = arith.addf %130, %153 : vector<2x32xf32>
    %155 = arith.maximumf %131, %153 : vector<2x32xf32>
    %156 = vector.extract_strided_slice %57 {offsets = [0, 4, 0], sizes = [2, 1, 128], strides = [1, 1, 1]} : vector<2x8x128xf32> to vector<2x1x128xf32>
    %157 = vector.shape_cast %156 : vector<2x1x128xf32> to vector<2x128xf32>
    %cst_45 = arith.constant dense<0.000000e+00> : vector<2x128xf32>
    %158 = tpu.matmul %153, %45, %cst_45 {dimension_numbers = #tpu.dot_dimension_numbers<[1], [0], [0], [1], [0, 0, 1, 1], [], []>} : vector<2x32xf32>, vector<32x128xf32>, vector<2x128xf32> -> vector<2x128xf32>
    %159 = arith.addf %157, %158 : vector<2x128xf32>
    %160 = math.tanh %159 : vector<2x128xf32>
    %cst_46 = arith.constant 0.000000e+00 : f32
    %161 = vector.broadcast %cst_46 : f32 to vector<2x128xf32>
    %162 = arith.subf %161, %159 : vector<2x128xf32>
    %163 = math.exp %162 : vector<2x128xf32>
    %cst_47 = arith.constant 1.000000e+00 : f32
    %164 = vector.broadcast %cst_47 : f32 to vector<2x128xf32>
    %165 = arith.addf %164, %163 : vector<2x128xf32>
    %cst_48 = arith.constant 1.000000e+00 : f32
    %166 = vector.broadcast %cst_48 : f32 to vector<2x128xf32>
    %167 = arith.divf %166, %165 : vector<2x128xf32>
    %168 = arith.select %52, %160, %167 : vector<2x128xi1>, vector<2x128xf32>
    %169 = vector.extract_strided_slice %168 {offsets = [0, 0], sizes = [2, 32], strides = [1, 1]} : vector<2x128xf32> to vector<2x32xf32>
    %170 = vector.extract_strided_slice %168 {offsets = [0, 32], sizes = [2, 32], strides = [1, 1]} : vector<2x128xf32> to vector<2x32xf32>
    %171 = vector.extract_strided_slice %168 {offsets = [0, 64], sizes = [2, 32], strides = [1, 1]} : vector<2x128xf32> to vector<2x32xf32>
    %172 = vector.extract_strided_slice %168 {offsets = [0, 96], sizes = [2, 32], strides = [1, 1]} : vector<2x128xf32> to vector<2x32xf32>
    %173 = arith.mulf %170, %151 : vector<2x32xf32>
    %174 = arith.mulf %169, %171 : vector<2x32xf32>
    %175 = arith.addf %173, %174 : vector<2x32xf32>
    %176 = math.tanh %175 : vector<2x32xf32>
    %177 = arith.mulf %172, %176 : vector<2x32xf32>
    %178 = arith.addf %154, %177 : vector<2x32xf32>
    %179 = arith.maximumf %155, %177 : vector<2x32xf32>
    %180 = vector.extract_strided_slice %57 {offsets = [0, 5, 0], sizes = [2, 1, 128], strides = [1, 1, 1]} : vector<2x8x128xf32> to vector<2x1x128xf32>
    %181 = vector.shape_cast %180 : vector<2x1x128xf32> to vector<2x128xf32>
    %cst_49 = arith.constant dense<0.000000e+00> : vector<2x128xf32>
    %182 = tpu.matmul %177, %45, %cst_49 {dimension_numbers = #tpu.dot_dimension_numbers<[1], [0], [0], [1], [0, 0, 1, 1], [], []>} : vector<2x32xf32>, vector<32x128xf32>, vector<2x128xf32> -> vector<2x128xf32>
    %183 = arith.addf %181, %182 : vector<2x128xf32>
    %184 = math.tanh %183 : vector<2x128xf32>
    %cst_50 = arith.constant 0.000000e+00 : f32
    %185 = vector.broadcast %cst_50 : f32 to vector<2x128xf32>
    %186 = arith.subf %185, %183 : vector<2x128xf32>
    %187 = math.exp %186 : vector<2x128xf32>
    %cst_51 = arith.constant 1.000000e+00 : f32
    %188 = vector.broadcast %cst_51 : f32 to vector<2x128xf32>
    %189 = arith.addf %188, %187 : vector<2x128xf32>
    %cst_52 = arith.constant 1.000000e+00 : f32
    %190 = vector.broadcast %cst_52 : f32 to vector<2x128xf32>
    %191 = arith.divf %190, %189 : vector<2x128xf32>
    %192 = arith.select %52, %184, %191 : vector<2x128xi1>, vector<2x128xf32>
    %193 = vector.extract_strided_slice %192 {offsets = [0, 0], sizes = [2, 32], strides = [1, 1]} : vector<2x128xf32> to vector<2x32xf32>
    %194 = vector.extract_strided_slice %192 {offsets = [0, 32], sizes = [2, 32], strides = [1, 1]} : vector<2x128xf32> to vector<2x32xf32>
    %195 = vector.extract_strided_slice %192 {offsets = [0, 64], sizes = [2, 32], strides = [1, 1]} : vector<2x128xf32> to vector<2x32xf32>
    %196 = vector.extract_strided_slice %192 {offsets = [0, 96], sizes = [2, 32], strides = [1, 1]} : vector<2x128xf32> to vector<2x32xf32>
    %197 = arith.mulf %194, %175 : vector<2x32xf32>
    %198 = arith.mulf %193, %195 : vector<2x32xf32>
    %199 = arith.addf %197, %198 : vector<2x32xf32>
    %200 = math.tanh %199 : vector<2x32xf32>
    %201 = arith.mulf %196, %200 : vector<2x32xf32>
    %202 = arith.addf %178, %201 : vector<2x32xf32>
    %203 = arith.maximumf %179, %201 : vector<2x32xf32>
    %204 = vector.extract_strided_slice %57 {offsets = [0, 6, 0], sizes = [2, 1, 128], strides = [1, 1, 1]} : vector<2x8x128xf32> to vector<2x1x128xf32>
    %205 = vector.shape_cast %204 : vector<2x1x128xf32> to vector<2x128xf32>
    %cst_53 = arith.constant dense<0.000000e+00> : vector<2x128xf32>
    %206 = tpu.matmul %201, %45, %cst_53 {dimension_numbers = #tpu.dot_dimension_numbers<[1], [0], [0], [1], [0, 0, 1, 1], [], []>} : vector<2x32xf32>, vector<32x128xf32>, vector<2x128xf32> -> vector<2x128xf32>
    %207 = arith.addf %205, %206 : vector<2x128xf32>
    %208 = math.tanh %207 : vector<2x128xf32>
    %cst_54 = arith.constant 0.000000e+00 : f32
    %209 = vector.broadcast %cst_54 : f32 to vector<2x128xf32>
    %210 = arith.subf %209, %207 : vector<2x128xf32>
    %211 = math.exp %210 : vector<2x128xf32>
    %cst_55 = arith.constant 1.000000e+00 : f32
    %212 = vector.broadcast %cst_55 : f32 to vector<2x128xf32>
    %213 = arith.addf %212, %211 : vector<2x128xf32>
    %cst_56 = arith.constant 1.000000e+00 : f32
    %214 = vector.broadcast %cst_56 : f32 to vector<2x128xf32>
    %215 = arith.divf %214, %213 : vector<2x128xf32>
    %216 = arith.select %52, %208, %215 : vector<2x128xi1>, vector<2x128xf32>
    %217 = vector.extract_strided_slice %216 {offsets = [0, 0], sizes = [2, 32], strides = [1, 1]} : vector<2x128xf32> to vector<2x32xf32>
    %218 = vector.extract_strided_slice %216 {offsets = [0, 32], sizes = [2, 32], strides = [1, 1]} : vector<2x128xf32> to vector<2x32xf32>
    %219 = vector.extract_strided_slice %216 {offsets = [0, 64], sizes = [2, 32], strides = [1, 1]} : vector<2x128xf32> to vector<2x32xf32>
    %220 = vector.extract_strided_slice %216 {offsets = [0, 96], sizes = [2, 32], strides = [1, 1]} : vector<2x128xf32> to vector<2x32xf32>
    %221 = arith.mulf %218, %199 : vector<2x32xf32>
    %222 = arith.mulf %217, %219 : vector<2x32xf32>
    %223 = arith.addf %221, %222 : vector<2x32xf32>
    %224 = math.tanh %223 : vector<2x32xf32>
    %225 = arith.mulf %220, %224 : vector<2x32xf32>
    %226 = arith.addf %202, %225 : vector<2x32xf32>
    %227 = arith.maximumf %203, %225 : vector<2x32xf32>
    %228 = vector.extract_strided_slice %57 {offsets = [0, 7, 0], sizes = [2, 1, 128], strides = [1, 1, 1]} : vector<2x8x128xf32> to vector<2x1x128xf32>
    %229 = vector.shape_cast %228 : vector<2x1x128xf32> to vector<2x128xf32>
    %cst_57 = arith.constant dense<0.000000e+00> : vector<2x128xf32>
    %230 = tpu.matmul %225, %45, %cst_57 {dimension_numbers = #tpu.dot_dimension_numbers<[1], [0], [0], [1], [0, 0, 1, 1], [], []>} : vector<2x32xf32>, vector<32x128xf32>, vector<2x128xf32> -> vector<2x128xf32>
    %231 = arith.addf %229, %230 : vector<2x128xf32>
    %232 = math.tanh %231 : vector<2x128xf32>
    %cst_58 = arith.constant 0.000000e+00 : f32
    %233 = vector.broadcast %cst_58 : f32 to vector<2x128xf32>
    %234 = arith.subf %233, %231 : vector<2x128xf32>
    %235 = math.exp %234 : vector<2x128xf32>
    %cst_59 = arith.constant 1.000000e+00 : f32
    %236 = vector.broadcast %cst_59 : f32 to vector<2x128xf32>
    %237 = arith.addf %236, %235 : vector<2x128xf32>
    %cst_60 = arith.constant 1.000000e+00 : f32
    %238 = vector.broadcast %cst_60 : f32 to vector<2x128xf32>
    %239 = arith.divf %238, %237 : vector<2x128xf32>
    %240 = arith.select %52, %232, %239 : vector<2x128xi1>, vector<2x128xf32>
    %241 = vector.extract_strided_slice %240 {offsets = [0, 0], sizes = [2, 32], strides = [1, 1]} : vector<2x128xf32> to vector<2x32xf32>
    %242 = vector.extract_strided_slice %240 {offsets = [0, 32], sizes = [2, 32], strides = [1, 1]} : vector<2x128xf32> to vector<2x32xf32>
    %243 = vector.extract_strided_slice %240 {offsets = [0, 64], sizes = [2, 32], strides = [1, 1]} : vector<2x128xf32> to vector<2x32xf32>
    %244 = vector.extract_strided_slice %240 {offsets = [0, 96], sizes = [2, 32], strides = [1, 1]} : vector<2x128xf32> to vector<2x32xf32>
    %245 = arith.mulf %242, %223 : vector<2x32xf32>
    %246 = arith.mulf %241, %243 : vector<2x32xf32>
    %247 = arith.addf %245, %246 : vector<2x32xf32>
    %248 = math.tanh %247 : vector<2x32xf32>
    %249 = arith.mulf %244, %248 : vector<2x32xf32>
    %250 = arith.addf %226, %249 : vector<2x32xf32>
    %251 = arith.maximumf %227, %249 : vector<2x32xf32>
    %cst_61 = arith.constant 1.250000e-01 : f32
    %252 = vector.broadcast %cst_61 : f32 to vector<2x32xf32>
    %253 = arith.mulf %250, %252 : vector<2x32xf32>
    %254 = tpu.concatenate %253, %251 in 1 : vector<2x32xf32>, vector<2x32xf32> -> vector<2x64xf32>
    %255 = vector.shape_cast %43 : vector<2x8x256xf32> to vector<16x256xf32>
    %cst_62 = arith.constant dense<0.000000e+00> : vector<16x128xf32>
    %256 = tpu.matmul %255, %44, %cst_62 {dimension_numbers = #tpu.dot_dimension_numbers<[1], [0], [0], [1], [0, 0, 1, 1], [], []>} : vector<16x256xf32>, vector<256x128xf32>, vector<16x128xf32> -> vector<16x128xf32>
    %257 = vector.broadcast %46 : vector<1x128xf32> to vector<16x128xf32>
    %258 = arith.addf %256, %257 : vector<16x128xf32>
    %259 = vector.shape_cast %258 : vector<16x128xf32> to vector<2x8x128xf32>
    %cst_63 = arith.constant 0.000000e+00 : f32
    %260 = vector.broadcast %cst_63 : f32 to vector<2x32xf32>
    %cst_64 = arith.constant 0.000000e+00 : f32
    %261 = vector.broadcast %cst_64 : f32 to vector<2x32xf32>
    %cst_65 = arith.constant 0.000000e+00 : f32
    %262 = vector.broadcast %cst_65 : f32 to vector<2x32xf32>
    %263 = vector.extract_strided_slice %259 {offsets = [0, 0, 0], sizes = [2, 1, 128], strides = [1, 1, 1]} : vector<2x8x128xf32> to vector<2x1x128xf32>
    %264 = vector.shape_cast %263 : vector<2x1x128xf32> to vector<2x128xf32>
    %cst_66 = arith.constant dense<0.000000e+00> : vector<2x128xf32>
    %265 = tpu.matmul %260, %45, %cst_66 {dimension_numbers = #tpu.dot_dimension_numbers<[1], [0], [0], [1], [0, 0, 1, 1], [], []>} : vector<2x32xf32>, vector<32x128xf32>, vector<2x128xf32> -> vector<2x128xf32>
    %266 = arith.addf %264, %265 : vector<2x128xf32>
    %267 = math.tanh %266 : vector<2x128xf32>
    %cst_67 = arith.constant 0.000000e+00 : f32
    %268 = vector.broadcast %cst_67 : f32 to vector<2x128xf32>
    %269 = arith.subf %268, %266 : vector<2x128xf32>
    %270 = math.exp %269 : vector<2x128xf32>
    %cst_68 = arith.constant 1.000000e+00 : f32
    %271 = vector.broadcast %cst_68 : f32 to vector<2x128xf32>
    %272 = arith.addf %271, %270 : vector<2x128xf32>
    %cst_69 = arith.constant 1.000000e+00 : f32
    %273 = vector.broadcast %cst_69 : f32 to vector<2x128xf32>
    %274 = arith.divf %273, %272 : vector<2x128xf32>
    %275 = arith.select %52, %267, %274 : vector<2x128xi1>, vector<2x128xf32>
    %276 = vector.extract_strided_slice %275 {offsets = [0, 0], sizes = [2, 32], strides = [1, 1]} : vector<2x128xf32> to vector<2x32xf32>
    %277 = vector.extract_strided_slice %275 {offsets = [0, 32], sizes = [2, 32], strides = [1, 1]} : vector<2x128xf32> to vector<2x32xf32>
    %278 = vector.extract_strided_slice %275 {offsets = [0, 64], sizes = [2, 32], strides = [1, 1]} : vector<2x128xf32> to vector<2x32xf32>
    %279 = vector.extract_strided_slice %275 {offsets = [0, 96], sizes = [2, 32], strides = [1, 1]} : vector<2x128xf32> to vector<2x32xf32>
    %280 = arith.mulf %277, %261 : vector<2x32xf32>
    %281 = arith.mulf %276, %278 : vector<2x32xf32>
    %282 = arith.addf %280, %281 : vector<2x32xf32>
    %283 = math.tanh %282 : vector<2x32xf32>
    %284 = arith.mulf %279, %283 : vector<2x32xf32>
    %285 = arith.addf %262, %284 : vector<2x32xf32>
    %286 = vector.extract_strided_slice %259 {offsets = [0, 1, 0], sizes = [2, 1, 128], strides = [1, 1, 1]} : vector<2x8x128xf32> to vector<2x1x128xf32>
    %287 = vector.shape_cast %286 : vector<2x1x128xf32> to vector<2x128xf32>
    %cst_70 = arith.constant dense<0.000000e+00> : vector<2x128xf32>
    %288 = tpu.matmul %284, %45, %cst_70 {dimension_numbers = #tpu.dot_dimension_numbers<[1], [0], [0], [1], [0, 0, 1, 1], [], []>} : vector<2x32xf32>, vector<32x128xf32>, vector<2x128xf32> -> vector<2x128xf32>
    %289 = arith.addf %287, %288 : vector<2x128xf32>
    %290 = math.tanh %289 : vector<2x128xf32>
    %cst_71 = arith.constant 0.000000e+00 : f32
    %291 = vector.broadcast %cst_71 : f32 to vector<2x128xf32>
    %292 = arith.subf %291, %289 : vector<2x128xf32>
    %293 = math.exp %292 : vector<2x128xf32>
    %cst_72 = arith.constant 1.000000e+00 : f32
    %294 = vector.broadcast %cst_72 : f32 to vector<2x128xf32>
    %295 = arith.addf %294, %293 : vector<2x128xf32>
    %cst_73 = arith.constant 1.000000e+00 : f32
    %296 = vector.broadcast %cst_73 : f32 to vector<2x128xf32>
    %297 = arith.divf %296, %295 : vector<2x128xf32>
    %298 = arith.select %52, %290, %297 : vector<2x128xi1>, vector<2x128xf32>
    %299 = vector.extract_strided_slice %298 {offsets = [0, 0], sizes = [2, 32], strides = [1, 1]} : vector<2x128xf32> to vector<2x32xf32>
    %300 = vector.extract_strided_slice %298 {offsets = [0, 32], sizes = [2, 32], strides = [1, 1]} : vector<2x128xf32> to vector<2x32xf32>
    %301 = vector.extract_strided_slice %298 {offsets = [0, 64], sizes = [2, 32], strides = [1, 1]} : vector<2x128xf32> to vector<2x32xf32>
    %302 = vector.extract_strided_slice %298 {offsets = [0, 96], sizes = [2, 32], strides = [1, 1]} : vector<2x128xf32> to vector<2x32xf32>
    %303 = arith.mulf %300, %282 : vector<2x32xf32>
    %304 = arith.mulf %299, %301 : vector<2x32xf32>
    %305 = arith.addf %303, %304 : vector<2x32xf32>
    %306 = math.tanh %305 : vector<2x32xf32>
    %307 = arith.mulf %302, %306 : vector<2x32xf32>
    %308 = arith.addf %285, %307 : vector<2x32xf32>
    %309 = arith.maximumf %284, %307 : vector<2x32xf32>
    %310 = vector.extract_strided_slice %259 {offsets = [0, 2, 0], sizes = [2, 1, 128], strides = [1, 1, 1]} : vector<2x8x128xf32> to vector<2x1x128xf32>
    %311 = vector.shape_cast %310 : vector<2x1x128xf32> to vector<2x128xf32>
    %cst_74 = arith.constant dense<0.000000e+00> : vector<2x128xf32>
    %312 = tpu.matmul %307, %45, %cst_74 {dimension_numbers = #tpu.dot_dimension_numbers<[1], [0], [0], [1], [0, 0, 1, 1], [], []>} : vector<2x32xf32>, vector<32x128xf32>, vector<2x128xf32> -> vector<2x128xf32>
    %313 = arith.addf %311, %312 : vector<2x128xf32>
    %314 = math.tanh %313 : vector<2x128xf32>
    %cst_75 = arith.constant 0.000000e+00 : f32
    %315 = vector.broadcast %cst_75 : f32 to vector<2x128xf32>
    %316 = arith.subf %315, %313 : vector<2x128xf32>
    %317 = math.exp %316 : vector<2x128xf32>
    %cst_76 = arith.constant 1.000000e+00 : f32
    %318 = vector.broadcast %cst_76 : f32 to vector<2x128xf32>
    %319 = arith.addf %318, %317 : vector<2x128xf32>
    %cst_77 = arith.constant 1.000000e+00 : f32
    %320 = vector.broadcast %cst_77 : f32 to vector<2x128xf32>
    %321 = arith.divf %320, %319 : vector<2x128xf32>
    %322 = arith.select %52, %314, %321 : vector<2x128xi1>, vector<2x128xf32>
    %323 = vector.extract_strided_slice %322 {offsets = [0, 0], sizes = [2, 32], strides = [1, 1]} : vector<2x128xf32> to vector<2x32xf32>
    %324 = vector.extract_strided_slice %322 {offsets = [0, 32], sizes = [2, 32], strides = [1, 1]} : vector<2x128xf32> to vector<2x32xf32>
    %325 = vector.extract_strided_slice %322 {offsets = [0, 64], sizes = [2, 32], strides = [1, 1]} : vector<2x128xf32> to vector<2x32xf32>
    %326 = vector.extract_strided_slice %322 {offsets = [0, 96], sizes = [2, 32], strides = [1, 1]} : vector<2x128xf32> to vector<2x32xf32>
    %327 = arith.mulf %324, %305 : vector<2x32xf32>
    %328 = arith.mulf %323, %325 : vector<2x32xf32>
    %329 = arith.addf %327, %328 : vector<2x32xf32>
    %330 = math.tanh %329 : vector<2x32xf32>
    %331 = arith.mulf %326, %330 : vector<2x32xf32>
    %332 = arith.addf %308, %331 : vector<2x32xf32>
    %333 = arith.maximumf %309, %331 : vector<2x32xf32>
    %334 = vector.extract_strided_slice %259 {offsets = [0, 3, 0], sizes = [2, 1, 128], strides = [1, 1, 1]} : vector<2x8x128xf32> to vector<2x1x128xf32>
    %335 = vector.shape_cast %334 : vector<2x1x128xf32> to vector<2x128xf32>
    %cst_78 = arith.constant dense<0.000000e+00> : vector<2x128xf32>
    %336 = tpu.matmul %331, %45, %cst_78 {dimension_numbers = #tpu.dot_dimension_numbers<[1], [0], [0], [1], [0, 0, 1, 1], [], []>} : vector<2x32xf32>, vector<32x128xf32>, vector<2x128xf32> -> vector<2x128xf32>
    %337 = arith.addf %335, %336 : vector<2x128xf32>
    %338 = math.tanh %337 : vector<2x128xf32>
    %cst_79 = arith.constant 0.000000e+00 : f32
    %339 = vector.broadcast %cst_79 : f32 to vector<2x128xf32>
    %340 = arith.subf %339, %337 : vector<2x128xf32>
    %341 = math.exp %340 : vector<2x128xf32>
    %cst_80 = arith.constant 1.000000e+00 : f32
    %342 = vector.broadcast %cst_80 : f32 to vector<2x128xf32>
    %343 = arith.addf %342, %341 : vector<2x128xf32>
    %cst_81 = arith.constant 1.000000e+00 : f32
    %344 = vector.broadcast %cst_81 : f32 to vector<2x128xf32>
    %345 = arith.divf %344, %343 : vector<2x128xf32>
    %346 = arith.select %52, %338, %345 : vector<2x128xi1>, vector<2x128xf32>
    %347 = vector.extract_strided_slice %346 {offsets = [0, 0], sizes = [2, 32], strides = [1, 1]} : vector<2x128xf32> to vector<2x32xf32>
    %348 = vector.extract_strided_slice %346 {offsets = [0, 32], sizes = [2, 32], strides = [1, 1]} : vector<2x128xf32> to vector<2x32xf32>
    %349 = vector.extract_strided_slice %346 {offsets = [0, 64], sizes = [2, 32], strides = [1, 1]} : vector<2x128xf32> to vector<2x32xf32>
    %350 = vector.extract_strided_slice %346 {offsets = [0, 96], sizes = [2, 32], strides = [1, 1]} : vector<2x128xf32> to vector<2x32xf32>
    %351 = arith.mulf %348, %329 : vector<2x32xf32>
    %352 = arith.mulf %347, %349 : vector<2x32xf32>
    %353 = arith.addf %351, %352 : vector<2x32xf32>
    %354 = math.tanh %353 : vector<2x32xf32>
    %355 = arith.mulf %350, %354 : vector<2x32xf32>
    %356 = arith.addf %332, %355 : vector<2x32xf32>
    %357 = arith.maximumf %333, %355 : vector<2x32xf32>
    %358 = vector.extract_strided_slice %259 {offsets = [0, 4, 0], sizes = [2, 1, 128], strides = [1, 1, 1]} : vector<2x8x128xf32> to vector<2x1x128xf32>
    %359 = vector.shape_cast %358 : vector<2x1x128xf32> to vector<2x128xf32>
    %cst_82 = arith.constant dense<0.000000e+00> : vector<2x128xf32>
    %360 = tpu.matmul %355, %45, %cst_82 {dimension_numbers = #tpu.dot_dimension_numbers<[1], [0], [0], [1], [0, 0, 1, 1], [], []>} : vector<2x32xf32>, vector<32x128xf32>, vector<2x128xf32> -> vector<2x128xf32>
    %361 = arith.addf %359, %360 : vector<2x128xf32>
    %362 = math.tanh %361 : vector<2x128xf32>
    %cst_83 = arith.constant 0.000000e+00 : f32
    %363 = vector.broadcast %cst_83 : f32 to vector<2x128xf32>
    %364 = arith.subf %363, %361 : vector<2x128xf32>
    %365 = math.exp %364 : vector<2x128xf32>
    %cst_84 = arith.constant 1.000000e+00 : f32
    %366 = vector.broadcast %cst_84 : f32 to vector<2x128xf32>
    %367 = arith.addf %366, %365 : vector<2x128xf32>
    %cst_85 = arith.constant 1.000000e+00 : f32
    %368 = vector.broadcast %cst_85 : f32 to vector<2x128xf32>
    %369 = arith.divf %368, %367 : vector<2x128xf32>
    %370 = arith.select %52, %362, %369 : vector<2x128xi1>, vector<2x128xf32>
    %371 = vector.extract_strided_slice %370 {offsets = [0, 0], sizes = [2, 32], strides = [1, 1]} : vector<2x128xf32> to vector<2x32xf32>
    %372 = vector.extract_strided_slice %370 {offsets = [0, 32], sizes = [2, 32], strides = [1, 1]} : vector<2x128xf32> to vector<2x32xf32>
    %373 = vector.extract_strided_slice %370 {offsets = [0, 64], sizes = [2, 32], strides = [1, 1]} : vector<2x128xf32> to vector<2x32xf32>
    %374 = vector.extract_strided_slice %370 {offsets = [0, 96], sizes = [2, 32], strides = [1, 1]} : vector<2x128xf32> to vector<2x32xf32>
    %375 = arith.mulf %372, %353 : vector<2x32xf32>
    %376 = arith.mulf %371, %373 : vector<2x32xf32>
    %377 = arith.addf %375, %376 : vector<2x32xf32>
    %378 = math.tanh %377 : vector<2x32xf32>
    %379 = arith.mulf %374, %378 : vector<2x32xf32>
    %380 = arith.addf %356, %379 : vector<2x32xf32>
    %381 = arith.maximumf %357, %379 : vector<2x32xf32>
    %382 = vector.extract_strided_slice %259 {offsets = [0, 5, 0], sizes = [2, 1, 128], strides = [1, 1, 1]} : vector<2x8x128xf32> to vector<2x1x128xf32>
    %383 = vector.shape_cast %382 : vector<2x1x128xf32> to vector<2x128xf32>
    %cst_86 = arith.constant dense<0.000000e+00> : vector<2x128xf32>
    %384 = tpu.matmul %379, %45, %cst_86 {dimension_numbers = #tpu.dot_dimension_numbers<[1], [0], [0], [1], [0, 0, 1, 1], [], []>} : vector<2x32xf32>, vector<32x128xf32>, vector<2x128xf32> -> vector<2x128xf32>
    %385 = arith.addf %383, %384 : vector<2x128xf32>
    %386 = math.tanh %385 : vector<2x128xf32>
    %cst_87 = arith.constant 0.000000e+00 : f32
    %387 = vector.broadcast %cst_87 : f32 to vector<2x128xf32>
    %388 = arith.subf %387, %385 : vector<2x128xf32>
    %389 = math.exp %388 : vector<2x128xf32>
    %cst_88 = arith.constant 1.000000e+00 : f32
    %390 = vector.broadcast %cst_88 : f32 to vector<2x128xf32>
    %391 = arith.addf %390, %389 : vector<2x128xf32>
    %cst_89 = arith.constant 1.000000e+00 : f32
    %392 = vector.broadcast %cst_89 : f32 to vector<2x128xf32>
    %393 = arith.divf %392, %391 : vector<2x128xf32>
    %394 = arith.select %52, %386, %393 : vector<2x128xi1>, vector<2x128xf32>
    %395 = vector.extract_strided_slice %394 {offsets = [0, 0], sizes = [2, 32], strides = [1, 1]} : vector<2x128xf32> to vector<2x32xf32>
    %396 = vector.extract_strided_slice %394 {offsets = [0, 32], sizes = [2, 32], strides = [1, 1]} : vector<2x128xf32> to vector<2x32xf32>
    %397 = vector.extract_strided_slice %394 {offsets = [0, 64], sizes = [2, 32], strides = [1, 1]} : vector<2x128xf32> to vector<2x32xf32>
    %398 = vector.extract_strided_slice %394 {offsets = [0, 96], sizes = [2, 32], strides = [1, 1]} : vector<2x128xf32> to vector<2x32xf32>
    %399 = arith.mulf %396, %377 : vector<2x32xf32>
    %400 = arith.mulf %395, %397 : vector<2x32xf32>
    %401 = arith.addf %399, %400 : vector<2x32xf32>
    %402 = math.tanh %401 : vector<2x32xf32>
    %403 = arith.mulf %398, %402 : vector<2x32xf32>
    %404 = arith.addf %380, %403 : vector<2x32xf32>
    %405 = arith.maximumf %381, %403 : vector<2x32xf32>
    %406 = vector.extract_strided_slice %259 {offsets = [0, 6, 0], sizes = [2, 1, 128], strides = [1, 1, 1]} : vector<2x8x128xf32> to vector<2x1x128xf32>
    %407 = vector.shape_cast %406 : vector<2x1x128xf32> to vector<2x128xf32>
    %cst_90 = arith.constant dense<0.000000e+00> : vector<2x128xf32>
    %408 = tpu.matmul %403, %45, %cst_90 {dimension_numbers = #tpu.dot_dimension_numbers<[1], [0], [0], [1], [0, 0, 1, 1], [], []>} : vector<2x32xf32>, vector<32x128xf32>, vector<2x128xf32> -> vector<2x128xf32>
    %409 = arith.addf %407, %408 : vector<2x128xf32>
    %410 = math.tanh %409 : vector<2x128xf32>
    %cst_91 = arith.constant 0.000000e+00 : f32
    %411 = vector.broadcast %cst_91 : f32 to vector<2x128xf32>
    %412 = arith.subf %411, %409 : vector<2x128xf32>
    %413 = math.exp %412 : vector<2x128xf32>
    %cst_92 = arith.constant 1.000000e+00 : f32
    %414 = vector.broadcast %cst_92 : f32 to vector<2x128xf32>
    %415 = arith.addf %414, %413 : vector<2x128xf32>
    %cst_93 = arith.constant 1.000000e+00 : f32
    %416 = vector.broadcast %cst_93 : f32 to vector<2x128xf32>
    %417 = arith.divf %416, %415 : vector<2x128xf32>
    %418 = arith.select %52, %410, %417 : vector<2x128xi1>, vector<2x128xf32>
    %419 = vector.extract_strided_slice %418 {offsets = [0, 0], sizes = [2, 32], strides = [1, 1]} : vector<2x128xf32> to vector<2x32xf32>
    %420 = vector.extract_strided_slice %418 {offsets = [0, 32], sizes = [2, 32], strides = [1, 1]} : vector<2x128xf32> to vector<2x32xf32>
    %421 = vector.extract_strided_slice %418 {offsets = [0, 64], sizes = [2, 32], strides = [1, 1]} : vector<2x128xf32> to vector<2x32xf32>
    %422 = vector.extract_strided_slice %418 {offsets = [0, 96], sizes = [2, 32], strides = [1, 1]} : vector<2x128xf32> to vector<2x32xf32>
    %423 = arith.mulf %420, %401 : vector<2x32xf32>
    %424 = arith.mulf %419, %421 : vector<2x32xf32>
    %425 = arith.addf %423, %424 : vector<2x32xf32>
    %426 = math.tanh %425 : vector<2x32xf32>
    %427 = arith.mulf %422, %426 : vector<2x32xf32>
    %428 = arith.addf %404, %427 : vector<2x32xf32>
    %429 = arith.maximumf %405, %427 : vector<2x32xf32>
    %430 = vector.extract_strided_slice %259 {offsets = [0, 7, 0], sizes = [2, 1, 128], strides = [1, 1, 1]} : vector<2x8x128xf32> to vector<2x1x128xf32>
    %431 = vector.shape_cast %430 : vector<2x1x128xf32> to vector<2x128xf32>
    %cst_94 = arith.constant dense<0.000000e+00> : vector<2x128xf32>
    %432 = tpu.matmul %427, %45, %cst_94 {dimension_numbers = #tpu.dot_dimension_numbers<[1], [0], [0], [1], [0, 0, 1, 1], [], []>} : vector<2x32xf32>, vector<32x128xf32>, vector<2x128xf32> -> vector<2x128xf32>
    %433 = arith.addf %431, %432 : vector<2x128xf32>
    %434 = math.tanh %433 : vector<2x128xf32>
    %cst_95 = arith.constant 0.000000e+00 : f32
    %435 = vector.broadcast %cst_95 : f32 to vector<2x128xf32>
    %436 = arith.subf %435, %433 : vector<2x128xf32>
    %437 = math.exp %436 : vector<2x128xf32>
    %cst_96 = arith.constant 1.000000e+00 : f32
    %438 = vector.broadcast %cst_96 : f32 to vector<2x128xf32>
    %439 = arith.addf %438, %437 : vector<2x128xf32>
    %cst_97 = arith.constant 1.000000e+00 : f32
    %440 = vector.broadcast %cst_97 : f32 to vector<2x128xf32>
    %441 = arith.divf %440, %439 : vector<2x128xf32>
    %442 = arith.select %52, %434, %441 : vector<2x128xi1>, vector<2x128xf32>
    %443 = vector.extract_strided_slice %442 {offsets = [0, 0], sizes = [2, 32], strides = [1, 1]} : vector<2x128xf32> to vector<2x32xf32>
    %444 = vector.extract_strided_slice %442 {offsets = [0, 32], sizes = [2, 32], strides = [1, 1]} : vector<2x128xf32> to vector<2x32xf32>
    %445 = vector.extract_strided_slice %442 {offsets = [0, 64], sizes = [2, 32], strides = [1, 1]} : vector<2x128xf32> to vector<2x32xf32>
    %446 = vector.extract_strided_slice %442 {offsets = [0, 96], sizes = [2, 32], strides = [1, 1]} : vector<2x128xf32> to vector<2x32xf32>
    %447 = arith.mulf %444, %425 : vector<2x32xf32>
    %448 = arith.mulf %443, %445 : vector<2x32xf32>
    %449 = arith.addf %447, %448 : vector<2x32xf32>
    %450 = math.tanh %449 : vector<2x32xf32>
    %451 = arith.mulf %446, %450 : vector<2x32xf32>
    %452 = arith.addf %428, %451 : vector<2x32xf32>
    %453 = arith.maximumf %429, %451 : vector<2x32xf32>
    %cst_98 = arith.constant 1.250000e-01 : f32
    %454 = vector.broadcast %cst_98 : f32 to vector<2x32xf32>
    %455 = arith.mulf %452, %454 : vector<2x32xf32>
    %456 = tpu.concatenate %455, %453 in 1 : vector<2x32xf32>, vector<2x32xf32> -> vector<2x64xf32>
    %457 = tpu.concatenate %254, %456 in 1 : vector<2x64xf32>, vector<2x64xf32> -> vector<2x128xf32>
    %c0_99 = arith.constant 0 : index
    %c0_100 = arith.constant 0 : index
    %458 = vector.load %arg5[%c0_99, %c0_100] : memref<1x128xf32, #tpu.memory_space<vmem>>, vector<1x128xf32>
    %459 = vector.broadcast %458 : vector<1x128xf32> to vector<2x128xf32>
    %460 = arith.mulf %457, %459 : vector<2x128xf32>
    %c0_101 = arith.constant 0 : index
    %c0_102 = arith.constant 0 : index
    %461 = vector.load %arg6[%c0_101, %c0_102] : memref<1x128xf32, #tpu.memory_space<vmem>>, vector<1x128xf32>
    %462 = vector.broadcast %461 : vector<1x128xf32> to vector<2x128xf32>
    %463 = arith.addf %460, %462 : vector<2x128xf32>
    %c0_103 = arith.constant 0 : index
    %c0_104 = arith.constant 0 : index
    %464 = vector.load %arg7[%c0_103, %c0_104] : memref<128x64xf32, #tpu.memory_space<vmem>>, vector<128x64xf32>
    %cst_105 = arith.constant dense<0.000000e+00> : vector<2x64xf32>
    %465 = tpu.matmul %463, %464, %cst_105 {dimension_numbers = #tpu.dot_dimension_numbers<[1], [0], [0], [1], [0, 0, 1, 1], [], []>} : vector<2x128xf32>, vector<128x64xf32>, vector<2x64xf32> -> vector<2x64xf32>
    %c0_106 = arith.constant 0 : index
    %c0_107 = arith.constant 0 : index
    %466 = vector.load %arg8[%c0_106, %c0_107] : memref<1x64xf32, #tpu.memory_space<vmem>>, vector<1x64xf32>
    %467 = vector.broadcast %466 : vector<1x64xf32> to vector<2x64xf32>
    %468 = arith.addf %465, %467 : vector<2x64xf32>
    %cst_108 = arith.constant 0.000000e+00 : f32
    %469 = vector.broadcast %cst_108 : f32 to vector<2x64xf32>
    %470 = arith.cmpf ogt, %468, %469 : vector<2x64xf32>
    %471 = math.exp %468 : vector<2x64xf32>
    %cst_109 = arith.constant 1.000000e+00 : f32
    %472 = vector.broadcast %cst_109 : f32 to vector<2x64xf32>
    %473 = arith.subf %471, %472 : vector<2x64xf32>
    %474 = arith.select %470, %468, %473 : vector<2x64xi1>, vector<2x64xf32>
    %c0_110 = arith.constant 0 : index
    %c0_111 = arith.constant 0 : index
    %475 = vector.load %arg9[%c0_110, %c0_111] : memref<1x64xf32, #tpu.memory_space<vmem>>, vector<1x64xf32>
    %476 = vector.broadcast %475 : vector<1x64xf32> to vector<2x64xf32>
    %477 = arith.mulf %474, %476 : vector<2x64xf32>
    %c0_112 = arith.constant 0 : index
    %c0_113 = arith.constant 0 : index
    %478 = vector.load %arg10[%c0_112, %c0_113] : memref<1x64xf32, #tpu.memory_space<vmem>>, vector<1x64xf32>
    %479 = vector.broadcast %478 : vector<1x64xf32> to vector<2x64xf32>
    %480 = arith.addf %477, %479 : vector<2x64xf32>
    %c0_114 = arith.constant 0 : index
    %c0_115 = arith.constant 0 : index
    %481 = vector.load %arg11[%c0_114, %c0_115] : memref<64x64xf32, #tpu.memory_space<vmem>>, vector<64x64xf32>
    %cst_116 = arith.constant dense<0.000000e+00> : vector<2x64xf32>
    %482 = tpu.matmul %480, %481, %cst_116 {dimension_numbers = #tpu.dot_dimension_numbers<[1], [0], [0], [1], [0, 0, 1, 1], [], []>} : vector<2x64xf32>, vector<64x64xf32>, vector<2x64xf32> -> vector<2x64xf32>
    %c0_117 = arith.constant 0 : index
    %c0_118 = arith.constant 0 : index
    %483 = vector.load %arg12[%c0_117, %c0_118] : memref<1x64xf32, #tpu.memory_space<vmem>>, vector<1x64xf32>
    %484 = vector.broadcast %483 : vector<1x64xf32> to vector<2x64xf32>
    %485 = arith.addf %482, %484 : vector<2x64xf32>
    %cst_119 = arith.constant 0.000000e+00 : f32
    %486 = vector.broadcast %cst_119 : f32 to vector<2x64xf32>
    %487 = arith.cmpf ogt, %485, %486 : vector<2x64xf32>
    %488 = math.exp %485 : vector<2x64xf32>
    %cst_120 = arith.constant 1.000000e+00 : f32
    %489 = vector.broadcast %cst_120 : f32 to vector<2x64xf32>
    %490 = arith.subf %488, %489 : vector<2x64xf32>
    %491 = arith.select %487, %485, %490 : vector<2x64xi1>, vector<2x64xf32>
    %c0_121 = arith.constant 0 : index
    %c0_122 = arith.constant 0 : index
    %492 = vector.load %arg13[%c0_121, %c0_122] : memref<1x64xf32, #tpu.memory_space<vmem>>, vector<1x64xf32>
    %493 = vector.broadcast %492 : vector<1x64xf32> to vector<2x64xf32>
    %494 = arith.mulf %491, %493 : vector<2x64xf32>
    %c0_123 = arith.constant 0 : index
    %c0_124 = arith.constant 0 : index
    %495 = vector.load %arg14[%c0_123, %c0_124] : memref<1x64xf32, #tpu.memory_space<vmem>>, vector<1x64xf32>
    %496 = vector.broadcast %495 : vector<1x64xf32> to vector<2x64xf32>
    %497 = arith.addf %494, %496 : vector<2x64xf32>
    %c0_125 = arith.constant 0 : index
    %c0_126 = arith.constant 0 : index
    %498 = vector.load %arg15[%c0_125, %c0_126] : memref<64x2xf32, #tpu.memory_space<vmem>>, vector<64x2xf32>
    %cst_127 = arith.constant dense<0.000000e+00> : vector<2x2xf32>
    %499 = tpu.matmul %497, %498, %cst_127 {dimension_numbers = #tpu.dot_dimension_numbers<[1], [0], [0], [1], [0, 0, 1, 1], [], []>} : vector<2x64xf32>, vector<64x2xf32>, vector<2x2xf32> -> vector<2x2xf32>
    %c0_128 = arith.constant 0 : index
    %c0_129 = arith.constant 0 : index
    %500 = vector.load %arg16[%c0_128, %c0_129] : memref<1x2xf32, #tpu.memory_space<vmem>>, vector<1x2xf32>
    %501 = vector.broadcast %500 : vector<1x2xf32> to vector<2x2xf32>
    %502 = arith.addf %499, %501 : vector<2x2xf32>
    %c0_130 = arith.constant 0 : index
    %c0_131 = arith.constant 0 : index
    %503 = vector.load %arg17[%c0_130, %c0_131] : memref<2x2xf32, #tpu.memory_space<vmem>>, vector<2x2xf32>
    tpu.vector_store %arg17[%c0_130, %c0_131], %502 {strides = array<i32>} : memref<2x2xf32, #tpu.memory_space<vmem>>, vector<2x2xf32>,
    return
  }
}

</mosaic_0001>

<llo_original>
// kernel: _lambda_.2
$region0: #{_lambda_.2}
  #allocation0 [shape = 'u32[]', space=smem, size = 0x4, offset = 0x4, fixed_abs, tag = 'smem constant byte address 0x4 - core index']
  #allocation1 [shape = 'u32[72,128]{1,0:T(1,128)}', space=vmem, size = 0x9000, scoped, tag = 'internal scratch']
  %s0 = inlined_call_operand.vmem [shape: f32[2,2,8,300], index: 0, kind: input, shape index: {}]
  %s1 = inlined_call_operand.vmem [shape: f32[300,128], index: 1, kind: input, shape index: {}]
  %s2 = inlined_call_operand.hbm [shape: f32[32,128], index: 2, kind: input, shape index: {}]
  %s3 = inlined_call_operand.vmem [shape: f32[1,128], index: 3, kind: input, shape index: {}]
  %s4 = inlined_call_operand.vmem [shape: f32[300,128], index: 4, kind: input, shape index: {}]
  %s5 = inlined_call_operand.hbm [shape: f32[32,128], index: 5, kind: input, shape index: {}]
  %s6 = inlined_call_operand.vmem [shape: f32[1,128], index: 6, kind: input, shape index: {}]
  %s7 = inlined_call_operand.vmem [shape: f32[2,2,8,64], index: 7, kind: output, shape index: {}]
  %s8 = sld [smem:[#allocation0]]
  $region69: #{_lambda_.2} parent=0
    _
  %s10 = ssub.s32 1, %s8
  %s11 = scalar_select 0, %s10, %s8
  $region1: #{_lambda_.2} parent=0
    #allocation2 [shape = 'u8[16384]{0}', space=vmem, size = 0x4000, scoped, tag = 'input window, operand 2, single buffered']
    #allocation3 [shape = 's32[2]{0}', space=sflag, size = 0x8, scoped, tag = 'scoped memory for _lambda_.2']
    #allocation4 [shape = 'u8[16384]{0}', space=vmem, size = 0x4000, scoped, tag = 'input window, operand 5, single buffered']
    #allocation5 [shape = 's32[1]{0}', space=sflag, size = 0x4, scoped, tag = 'scoped memory for _lambda_.2']
    %12 = vsyncpa [#allocation3], 0
    %13 = vsyncpa [#allocation5], 0
    loop: start=0, step=1, limit=4
    $region2: #{_lambda_.2} parent=1 // loop_pre_header
      _
    $region3: #{_lambda_.2} parent=1 // loop_header
      %s15 = sphi 0, %s19
      %p16 = scmp.ge.s32.totalorder %s15, 4
      %s25 = sphi 0, %s27
      %s28 = sphi 0, %s25
      %s29 = sphi 0, %s28
      %s45 = sphi 0, %s29
      %s49 = sphi 0, %s49
      %s51 = sphi 0, %s49
      %s52 = sphi 0, %s51
      %s66 = sphi 0, %s52
      %s70 = sphi 0, %s70
      %s72 = sphi 0, %s70
      %s73 = sphi 0, %s72
      %s87 = sphi 0, %s73
      %s91 = sphi 0, %s91
      %s93 = sphi 0, %s91
      %s94 = sphi 0, %s93
      %s108 = sphi 0, %s94
      %s112 = sphi 0, %s112
      %s114 = sphi 0, %s112
      %s115 = sphi 0, %s114
      %s129 = sphi 0, %s115
      %s133 = sphi 0, %s133
      %s135 = sphi 0, %s133
      %s136 = sphi 0, %s135
      %s150 = sphi 0, %s136
      %s154 = sphi 0, %s154
      %s156 = sphi 0, %s154
      %s157 = sphi 0, %s156
      %s171 = sphi 0, %s157
      %s177 = sphi 0, %s179
      %s180 = sphi 0, %s177
      %s181 = sphi 0, %s180
      %s197 = sphi 0, %s181
    $region4: #{_lambda_.2} parent=1 // loop_header_branch
      %18 = sbr.rel (%p16) target = $region8
    $region5: #{_lambda_.2} parent=1 // loop_body
      %s20 = ssub.s32 %s15, 1
      %s21 = ssub.s32 %s15, 2
      %s22 = sadd.s32 %s15, 1
      %s23 = ssub.s32 %s15, %s22
      %p24 = scmp.eq.s32.totalorder %s23, 0
      %s26 = sadd.s32 %s25, 1
      %s27 = scalar_select %p24, %s25, %s26
      %p30 = pneg %p24
      %p31 = scmp.eq.s32.totalorder %s15, 1
      %p32 = por %p30, %p31
      %p33 = scmp.ne.s32.totalorder %s25, %s28
      %p34 = scmp.eq.s32.totalorder %s15, 0
      %p35 = por %p33, %p34
      %p36 = scmp.ne.s32.totalorder %s25, %s28
      %p37 = scmp.eq.s32.totalorder %s20, 1
      %p38 = por %p36, %p37
      %p39 = scmp.ne.s32.totalorder %s28, %s29
      %p40 = scmp.eq.s32.totalorder %s20, 0
      %p41 = por %p39, %p40
      %p42 = scmp.ne.s32.totalorder %s28, %s29
      %p43 = scmp.eq.s32.totalorder %s21, 1
      %p44 = por %p42, %p43
      %p46 = scmp.ne.s32.totalorder %s29, %s45
      %p47 = scmp.eq.s32.totalorder %s21, 0
      %p48 = por %p46, %p47
      %s50 = sadd.s32 %s49, 1
      %p53 = scmp.eq.s32.totalorder %s15, 1
      %p54 = scmp.ne.s32.totalorder %s49, %s51
      %p55 = scmp.eq.s32.totalorder %s15, 0
      %p56 = por %p54, %p55
      %p57 = scmp.ne.s32.totalorder %s49, %s51
      %p58 = scmp.eq.s32.totalorder %s20, 1
      %p59 = por %p57, %p58
      %p60 = scmp.ne.s32.totalorder %s51, %s52
      %p61 = scmp.eq.s32.totalorder %s20, 0
      %p62 = por %p60, %p61
      %p63 = scmp.ne.s32.totalorder %s51, %s52
      %p64 = scmp.eq.s32.totalorder %s21, 1
      %p65 = por %p63, %p64
      %p67 = scmp.ne.s32.totalorder %s52, %s66
      %p68 = scmp.eq.s32.totalorder %s21, 0
      %p69 = por %p67, %p68
      %s71 = sadd.s32 %s70, 1
      %p74 = scmp.eq.s32.totalorder %s15, 1
      %p75 = scmp.ne.s32.totalorder %s70, %s72
      %p76 = scmp.eq.s32.totalorder %s15, 0
      %p77 = por %p75, %p76
      %p78 = scmp.ne.s32.totalorder %s70, %s72
      %p79 = scmp.eq.s32.totalorder %s20, 1
      %p80 = por %p78, %p79
      %p81 = scmp.ne.s32.totalorder %s72, %s73
      %p82 = scmp.eq.s32.totalorder %s20, 0
      %p83 = por %p81, %p82
      %p84 = scmp.ne.s32.totalorder %s72, %s73
      %p85 = scmp.eq.s32.totalorder %s21, 1
      %p86 = por %p84, %p85
      %p88 = scmp.ne.s32.totalorder %s73, %s87
      %p89 = scmp.eq.s32.totalorder %s21, 0
      %p90 = por %p88, %p89
      %s92 = sadd.s32 %s91, 1
      %p95 = scmp.eq.s32.totalorder %s15, 1
      %p96 = scmp.ne.s32.totalorder %s91, %s93
      %p97 = scmp.eq.s32.totalorder %s15, 0
      %p98 = por %p96, %p97
      %p99 = scmp.ne.s32.totalorder %s91, %s93
      %p100 = scmp.eq.s32.totalorder %s20, 1
      %p101 = por %p99, %p100
      %p102 = scmp.ne.s32.totalorder %s93, %s94
      %p103 = scmp.eq.s32.totalorder %s20, 0
      %p104 = por %p102, %p103
      %p105 = scmp.ne.s32.totalorder %s93, %s94
      %p106 = scmp.eq.s32.totalorder %s21, 1
      %p107 = por %p105, %p106
      %p109 = scmp.ne.s32.totalorder %s94, %s108
      %p110 = scmp.eq.s32.totalorder %s21, 0
      %p111 = por %p109, %p110
      %s113 = sadd.s32 %s112, 1
      %p116 = scmp.eq.s32.totalorder %s15, 1
      %p117 = scmp.ne.s32.totalorder %s112, %s114
      %p118 = scmp.eq.s32.totalorder %s15, 0
      %p119 = por %p117, %p118
      %p120 = scmp.ne.s32.totalorder %s112, %s114
      %p121 = scmp.eq.s32.totalorder %s20, 1
      %p122 = por %p120, %p121
      %p123 = scmp.ne.s32.totalorder %s114, %s115
      %p124 = scmp.eq.s32.totalorder %s20, 0
      %p125 = por %p123, %p124
      %p126 = scmp.ne.s32.totalorder %s114, %s115
      %p127 = scmp.eq.s32.totalorder %s21, 1
      %p128 = por %p126, %p127
      %p130 = scmp.ne.s32.totalorder %s115, %s129
      %p131 = scmp.eq.s32.totalorder %s21, 0
      %p132 = por %p130, %p131
      %s134 = sadd.s32 %s133, 1
      %p137 = scmp.eq.s32.totalorder %s15, 1
      %p138 = scmp.ne.s32.totalorder %s133, %s135
      %p139 = scmp.eq.s32.totalorder %s15, 0
      %p140 = por %p138, %p139
      %p141 = scmp.ne.s32.totalorder %s133, %s135
      %p142 = scmp.eq.s32.totalorder %s20, 1
      %p143 = por %p141, %p142
      %p144 = scmp.ne.s32.totalorder %s135, %s136
      %p145 = scmp.eq.s32.totalorder %s20, 0
      %p146 = por %p144, %p145
      %p147 = scmp.ne.s32.totalorder %s135, %s136
      %p148 = scmp.eq.s32.totalorder %s21, 1
      %p149 = por %p147, %p148
      %p151 = scmp.ne.s32.totalorder %s136, %s150
      %p152 = scmp.eq.s32.totalorder %s21, 0
      %p153 = por %p151, %p152
      %s155 = sadd.s32 %s154, 1
      %p158 = scmp.eq.s32.totalorder %s15, 1
      %p159 = scmp.ne.s32.totalorder %s154, %s156
      %p160 = scmp.eq.s32.totalorder %s15, 0
      %p161 = por %p159, %p160
      %p162 = scmp.ne.s32.totalorder %s154, %s156
      %p163 = scmp.eq.s32.totalorder %s20, 1
      %p164 = por %p162, %p163
      %p165 = scmp.ne.s32.totalorder %s156, %s157
      %p166 = scmp.eq.s32.totalorder %s20, 0
      %p167 = por %p165, %p166
      %p168 = scmp.ne.s32.totalorder %s156, %s157
      %p169 = scmp.eq.s32.totalorder %s21, 1
      %p170 = por %p168, %p169
      %p172 = scmp.ne.s32.totalorder %s157, %s171
      %p173 = scmp.eq.s32.totalorder %s21, 0
      %p174 = por %p172, %p173
      %s175 = ssub.s32 %s15, %s22
      %p176 = scmp.eq.s32.totalorder %s175, 0
      %s178 = sadd.s32 %s177, 1
      %s179 = scalar_select %p176, %s177, %s178
      %p182 = pneg %p176
      %p183 = scmp.eq.s32.totalorder %s15, 1
      %p184 = por %p182, %p183
      %p185 = scmp.ne.s32.totalorder %s177, %s180
      %p186 = scmp.eq.s32.totalorder %s15, 0
      %p187 = por %p185, %p186
      %p188 = scmp.ne.s32.totalorder %s177, %s180
      %p189 = scmp.eq.s32.totalorder %s20, 1
      %p190 = por %p188, %p189
      %p191 = scmp.ne.s32.totalorder %s180, %s181
      %p192 = scmp.eq.s32.totalorder %s20, 0
      %p193 = por %p191, %p192
      %p194 = scmp.ne.s32.totalorder %s180, %s181
      %p195 = scmp.eq.s32.totalorder %s21, 1
      %p196 = por %p194, %p195
      %p198 = scmp.ne.s32.totalorder %s181, %s197
      %p199 = scmp.eq.s32.totalorder %s21, 0
      %p200 = por %p198, %p199
      %p201 = scmp.le.s32.totalorder 1, %s15
      %p202 = scmp.lt.s32.totalorder %s15, 3
      %p203 = pnand %p201, %p202
      %p204 = pneg %p203
      // Predicated region
      $region9: #{_lambda_.2} parent=5 // pred_check
        _
      $region10: #{_lambda_.2} parent=5 // pred_check_branch
        %206 = sbr.rel (%p203) target = $region12
      $region11: #{_lambda_.2} parent=5 // pred_region
        %s207 = ssub.s32 %s15, 1
        // Predicated region
        $region13: #{_lambda_.2} parent=11 // pred_check
          %p208 = pneg %p62
        $region14: #{_lambda_.2} parent=11 // pred_check_branch
          %210 = sbr.rel (%p208) target = $region16
        $region15: #{_lambda_.2} parent=11 // pred_region
          _
        $region16: #{_lambda_.2} parent=11 // pred_fallthru
          _
        // Predicated region
        $region17: #{_lambda_.2} parent=11 // pred_check
          %p211 = pneg %p83
        $region18: #{_lambda_.2} parent=11 // pred_check_branch
          %213 = sbr.rel (%p211) target = $region20
        $region19: #{_lambda_.2} parent=11 // pred_region
          %215 = vsyncadd [#allocation3], 0
          %s216 = sshll.u32 %s2, 4
          %s217 = int_to_ptr.hbm [resolvable:$true] %s216
          %s218 = sshll.u32 [#allocation2], 4
          %s219 = int_to_ptr.vmem [resolvable:$true] %s218
          %224 = dma.hbm_to_vmem [thread:$0]  %s217, 512, %s219, [#allocation3], 128, 128, 8
        $region20: #{_lambda_.2} parent=11 // pred_fallthru
          _
        // Predicated region
        $region21: #{_lambda_.2} parent=11 // pred_check
          %p225 = pneg %p104
        $region22: #{_lambda_.2} parent=11 // pred_check_branch
          %227 = sbr.rel (%p225) target = $region24
        $region23: #{_lambda_.2} parent=11 // pred_region
          _
        $region24: #{_lambda_.2} parent=11 // pred_fallthru
          _
        // Predicated region
        $region25: #{_lambda_.2} parent=11 // pred_check
          %p228 = pneg %p125
        $region26: #{_lambda_.2} parent=11 // pred_check_branch
          %230 = sbr.rel (%p228) target = $region28
        $region27: #{_lambda_.2} parent=11 // pred_region
          _
        $region28: #{_lambda_.2} parent=11 // pred_fallthru
          _
        // Predicated region
        $region29: #{_lambda_.2} parent=11 // pred_check
          %p231 = pneg %p146
        $region30: #{_lambda_.2} parent=11 // pred_check_branch
          %233 = sbr.rel (%p231) target = $region32
        $region31: #{_lambda_.2} parent=11 // pred_region
          %235 = vsyncadd [#allocation5], 0
          %s236 = sshll.u32 %s5, 4
          %s237 = int_to_ptr.hbm [resolvable:$true] %s236
          %s238 = sshll.u32 [#allocation4], 4
          %s239 = int_to_ptr.vmem [resolvable:$true] %s238
          %244 = dma.hbm_to_vmem [thread:$0]  %s237, 512, %s239, [#allocation5], 128, 128, 8
        $region32: #{_lambda_.2} parent=11 // pred_fallthru
          _
        // Predicated region
        $region33: #{_lambda_.2} parent=11 // pred_check
          %p245 = pneg %p167
        $region34: #{_lambda_.2} parent=11 // pred_check_branch
          %247 = sbr.rel (%p245) target = $region36
        $region35: #{_lambda_.2} parent=11 // pred_region
          _
        $region36: #{_lambda_.2} parent=11 // pred_fallthru
          _
      $region12: #{_lambda_.2} parent=5 // pred_fallthru
        _
      %p248 = scmp.lt.s32.totalorder %s15, 2
      // Predicated region
      $region37: #{_lambda_.2} parent=5 // pred_check
        %p249 = pneg %p248
      $region38: #{_lambda_.2} parent=5 // pred_check_branch
        %251 = sbr.rel (%p249) target = $region40
      $region39: #{_lambda_.2} parent=5 // pred_region
        // Predicated region
        $region41: #{_lambda_.2} parent=39 // pred_check
          %p252 = pneg %p35
        $region42: #{_lambda_.2} parent=39 // pred_check_branch
          %254 = sbr.rel (%p252) target = $region44
        $region43: #{_lambda_.2} parent=39 // pred_region
          %p255 = scmp.lt.s32.totalorder %s15, 1
          %s256 = scalar_select %p255, %s15, 1
          %s257 = smul.addr %s256, 6
          %s258 = smul.addr %s257, 8
          %s259 = scalar_lea.vmem %s0, %s258
        $region44: #{_lambda_.2} parent=39 // pred_fallthru
          _
      $region40: #{_lambda_.2} parent=5 // pred_fallthru
        _
      %p260 = scmp.le.s32.totalorder 1, %s15
      %p261 = scmp.lt.s32.totalorder %s15, 3
      %p262 = pnand %p260, %p261
      %p263 = pneg %p262
      // Predicated region
      $region45: #{_lambda_.2} parent=5 // pred_check
        _
      $region46: #{_lambda_.2} parent=5 // pred_check_branch
        %265 = sbr.rel (%p262) target = $region48
      $region47: #{_lambda_.2} parent=5 // pred_region
        %s266 = ssub.s32 %s15, 1
        // Predicated region
        $region49: #{_lambda_.2} parent=47 // pred_check
          %p267 = pneg %p83
        $region50: #{_lambda_.2} parent=47 // pred_check_branch
          %269 = sbr.rel (%p267) target = $region52
        $region51: #{_lambda_.2} parent=47 // pred_region
          %271 = dma.done [#allocation3], 512
        $region52: #{_lambda_.2} parent=47 // pred_fallthru
          _
        // Predicated region
        $region53: #{_lambda_.2} parent=47 // pred_check
          %p272 = pneg %p146
        $region54: #{_lambda_.2} parent=47 // pred_check_branch
          %274 = sbr.rel (%p272) target = $region56
        $region55: #{_lambda_.2} parent=47 // pred_region
          %276 = dma.done [#allocation5], 512
        $region56: #{_lambda_.2} parent=47 // pred_fallthru
          _
        %p277 = scmp.lt.s32.totalorder %s20, 1
        %s278 = scalar_select %p277, %s20, 1
        %s279 = smul.addr %s278, 6
        %s280 = smul.addr %s279, 8
        %s281 = scalar_lea.vmem %s0, %s280
        %p282 = pneg %p41
        %p283 = pneg %p38
        %p284 = pneg %p62
        %p285 = pneg %p59
        %p286 = pneg %p83
        %p287 = pneg %p80
        %p288 = pneg %p104
        %p289 = pneg %p101
        %p290 = pneg %p125
        %p291 = pneg %p122
        %p292 = pneg %p146
        %p293 = pneg %p143
        %p294 = pneg %p167
        %p295 = pneg %p164
        %p296 = pneg %p193
        %p297 = pneg %p190
        %p298 = scmp.lt.s32.totalorder %s20, 1
        %s299 = scalar_select %p298, %s20, 1
        %s300 = smul.addr %s299, 2
        %s301 = smul.addr %s300, 8
        %s302 = scalar_lea.vmem %s7, %s301
        %p303 = scmp.lt.s32.totalorder %s20, 1
        %s304 = scalar_select %p303, %s20, 1
        %s305 = smul.addr %s304, 6
        %s306 = smul.addr %s305, 8
        %s307 = scalar_lea.vmem %s0, %s306
        %p308 = scmp.lt.s32.totalorder %s20, 1
        %s309 = scalar_select %p308, %s20, 1
        %s310 = smul.addr %s309, 2
        %s311 = smul.addr %s310, 8
        %s312 = scalar_lea.vmem %s7, %s311
        %v313 = vld [vmem:[%s307] sm:$0xff]
        %v314 = vld [vmem:[%s307 + $0x8] sm:$0xff]
        %v315 = vld [vmem:[%s307 + $0x10] sm:$0xff]
        %v316 = vld [vmem:[%s307 + $0x18] sm:$0xff]
        %v317 = vld [vmem:[%s307 + $0x20] sm:$0xff]
        %v318 = vld [vmem:[%s307 + $0x28] sm:$0xff]
        %v319 = vld [vmem:[%s1] sm:$0xff]
        %v320 = vld [vmem:[%s1 + $0x8] sm:$0xff]
        %v321 = vld [vmem:[%s1 + $0x10] sm:$0xff]
        %v322 = vld [vmem:[%s1 + $0x18] sm:$0xff]
        %v323 = vld [vmem:[%s1 + $0x20] sm:$0xff]
        %v324 = vld [vmem:[%s1 + $0x28] sm:$0xff]
        %v325 = vld [vmem:[%s1 + $0x30] sm:$0xff]
        %v326 = vld [vmem:[%s1 + $0x38] sm:$0xff]
        %v327 = vld [vmem:[%s1 + $0x40] sm:$0xff]
        %v328 = vld [vmem:[%s1 + $0x48] sm:$0xff]
        %v329 = vld [vmem:[%s1 + $0x50] sm:$0xff]
        %v330 = vld [vmem:[%s1 + $0x58] sm:$0xff]
        %v331 = vld [vmem:[%s1 + $0x60] sm:$0xff]
        %v332 = vld [vmem:[%s1 + $0x68] sm:$0xff]
        %v333 = vld [vmem:[%s1 + $0x70] sm:$0xff]
        %v334 = vld [vmem:[%s1 + $0x78] sm:$0xff]
        %v335 = vld [vmem:[%s1 + $0x80] sm:$0xff]
        %v336 = vld [vmem:[%s1 + $0x88] sm:$0xff]
        %v337 = vld [vmem:[%s1 + $0x90] sm:$0xff]
        %v338 = vld [vmem:[%s1 + $0x98] sm:$0xff]
        %v339 = vld [vmem:[%s1 + $0xa0] sm:$0xff]
        %v340 = vld [vmem:[%s1 + $0xa8] sm:$0xff]
        %v341 = vld [vmem:[%s1 + $0xb0] sm:$0xff]
        %v342 = vld [vmem:[%s1 + $0xb8] sm:$0xff]
        %v343 = vld [vmem:[%s1 + $0xc0] sm:$0xff]
        %v344 = vld [vmem:[%s1 + $0xc8] sm:$0xff]
        %v345 = vld [vmem:[%s1 + $0xd0] sm:$0xff]
        %v346 = vld [vmem:[%s1 + $0xd8] sm:$0xff]
        %v347 = vld [vmem:[%s1 + $0xe0] sm:$0xff]
        %v348 = vld [vmem:[%s1 + $0xe8] sm:$0xff]
        %v349 = vld [vmem:[%s1 + $0xf0] sm:$0xff]
        %v350 = vld [vmem:[%s1 + $0xf8] sm:$0xff]
        %v351 = vld [vmem:[%s1 + $0x100] sm:$0xff]
        %v352 = vld [vmem:[%s1 + $0x108] sm:$0xff]
        %v353 = vld [vmem:[%s1 + $0x110] sm:$0xff]
        %v354 = vld [vmem:[%s1 + $0x118] sm:$0xff]
        %v355 = vld [vmem:[%s1 + $0x120] sm:$0xff]
        %v356 = vld [vmem:[%s1 + $0x128] sm:$0xf]
        %v357 = vld [vmem:[%s3] sm:$0x1]
        %v359 = vperm.slane %v357, 0
        %vm361 = vcmask 359424
        %v363 = vsel %vm361, %v315, 0
        %v366 = vsel %vm361, %v318, 0
        %vm368 = vcmask 1043456
        %v370 = vsel %vm368, %v356, 0
        %372 = vmatpush.msra.mxu0 %v334
        %373 = vmatpush.msra.mxu0 %v333
        %374 = vmatpush.msra.mxu0 %v332
        %375 = vmatpush.msra.mxu0 %v331
        %376 = vmatpush.msra.mxu0 %v330
        %377 = vmatpush.msra.mxu0 %v329
        %378 = vmatpush.msra.mxu0 %v328
        %379 = vmatpush.msra.mxu0 %v327
        %380 = vmatpush.msra.mxu0 %v326
        %381 = vmatpush.msra.mxu0 %v325
        %382 = vmatpush.msra.mxu0 %v324
        %383 = vmatpush.msra.mxu0 %v323
        %384 = vmatpush.msra.mxu0 %v322
        %385 = vmatpush.msra.mxu0 %v321
        %386 = vmatpush.msra.mxu0 %v320
        %387 = vmatpush.msra.mxu0 %v319
        %388 = vmatmul.f32.gmra.mxu0 %v313
        %v389 = vpop.f32.mrf.mxu0
        %v390 = vadd.f32 %v359, %v389
        %391 = vmatmul.f32.gmra.mxu0 %v316
        %v392 = vpop.f32.mrf.mxu0
        %v393 = vadd.f32 %v359, %v392
        %394 = vdwg.mxu0
        %395 = vmatpush.msra.mxu0 %v350
        %396 = vmatpush.msra.mxu0 %v349
        %397 = vmatpush.msra.mxu0 %v348
        %398 = vmatpush.msra.mxu0 %v347
        %399 = vmatpush.msra.mxu0 %v346
        %400 = vmatpush.msra.mxu0 %v345
        %401 = vmatpush.msra.mxu0 %v344
        %402 = vmatpush.msra.mxu0 %v343
        %403 = vmatpush.msra.mxu0 %v342
        %404 = vmatpush.msra.mxu0 %v341
        %405 = vmatpush.msra.mxu0 %v340
        %406 = vmatpush.msra.mxu0 %v339
        %407 = vmatpush.msra.mxu0 %v338
        %408 = vmatpush.msra.mxu0 %v337
        %409 = vmatpush.msra.mxu0 %v336
        %410 = vmatpush.msra.mxu0 %v335
        %411 = vmatmul.f32.gmra.mxu0 %v314
        %v412 = vpop.f32.mrf.mxu0
        %v413 = vadd.f32 %v390, %v412
        %414 = vmatmul.f32.gmra.mxu0 %v317
        %v415 = vpop.f32.mrf.mxu0
        %v416 = vadd.f32 %v393, %v415
        %417 = vdwg.mxu0
        %418 = vmatpush.msra.mxu0 0.0
        %419 = vmatpush.msra.mxu0 0.0
        %420 = vmatpush.msra.mxu0 0.0
        %421 = vmatpush.msra.mxu0 0.0
        %422 = vmatpush.msra.mxu0 0.0
        %423 = vmatpush.msra.mxu0 0.0
        %424 = vmatpush.msra.mxu0 0.0
        %425 = vmatpush.msra.mxu0 0.0
        %426 = vmatpush.msra.mxu0 0.0
        %427 = vmatpush.msra.mxu0 0.0
        %428 = vmatpush.msra.mxu0 %v370
        %429 = vmatpush.msra.mxu0 %v355
        %430 = vmatpush.msra.mxu0 %v354
        %431 = vmatpush.msra.mxu0 %v353
        %432 = vmatpush.msra.mxu0 %v352
        %433 = vmatpush.msra.mxu0 %v351
        %434 = vmatmul.f32.gmra.mxu0 %v363
        %v435 = vpop.f32.mrf.mxu0
        %v436 = vadd.f32 %v413, %v435
        %437 = vmatmul.f32.gmra.mxu0 %v366
        %v438 = vpop.f32.mrf.mxu0
        %v439 = vadd.f32 %v416, %v438
        %440 = vdwg.mxu0
        %v441 = vld [vmem:[%s4] sm:$0xff]
        %v442 = vld [vmem:[%s4 + $0x8] sm:$0xff]
        %v443 = vld [vmem:[%s4 + $0x10] sm:$0xff]
        %v444 = vld [vmem:[%s4 + $0x18] sm:$0xff]
        %v445 = vld [vmem:[%s4 + $0x20] sm:$0xff]
        %v446 = vld [vmem:[%s4 + $0x28] sm:$0xff]
        %v447 = vld [vmem:[%s4 + $0x30] sm:$0xff]
        %v448 = vld [vmem:[%s4 + $0x38] sm:$0xff]
        %v449 = vld [vmem:[%s4 + $0x40] sm:$0xff]
        %v450 = vld [vmem:[%s4 + $0x48] sm:$0xff]
        %v451 = vld [vmem:[%s4 + $0x50] sm:$0xff]
        %v452 = vld [vmem:[%s4 + $0x58] sm:$0xff]
        %v453 = vld [vmem:[%s4 + $0x60] sm:$0xff]
        %v454 = vld [vmem:[%s4 + $0x68] sm:$0xff]
        %v455 = vld [vmem:[%s4 + $0x70] sm:$0xff]
        %v456 = vld [vmem:[%s4 + $0x78] sm:$0xff]
        %v457 = vld [vmem:[%s4 + $0x80] sm:$0xff]
        %v458 = vld [vmem:[%s4 + $0x88] sm:$0xff]
        %v459 = vld [vmem:[%s4 + $0x90] sm:$0xff]
        %v460 = vld [vmem:[%s4 + $0x98] sm:$0xff]
        %v461 = vld [vmem:[%s4 + $0xa0] sm:$0xff]
        %v462 = vld [vmem:[%s4 + $0xa8] sm:$0xff]
        %v463 = vld [vmem:[%s4 + $0xb0] sm:$0xff]
        %v464 = vld [vmem:[%s4 + $0xb8] sm:$0xff]
        %v465 = vld [vmem:[%s4 + $0xc0] sm:$0xff]
        %v466 = vld [vmem:[%s4 + $0xc8] sm:$0xff]
        %v467 = vld [vmem:[%s4 + $0xd0] sm:$0xff]
        %v468 = vld [vmem:[%s4 + $0xd8] sm:$0xff]
        %v469 = vld [vmem:[%s4 + $0xe0] sm:$0xff]
        %v470 = vld [vmem:[%s4 + $0xe8] sm:$0xff]
        %v471 = vld [vmem:[%s4 + $0xf0] sm:$0xff]
        %v472 = vld [vmem:[%s4 + $0xf8] sm:$0xff]
        %v473 = vld [vmem:[%s4 + $0x100] sm:$0xff]
        %v474 = vld [vmem:[%s4 + $0x108] sm:$0xff]
        %v475 = vld [vmem:[%s4 + $0x110] sm:$0xff]
        %v476 = vld [vmem:[%s4 + $0x118] sm:$0xff]
        %v477 = vld [vmem:[%s4 + $0x120] sm:$0xff]
        %v478 = vld [vmem:[%s4 + $0x128] sm:$0xf]
        %v479 = vld [vmem:[%s6] sm:$0x1]
        %v481 = vperm.slane %v479, 0
        %v484 = vsel %vm368, %v478, 0
        %486 = vmatpush.msra.mxu0 %v456
        %487 = vmatpush.msra.mxu0 %v455
        %488 = vmatpush.msra.mxu0 %v454
        %489 = vmatpush.msra.mxu0 %v453
        %490 = vmatpush.msra.mxu0 %v452
        %491 = vmatpush.msra.mxu0 %v451
        %492 = vmatpush.msra.mxu0 %v450
        %493 = vmatpush.msra.mxu0 %v449
        %494 = vmatpush.msra.mxu0 %v448
        %495 = vmatpush.msra.mxu0 %v447
        %496 = vmatpush.msra.mxu0 %v446
        %497 = vmatpush.msra.mxu0 %v445
        %498 = vmatpush.msra.mxu0 %v444
        %499 = vmatpush.msra.mxu0 %v443
        %500 = vmatpush.msra.mxu0 %v442
        %501 = vmatpush.msra.mxu0 %v441
        %502 = vmatmul.f32.gmra.mxu0 %v313
        %v503 = vpop.f32.mrf.mxu0
        %v504 = vadd.f32 %v481, %v503
        %505 = vmatmul.f32.gmra.mxu0 %v316
        %v506 = vpop.f32.mrf.mxu0
        %v507 = vadd.f32 %v481, %v506
        %508 = vdwg.mxu0
        %509 = vmatpush.msra.mxu0 %v472
        %510 = vmatpush.msra.mxu0 %v471
        %511 = vmatpush.msra.mxu0 %v470
        %512 = vmatpush.msra.mxu0 %v469
        %513 = vmatpush.msra.mxu0 %v468
        %514 = vmatpush.msra.mxu0 %v467
        %515 = vmatpush.msra.mxu0 %v466
        %516 = vmatpush.msra.mxu0 %v465
        %517 = vmatpush.msra.mxu0 %v464
        %518 = vmatpush.msra.mxu0 %v463
        %519 = vmatpush.msra.mxu0 %v462
        %520 = vmatpush.msra.mxu0 %v461
        %521 = vmatpush.msra.mxu0 %v460
        %522 = vmatpush.msra.mxu0 %v459
        %523 = vmatpush.msra.mxu0 %v458
        %524 = vmatpush.msra.mxu0 %v457
        %525 = vmatmul.f32.gmra.mxu0 %v314
        %v526 = vpop.f32.mrf.mxu0
        %v527 = vadd.f32 %v504, %v526
        %528 = vmatmul.f32.gmra.mxu0 %v317
        %v529 = vpop.f32.mrf.mxu0
        %v530 = vadd.f32 %v507, %v529
        %531 = vdwg.mxu0
        %532 = vmatpush.msra.mxu0 0.0
        %533 = vmatpush.msra.mxu0 0.0
        %534 = vmatpush.msra.mxu0 0.0
        %535 = vmatpush.msra.mxu0 0.0
        %536 = vmatpush.msra.mxu0 0.0
        %537 = vmatpush.msra.mxu0 0.0
        %538 = vmatpush.msra.mxu0 0.0
        %539 = vmatpush.msra.mxu0 0.0
        %540 = vmatpush.msra.mxu0 0.0
        %541 = vmatpush.msra.mxu0 0.0
        %542 = vmatpush.msra.mxu0 %v484
        %543 = vmatpush.msra.mxu0 %v477
        %544 = vmatpush.msra.mxu0 %v476
        %545 = vmatpush.msra.mxu0 %v475
        %546 = vmatpush.msra.mxu0 %v474
        %547 = vmatpush.msra.mxu0 %v473
        %548 = vmatmul.f32.gmra.mxu0 %v363
        %v549 = vpop.f32.mrf.mxu0
        %v550 = vadd.f32 %v527, %v549
        %551 = vmatmul.f32.gmra.mxu0 %v366
        %v552 = vpop.f32.mrf.mxu0
        %v553 = vadd.f32 %v530, %v552
        %554 = vdwg.mxu0
        %v555 = vld [vmem:[#allocation2] sm:$0xff]
        %v556 = vld [vmem:[#allocation2 + $0x8] sm:$0xff]
        %v557 = vld [vmem:[#allocation2 + $0x10] sm:$0xff]
        %v558 = vld [vmem:[#allocation2 + $0x18] sm:$0xff]
        %v559 = vld [vmem:[#allocation4] sm:$0xff]
        %v560 = vld [vmem:[#allocation4 + $0x8] sm:$0xff]
        %v561 = vld [vmem:[#allocation4 + $0x10] sm:$0xff]
        %v562 = vld [vmem:[#allocation4 + $0x18] sm:$0xff]
        %v563 = vlaneseq
        %v564 = vand.u32 %v563, 127
        %vm565 = vcmp.ge.s32.totalorder %v564, 64
        %vm566 = vcmp.lt.s32.totalorder %v564, 96
        %vm567 = vmand %vm565, %vm566
        %vm568 = vcmask 261120
        %v570 = vsel %vm568, 0.0, 0
        %572 = vmatpush.msra.mxu0 0.0
        %573 = vmatpush.msra.mxu0 0.0
        %574 = vmatpush.msra.mxu0 0.0
        %575 = vmatpush.msra.mxu0 0.0
        %576 = vmatpush.msra.mxu0 0.0
        %577 = vmatpush.msra.mxu0 0.0
        %578 = vmatpush.msra.mxu0 0.0
        %579 = vmatpush.msra.mxu0 0.0
        %580 = vmatpush.msra.mxu0 0.0
        %581 = vmatpush.msra.mxu0 0.0
        %582 = vmatpush.msra.mxu0 0.0
        %583 = vmatpush.msra.mxu0 0.0
        %584 = vmatpush.msra.mxu0 %v562
        %585 = vmatpush.msra.mxu0 %v561
        %586 = vmatpush.msra.mxu0 %v560
        %587 = vmatpush.msra.mxu0 %v559
        %588 = vmatmul.f32.gmra.mxu0 %v570
        %v589 = vpop.f32.mrf.mxu0
        %v590 = vadd.f32 0.0, %v589
        %591 = vdwg.mxu0
        %v593 = vrot.slane %v590, 1
        %v594 = vrot.slane %v590, 2
        %v597 = vadd.f32 %v550, %v593
        %v598 = vadd.f32 %v553, %v594
        %v599 = vtanh.pop %v597
        %v600 = vtanh.pop %v598
        %v601 = vsub.f32 0.0, %v597
        %v602 = vsub.f32 0.0, %v598
        %v603 = vmul.f32 %v601, 1.442695
        %v604 = vpow.pop %v603
        %v605 = vmul.f32 %v602, 1.442695
        %v606 = vpow.pop %v605
        %v607 = vadd.f32 %v604, 1.0
        %v608 = vadd.f32 %v606, 1.0
        %v609 = vrcp.pop %v607
        %v610 = vmul.f32 %v607, %v609
        %v611 = vsub.f32 1.0, %v610
        %v612 = vmul.f32 %v609, %v611
        %v613 = vadd.f32 %v609, %v612
        %vm614 = vweird.f32 %v607
        %vm615 = vweird.f32 %v609
        %vm616 = vmor %vm614, %vm615
        %v617 = vsel %vm616, %v609, %v613
        %v618 = vand.u32 2147483647, %v607
        %vm619 = vcmp.eq.f32.partialorder %v618, 8.507059e+37
        %v620 = vand.u32 %v607, 2147483648
        %v621 = vor.u32 1.1754944e-38, %v620
        %v622 = vsel %vm619, %v621, %v617
        %v623 = vmul.f32 1.0, %v622
        %v624 = vrcp.pop %v608
        %v625 = vmul.f32 %v608, %v624
        %v626 = vsub.f32 1.0, %v625
        %v627 = vmul.f32 %v624, %v626
        %v628 = vadd.f32 %v624, %v627
        %vm629 = vweird.f32 %v608
        %vm630 = vweird.f32 %v624
        %vm631 = vmor %vm629, %vm630
        %v632 = vsel %vm631, %v624, %v628
        %v633 = vand.u32 2147483647, %v608
        %vm634 = vcmp.eq.f32.partialorder %v633, 8.507059e+37
        %v635 = vand.u32 %v608, 2147483648
        %v636 = vor.u32 1.1754944e-38, %v635
        %v637 = vsel %vm634, %v636, %v632
        %v638 = vmul.f32 1.0, %v637
        %v641 = vrot.slane %v599, 7
        %v642 = vrot.slane %v600, 6
        %vm643 = vcmask 1041409
        %v644 = vsel %vm643, %v642, %v641
        %v648 = vrot.slane %v623, 7
        %v649 = vrot.slane %v638, 6
        %v650 = vsel %vm643, %v649, %v648
        %v652 = vsel %vm567, %v644, %v650
        %v653 = vmul.f32 %v652, 0.0
        %655 = vrot.lane.b32.xlu0 %v652, 64
        %v656 = vpop.permute.xlu0 %655
        %v658 = vmul.f32 %v652, %v656
        %660 = vrot.lane.b32.xlu0 %v658, 32
        %v661 = vpop.permute.xlu0 %660
        %v663 = vadd.f32 %v653, %v661
        %v664 = vtanh.pop %v663
        %666 = vrot.lane.b32.xlu0 %v664, 64
        %v667 = vpop.permute.xlu0 %666
        %v669 = vmul.f32 %v652, %v667
        %671 = vrot.lane.b32.xlu0 %v669, 32
        %v672 = vpop.permute.xlu0 %671
        %v673 = vsel %vm568, %v672, 0
        %675 = vmatpush.msra.mxu0 0.0
        %676 = vmatpush.msra.mxu0 0.0
        %677 = vmatpush.msra.mxu0 0.0
        %678 = vmatpush.msra.mxu0 0.0
        %679 = vmatpush.msra.mxu0 0.0
        %680 = vmatpush.msra.mxu0 0.0
        %681 = vmatpush.msra.mxu0 0.0
        %682 = vmatpush.msra.mxu0 0.0
        %683 = vmatpush.msra.mxu0 0.0
        %684 = vmatpush.msra.mxu0 0.0
        %685 = vmatpush.msra.mxu0 0.0
        %686 = vmatpush.msra.mxu0 0.0
        %687 = vmatpush.msra.mxu0 %v562
        %688 = vmatpush.msra.mxu0 %v561
        %689 = vmatpush.msra.mxu0 %v560
        %690 = vmatpush.msra.mxu0 %v559
        %691 = vmatmul.f32.gmra.mxu0 %v673
        %v692 = vpop.f32.mrf.mxu0
        %v693 = vadd.f32 0.0, %v692
        %694 = vdwg.mxu0
        %v696 = vrot.slane %v693, 2
        %v697 = vrot.slane %v693, 3
        %v700 = vadd.f32 %v550, %v696
        %v701 = vadd.f32 %v553, %v697
        %v702 = vtanh.pop %v700
        %v703 = vtanh.pop %v701
        %v704 = vsub.f32 0.0, %v700
        %v705 = vsub.f32 0.0, %v701
        %v706 = vmul.f32 %v704, 1.442695
        %v707 = vpow.pop %v706
        %v708 = vmul.f32 %v705, 1.442695
        %v709 = vpow.pop %v708
        %v710 = vadd.f32 %v707, 1.0
        %v711 = vadd.f32 %v709, 1.0
        %v712 = vrcp.pop %v710
        %v713 = vmul.f32 %v710, %v712
        %v714 = vsub.f32 1.0, %v713
        %v715 = vmul.f32 %v712, %v714
        %v716 = vadd.f32 %v712, %v715
        %vm717 = vweird.f32 %v710
        %vm718 = vweird.f32 %v712
        %vm719 = vmor %vm717, %vm718
        %v720 = vsel %vm719, %v712, %v716
        %v721 = vand.u32 2147483647, %v710
        %vm722 = vcmp.eq.f32.partialorder %v721, 8.507059e+37
        %v723 = vand.u32 %v710, 2147483648
        %v724 = vor.u32 1.1754944e-38, %v723
        %v725 = vsel %vm722, %v724, %v720
        %v726 = vmul.f32 1.0, %v725
        %v727 = vrcp.pop %v711
        %v728 = vmul.f32 %v711, %v727
        %v729 = vsub.f32 1.0, %v728
        %v730 = vmul.f32 %v727, %v729
        %v731 = vadd.f32 %v727, %v730
        %vm732 = vweird.f32 %v711
        %vm733 = vweird.f32 %v727
        %vm734 = vmor %vm732, %vm733
        %v735 = vsel %vm734, %v727, %v731
        %v736 = vand.u32 2147483647, %v711
        %vm737 = vcmp.eq.f32.partialorder %v736, 8.507059e+37
        %v738 = vand.u32 %v711, 2147483648
        %v739 = vor.u32 1.1754944e-38, %v738
        %v740 = vsel %vm737, %v739, %v735
        %v741 = vmul.f32 1.0, %v740
        %v744 = vrot.slane %v702, 6
        %v745 = vrot.slane %v703, 5
        %v746 = vsel %vm643, %v745, %v744
        %v750 = vrot.slane %v726, 6
        %v751 = vrot.slane %v741, 5
        %v752 = vsel %vm643, %v751, %v750
        %v754 = vsel %vm567, %v746, %v752
        %v755 = vmul.f32 %v754, %v663
        %757 = vrot.lane.b32.xlu0 %v754, 64
        %v758 = vpop.permute.xlu0 %757
        %v760 = vmul.f32 %v754, %v758
        %762 = vrot.lane.b32.xlu0 %v760, 32
        %v763 = vpop.permute.xlu0 %762
        %v765 = vadd.f32 %v755, %v763
        %v766 = vtanh.pop %v765
        %768 = vrot.lane.b32.xlu0 %v766, 64
        %v769 = vpop.permute.xlu0 %768
        %v771 = vmul.f32 %v754, %v769
        %773 = vrot.lane.b32.xlu0 %v771, 32
        %v774 = vpop.permute.xlu0 %773
        %v775 = vsel %vm568, %v774, 0
        %777 = vmatpush.msra.mxu0 0.0
        %778 = vmatpush.msra.mxu0 0.0
        %779 = vmatpush.msra.mxu0 0.0
        %780 = vmatpush.msra.mxu0 0.0
        %781 = vmatpush.msra.mxu0 0.0
        %782 = vmatpush.msra.mxu0 0.0
        %783 = vmatpush.msra.mxu0 0.0
        %784 = vmatpush.msra.mxu0 0.0
        %785 = vmatpush.msra.mxu0 0.0
        %786 = vmatpush.msra.mxu0 0.0
        %787 = vmatpush.msra.mxu0 0.0
        %788 = vmatpush.msra.mxu0 0.0
        %789 = vmatpush.msra.mxu0 %v562
        %790 = vmatpush.msra.mxu0 %v561
        %791 = vmatpush.msra.mxu0 %v560
        %792 = vmatpush.msra.mxu0 %v559
        %793 = vmatmul.f32.gmra.mxu0 %v775
        %v794 = vpop.f32.mrf.mxu0
        %v795 = vadd.f32 0.0, %v794
        %796 = vdwg.mxu0
        %v798 = vrot.slane %v795, 3
        %v799 = vrot.slane %v795, 4
        %v802 = vadd.f32 %v550, %v798
        %v803 = vadd.f32 %v553, %v799
        %v804 = vtanh.pop %v802
        %v805 = vtanh.pop %v803
        %v806 = vsub.f32 0.0, %v802
        %v807 = vsub.f32 0.0, %v803
        %v808 = vmul.f32 %v806, 1.442695
        %v809 = vpow.pop %v808
        %v810 = vmul.f32 %v807, 1.442695
        %v811 = vpow.pop %v810
        %v812 = vadd.f32 %v809, 1.0
        %v813 = vadd.f32 %v811, 1.0
        %v814 = vrcp.pop %v812
        %v815 = vmul.f32 %v812, %v814
        %v816 = vsub.f32 1.0, %v815
        %v817 = vmul.f32 %v814, %v816
        %v818 = vadd.f32 %v814, %v817
        %vm819 = vweird.f32 %v812
        %vm820 = vweird.f32 %v814
        %vm821 = vmor %vm819, %vm820
        %v822 = vsel %vm821, %v814, %v818
        %v823 = vand.u32 2147483647, %v812
        %vm824 = vcmp.eq.f32.partialorder %v823, 8.507059e+37
        %v825 = vand.u32 %v812, 2147483648
        %v826 = vor.u32 1.1754944e-38, %v825
        %v827 = vsel %vm824, %v826, %v822
        %v828 = vmul.f32 1.0, %v827
        %v829 = vrcp.pop %v813
        %v830 = vmul.f32 %v813, %v829
        %v831 = vsub.f32 1.0, %v830
        %v832 = vmul.f32 %v829, %v831
        %v833 = vadd.f32 %v829, %v832
        %vm834 = vweird.f32 %v813
        %vm835 = vweird.f32 %v829
        %vm836 = vmor %vm834, %vm835
        %v837 = vsel %vm836, %v829, %v833
        %v838 = vand.u32 2147483647, %v813
        %vm839 = vcmp.eq.f32.partialorder %v838, 8.507059e+37
        %v840 = vand.u32 %v813, 2147483648
        %v841 = vor.u32 1.1754944e-38, %v840
        %v842 = vsel %vm839, %v841, %v837
        %v843 = vmul.f32 1.0, %v842
        %v846 = vrot.slane %v804, 5
        %v847 = vrot.slane %v805, 4
        %v848 = vsel %vm643, %v847, %v846
        %v852 = vrot.slane %v828, 5
        %v853 = vrot.slane %v843, 4
        %v854 = vsel %vm643, %v853, %v852
        %v856 = vsel %vm567, %v848, %v854
        %v857 = vmul.f32 %v856, %v765
        %859 = vrot.lane.b32.xlu0 %v856, 64
        %v860 = vpop.permute.xlu0 %859
        %v862 = vmul.f32 %v856, %v860
        %864 = vrot.lane.b32.xlu0 %v862, 32
        %v865 = vpop.permute.xlu0 %864
        %v867 = vadd.f32 %v857, %v865
        %v868 = vtanh.pop %v867
        %870 = vrot.lane.b32.xlu0 %v868, 64
        %v871 = vpop.permute.xlu0 %870
        %v873 = vmul.f32 %v856, %v871
        %875 = vrot.lane.b32.xlu0 %v873, 32
        %v876 = vpop.permute.xlu0 %875
        %v877 = vsel %vm568, %v876, 0
        %879 = vmatpush.msra.mxu0 0.0
        %880 = vmatpush.msra.mxu0 0.0
        %881 = vmatpush.msra.mxu0 0.0
        %882 = vmatpush.msra.mxu0 0.0
        %883 = vmatpush.msra.mxu0 0.0
        %884 = vmatpush.msra.mxu0 0.0
        %885 = vmatpush.msra.mxu0 0.0
        %886 = vmatpush.msra.mxu0 0.0
        %887 = vmatpush.msra.mxu0 0.0
        %888 = vmatpush.msra.mxu0 0.0
        %889 = vmatpush.msra.mxu0 0.0
        %890 = vmatpush.msra.mxu0 0.0
        %891 = vmatpush.msra.mxu0 %v562
        %892 = vmatpush.msra.mxu0 %v561
        %893 = vmatpush.msra.mxu0 %v560
        %894 = vmatpush.msra.mxu0 %v559
        %895 = vmatmul.f32.gmra.mxu0 %v877
        %v896 = vpop.f32.mrf.mxu0
        %v897 = vadd.f32 0.0, %v896
        %898 = vdwg.mxu0
        %v900 = vrot.slane %v897, 4
        %v901 = vrot.slane %v897, 5
        %v904 = vadd.f32 %v550, %v900
        %v905 = vadd.f32 %v553, %v901
        %v906 = vtanh.pop %v904
        %v907 = vtanh.pop %v905
        %v908 = vsub.f32 0.0, %v904
        %v909 = vsub.f32 0.0, %v905
        %v910 = vmul.f32 %v908, 1.442695
        %v911 = vpow.pop %v910
        %v912 = vmul.f32 %v909, 1.442695
        %v913 = vpow.pop %v912
        %v914 = vadd.f32 %v911, 1.0
        %v915 = vadd.f32 %v913, 1.0
        %v916 = vrcp.pop %v914
        %v917 = vmul.f32 %v914, %v916
        %v918 = vsub.f32 1.0, %v917
        %v919 = vmul.f32 %v916, %v918
        %v920 = vadd.f32 %v916, %v919
        %vm921 = vweird.f32 %v914
        %vm922 = vweird.f32 %v916
        %vm923 = vmor %vm921, %vm922
        %v924 = vsel %vm923, %v916, %v920
        %v925 = vand.u32 2147483647, %v914
        %vm926 = vcmp.eq.f32.partialorder %v925, 8.507059e+37
        %v927 = vand.u32 %v914, 2147483648
        %v928 = vor.u32 1.1754944e-38, %v927
        %v929 = vsel %vm926, %v928, %v924
        %v930 = vmul.f32 1.0, %v929
        %v931 = vrcp.pop %v915
        %v932 = vmul.f32 %v915, %v931
        %v933 = vsub.f32 1.0, %v932
        %v934 = vmul.f32 %v931, %v933
        %v935 = vadd.f32 %v931, %v934
        %vm936 = vweird.f32 %v915
        %vm937 = vweird.f32 %v931
        %vm938 = vmor %vm936, %vm937
        %v939 = vsel %vm938, %v931, %v935
        %v940 = vand.u32 2147483647, %v915
        %vm941 = vcmp.eq.f32.partialorder %v940, 8.507059e+37
        %v942 = vand.u32 %v915, 2147483648
        %v943 = vor.u32 1.1754944e-38, %v942
        %v944 = vsel %vm941, %v943, %v939
        %v945 = vmul.f32 1.0, %v944
        %v948 = vrot.slane %v906, 4
        %v949 = vrot.slane %v907, 3
        %v950 = vsel %vm643, %v949, %v948
        %v954 = vrot.slane %v930, 4
        %v955 = vrot.slane %v945, 3
        %v956 = vsel %vm643, %v955, %v954
        %v958 = vsel %vm567, %v950, %v956
        %v959 = vmul.f32 %v958, %v867
        %961 = vrot.lane.b32.xlu0 %v958, 64
        %v962 = vpop.permute.xlu0 %961
        %v964 = vmul.f32 %v958, %v962
        %966 = vrot.lane.b32.xlu0 %v964, 32
        %v967 = vpop.permute.xlu0 %966
        %v969 = vadd.f32 %v959, %v967
        %v970 = vtanh.pop %v969
        %972 = vrot.lane.b32.xlu0 %v970, 64
        %v973 = vpop.permute.xlu0 %972
        %v975 = vmul.f32 %v958, %v973
        %977 = vrot.lane.b32.xlu0 %v975, 32
        %v978 = vpop.permute.xlu0 %977
        %v979 = vsel %vm568, %v978, 0
        %981 = vmatpush.msra.mxu0 0.0
        %982 = vmatpush.msra.mxu0 0.0
        %983 = vmatpush.msra.mxu0 0.0
        %984 = vmatpush.msra.mxu0 0.0
        %985 = vmatpush.msra.mxu0 0.0
        %986 = vmatpush.msra.mxu0 0.0
        %987 = vmatpush.msra.mxu0 0.0
        %988 = vmatpush.msra.mxu0 0.0
        %989 = vmatpush.msra.mxu0 0.0
        %990 = vmatpush.msra.mxu0 0.0
        %991 = vmatpush.msra.mxu0 0.0
        %992 = vmatpush.msra.mxu0 0.0
        %993 = vmatpush.msra.mxu0 %v562
        %994 = vmatpush.msra.mxu0 %v561
        %995 = vmatpush.msra.mxu0 %v560
        %996 = vmatpush.msra.mxu0 %v559
        %997 = vmatmul.f32.gmra.mxu0 %v979
        %v998 = vpop.f32.mrf.mxu0
        %v999 = vadd.f32 0.0, %v998
        %1000 = vdwg.mxu0
        %v1002 = vrot.slane %v999, 5
        %v1003 = vrot.slane %v999, 6
        %v1006 = vadd.f32 %v550, %v1002
        %v1007 = vadd.f32 %v553, %v1003
        %v1008 = vtanh.pop %v1006
        %v1009 = vtanh.pop %v1007
        %v1010 = vsub.f32 0.0, %v1006
        %v1011 = vsub.f32 0.0, %v1007
        %v1012 = vmul.f32 %v1010, 1.442695
        %v1013 = vpow.pop %v1012
        %v1014 = vmul.f32 %v1011, 1.442695
        %v1015 = vpow.pop %v1014
        %v1016 = vadd.f32 %v1013, 1.0
        %v1017 = vadd.f32 %v1015, 1.0
        %v1018 = vrcp.pop %v1016
        %v1019 = vmul.f32 %v1016, %v1018
        %v1020 = vsub.f32 1.0, %v1019
        %v1021 = vmul.f32 %v1018, %v1020
        %v1022 = vadd.f32 %v1018, %v1021
        %vm1023 = vweird.f32 %v1016
        %vm1024 = vweird.f32 %v1018
        %vm1025 = vmor %vm1023, %vm1024
        %v1026 = vsel %vm1025, %v1018, %v1022
        %v1027 = vand.u32 2147483647, %v1016
        %vm1028 = vcmp.eq.f32.partialorder %v1027, 8.507059e+37
        %v1029 = vand.u32 %v1016, 2147483648
        %v1030 = vor.u32 1.1754944e-38, %v1029
        %v1031 = vsel %vm1028, %v1030, %v1026
        %v1032 = vmul.f32 1.0, %v1031
        %v1033 = vrcp.pop %v1017
        %v1034 = vmul.f32 %v1017, %v1033
        %v1035 = vsub.f32 1.0, %v1034
        %v1036 = vmul.f32 %v1033, %v1035
        %v1037 = vadd.f32 %v1033, %v1036
        %vm1038 = vweird.f32 %v1017
        %vm1039 = vweird.f32 %v1033
        %vm1040 = vmor %vm1038, %vm1039
        %v1041 = vsel %vm1040, %v1033, %v1037
        %v1042 = vand.u32 2147483647, %v1017
        %vm1043 = vcmp.eq.f32.partialorder %v1042, 8.507059e+37
        %v1044 = vand.u32 %v1017, 2147483648
        %v1045 = vor.u32 1.1754944e-38, %v1044
        %v1046 = vsel %vm1043, %v1045, %v1041
        %v1047 = vmul.f32 1.0, %v1046
        %v1050 = vrot.slane %v1008, 3
        %v1051 = vrot.slane %v1009, 2
        %v1052 = vsel %vm643, %v1051, %v1050
        %v1056 = vrot.slane %v1032, 3
        %v1057 = vrot.slane %v1047, 2
        %v1058 = vsel %vm643, %v1057, %v1056
        %v1060 = vsel %vm567, %v1052, %v1058
        %v1061 = vmul.f32 %v1060, %v969
        %1063 = vrot.lane.b32.xlu0 %v1060, 64
        %v1064 = vpop.permute.xlu0 %1063
        %v1066 = vmul.f32 %v1060, %v1064
        %1068 = vrot.lane.b32.xlu0 %v1066, 32
        %v1069 = vpop.permute.xlu0 %1068
        %v1071 = vadd.f32 %v1061, %v1069
        %v1072 = vtanh.pop %v1071
        %1074 = vrot.lane.b32.xlu0 %v1072, 64
        %v1075 = vpop.permute.xlu0 %1074
        %v1077 = vmul.f32 %v1060, %v1075
        %1079 = vrot.lane.b32.xlu0 %v1077, 32
        %v1080 = vpop.permute.xlu0 %1079
        %v1081 = vsel %vm568, %v1080, 0
        %1083 = vmatpush.msra.mxu0 0.0
        %1084 = vmatpush.msra.mxu0 0.0
        %1085 = vmatpush.msra.mxu0 0.0
        %1086 = vmatpush.msra.mxu0 0.0
        %1087 = vmatpush.msra.mxu0 0.0
        %1088 = vmatpush.msra.mxu0 0.0
        %1089 = vmatpush.msra.mxu0 0.0
        %1090 = vmatpush.msra.mxu0 0.0
        %1091 = vmatpush.msra.mxu0 0.0
        %1092 = vmatpush.msra.mxu0 0.0
        %1093 = vmatpush.msra.mxu0 0.0
        %1094 = vmatpush.msra.mxu0 0.0
        %1095 = vmatpush.msra.mxu0 %v562
        %1096 = vmatpush.msra.mxu0 %v561
        %1097 = vmatpush.msra.mxu0 %v560
        %1098 = vmatpush.msra.mxu0 %v559
        %1099 = vmatmul.f32.gmra.mxu0 %v1081
        %v1100 = vpop.f32.mrf.mxu0
        %v1101 = vadd.f32 0.0, %v1100
        %1102 = vdwg.mxu0
        %v1104 = vrot.slane %v1101, 6
        %v1105 = vrot.slane %v1101, 7
        %v1108 = vadd.f32 %v550, %v1104
        %v1109 = vadd.f32 %v553, %v1105
        %v1110 = vtanh.pop %v1108
        %v1111 = vtanh.pop %v1109
        %v1112 = vsub.f32 0.0, %v1108
        %v1113 = vsub.f32 0.0, %v1109
        %v1114 = vmul.f32 %v1112, 1.442695
        %v1115 = vpow.pop %v1114
        %v1116 = vmul.f32 %v1113, 1.442695
        %v1117 = vpow.pop %v1116
        %v1118 = vadd.f32 %v1115, 1.0
        %v1119 = vadd.f32 %v1117, 1.0
        %v1120 = vrcp.pop %v1118
        %v1121 = vmul.f32 %v1118, %v1120
        %v1122 = vsub.f32 1.0, %v1121
        %v1123 = vmul.f32 %v1120, %v1122
        %v1124 = vadd.f32 %v1120, %v1123
        %vm1125 = vweird.f32 %v1118
        %vm1126 = vweird.f32 %v1120
        %vm1127 = vmor %vm1125, %vm1126
        %v1128 = vsel %vm1127, %v1120, %v1124
        %v1129 = vand.u32 2147483647, %v1118
        %vm1130 = vcmp.eq.f32.partialorder %v1129, 8.507059e+37
        %v1131 = vand.u32 %v1118, 2147483648
        %v1132 = vor.u32 1.1754944e-38, %v1131
        %v1133 = vsel %vm1130, %v1132, %v1128
        %v1134 = vmul.f32 1.0, %v1133
        %v1135 = vrcp.pop %v1119
        %v1136 = vmul.f32 %v1119, %v1135
        %v1137 = vsub.f32 1.0, %v1136
        %v1138 = vmul.f32 %v1135, %v1137
        %v1139 = vadd.f32 %v1135, %v1138
        %vm1140 = vweird.f32 %v1119
        %vm1141 = vweird.f32 %v1135
        %vm1142 = vmor %vm1140, %vm1141
        %v1143 = vsel %vm1142, %v1135, %v1139
        %v1144 = vand.u32 2147483647, %v1119
        %vm1145 = vcmp.eq.f32.partialorder %v1144, 8.507059e+37
        %v1146 = vand.u32 %v1119, 2147483648
        %v1147 = vor.u32 1.1754944e-38, %v1146
        %v1148 = vsel %vm1145, %v1147, %v1143
        %v1149 = vmul.f32 1.0, %v1148
        %v1152 = vrot.slane %v1110, 2
        %v1153 = vrot.slane %v1111, 1
        %v1154 = vsel %vm643, %v1153, %v1152
        %v1158 = vrot.slane %v1134, 2
        %v1159 = vrot.slane %v1149, 1
        %v1160 = vsel %vm643, %v1159, %v1158
        %v1162 = vsel %vm567, %v1154, %v1160
        %v1163 = vmul.f32 %v1162, %v1071
        %1165 = vrot.lane.b32.xlu0 %v1162, 64
        %v1166 = vpop.permute.xlu0 %1165
        %v1168 = vmul.f32 %v1162, %v1166
        %1170 = vrot.lane.b32.xlu0 %v1168, 32
        %v1171 = vpop.permute.xlu0 %1170
        %v1173 = vadd.f32 %v1163, %v1171
        %v1174 = vtanh.pop %v1173
        %1176 = vrot.lane.b32.xlu0 %v1174, 64
        %v1177 = vpop.permute.xlu0 %1176
        %v1179 = vmul.f32 %v1162, %v1177
        %1181 = vrot.lane.b32.xlu0 %v1179, 32
        %v1182 = vpop.permute.xlu0 %1181
        %v1183 = vsel %vm568, %v1182, 0
        %1185 = vmatpush.msra.mxu0 0.0
        %1186 = vmatpush.msra.mxu0 0.0
        %1187 = vmatpush.msra.mxu0 0.0
        %1188 = vmatpush.msra.mxu0 0.0
        %1189 = vmatpush.msra.mxu0 0.0
        %1190 = vmatpush.msra.mxu0 0.0
        %1191 = vmatpush.msra.mxu0 0.0
        %1192 = vmatpush.msra.mxu0 0.0
        %1193 = vmatpush.msra.mxu0 0.0
        %1194 = vmatpush.msra.mxu0 0.0
        %1195 = vmatpush.msra.mxu0 0.0
        %1196 = vmatpush.msra.mxu0 0.0
        %1197 = vmatpush.msra.mxu0 %v562
        %1198 = vmatpush.msra.mxu0 %v561
        %1199 = vmatpush.msra.mxu0 %v560
        %1200 = vmatpush.msra.mxu0 %v559
        %1201 = vmatmul.f32.gmra.mxu0 %v1183
        %v1202 = vpop.f32.mrf.mxu0
        %v1203 = vadd.f32 0.0, %v1202
        %1204 = vdwg.mxu0
        %v1206 = vrot.slane %v1203, 7
        %v1209 = vadd.f32 %v550, %v1206
        %v1210 = vadd.f32 %v553, %v1203
        %v1211 = vtanh.pop %v1209
        %v1212 = vtanh.pop %v1210
        %v1213 = vsub.f32 0.0, %v1209
        %v1214 = vsub.f32 0.0, %v1210
        %v1215 = vmul.f32 %v1213, 1.442695
        %v1216 = vpow.pop %v1215
        %v1217 = vmul.f32 %v1214, 1.442695
        %v1218 = vpow.pop %v1217
        %v1219 = vadd.f32 %v1216, 1.0
        %v1220 = vadd.f32 %v1218, 1.0
        %v1221 = vrcp.pop %v1219
        %v1222 = vmul.f32 %v1219, %v1221
        %v1223 = vsub.f32 1.0, %v1222
        %v1224 = vmul.f32 %v1221, %v1223
        %v1225 = vadd.f32 %v1221, %v1224
        %vm1226 = vweird.f32 %v1219
        %vm1227 = vweird.f32 %v1221
        %vm1228 = vmor %vm1226, %vm1227
        %v1229 = vsel %vm1228, %v1221, %v1225
        %v1230 = vand.u32 2147483647, %v1219
        %vm1231 = vcmp.eq.f32.partialorder %v1230, 8.507059e+37
        %v1232 = vand.u32 %v1219, 2147483648
        %v1233 = vor.u32 1.1754944e-38, %v1232
        %v1234 = vsel %vm1231, %v1233, %v1229
        %v1235 = vmul.f32 1.0, %v1234
        %v1236 = vrcp.pop %v1220
        %v1237 = vmul.f32 %v1220, %v1236
        %v1238 = vsub.f32 1.0, %v1237
        %v1239 = vmul.f32 %v1236, %v1238
        %v1240 = vadd.f32 %v1236, %v1239
        %vm1241 = vweird.f32 %v1220
        %vm1242 = vweird.f32 %v1236
        %vm1243 = vmor %vm1241, %vm1242
        %v1244 = vsel %vm1243, %v1236, %v1240
        %v1245 = vand.u32 2147483647, %v1220
        %vm1246 = vcmp.eq.f32.partialorder %v1245, 8.507059e+37
        %v1247 = vand.u32 %v1220, 2147483648
        %v1248 = vor.u32 1.1754944e-38, %v1247
        %v1249 = vsel %vm1246, %v1248, %v1244
        %v1250 = vmul.f32 1.0, %v1249
        %v1253 = vrot.slane %v1211, 1
        %v1254 = vsel %vm643, %v1212, %v1253
        %v1258 = vrot.slane %v1235, 1
        %v1259 = vsel %vm643, %v1250, %v1258
        %v1261 = vsel %vm567, %v1254, %v1259
        %v1262 = vmul.f32 %v1261, %v1173
        %1264 = vrot.lane.b32.xlu0 %v1261, 64
        %v1265 = vpop.permute.xlu0 %1264
        %v1267 = vmul.f32 %v1261, %v1265
        %1269 = vrot.lane.b32.xlu0 %v1267, 32
        %v1270 = vpop.permute.xlu0 %1269
        %v1272 = vadd.f32 %v1262, %v1270
        %v1273 = vtanh.pop %v1272
        %1275 = vrot.lane.b32.xlu0 %v1273, 64
        %v1276 = vpop.permute.xlu0 %1275
        %v1278 = vmul.f32 %v1261, %v1276
        %1280 = vrot.lane.b32.xlu0 %v1278, 32
        %v1281 = vpop.permute.xlu0 %1280
        %v1282 = vsel %vm568, %v1281, 0
        %1284 = vmatpush.msra.mxu0 0.0
        %1285 = vmatpush.msra.mxu0 0.0
        %1286 = vmatpush.msra.mxu0 0.0
        %1287 = vmatpush.msra.mxu0 0.0
        %1288 = vmatpush.msra.mxu0 0.0
        %1289 = vmatpush.msra.mxu0 0.0
        %1290 = vmatpush.msra.mxu0 0.0
        %1291 = vmatpush.msra.mxu0 0.0
        %1292 = vmatpush.msra.mxu0 0.0
        %1293 = vmatpush.msra.mxu0 0.0
        %1294 = vmatpush.msra.mxu0 0.0
        %1295 = vmatpush.msra.mxu0 0.0
        %1296 = vmatpush.msra.mxu0 %v562
        %1297 = vmatpush.msra.mxu0 %v561
        %1298 = vmatpush.msra.mxu0 %v560
        %1299 = vmatpush.msra.mxu0 %v559
        %1300 = vmatmul.f32.gmra.mxu0 %v1282
        %v1301 = vpop.f32.mrf.mxu0
        %v1302 = vadd.f32 0.0, %v1301
        %1303 = vdwg.mxu0
        %v1305 = vrot.slane %v1302, 1
        %v1308 = vadd.f32 %v550, %v1302
        %v1309 = vadd.f32 %v553, %v1305
        %v1310 = vtanh.pop %v1308
        %v1311 = vtanh.pop %v1309
        %v1312 = vsub.f32 0.0, %v1308
        %v1313 = vsub.f32 0.0, %v1309
        %v1314 = vmul.f32 %v1312, 1.442695
        %v1315 = vpow.pop %v1314
        %v1316 = vmul.f32 %v1313, 1.442695
        %v1317 = vpow.pop %v1316
        %v1318 = vadd.f32 %v1315, 1.0
        %v1319 = vadd.f32 %v1317, 1.0
        %v1320 = vrcp.pop %v1318
        %v1321 = vmul.f32 %v1318, %v1320
        %v1322 = vsub.f32 1.0, %v1321
        %v1323 = vmul.f32 %v1320, %v1322
        %v1324 = vadd.f32 %v1320, %v1323
        %vm1325 = vweird.f32 %v1318
        %vm1326 = vweird.f32 %v1320
        %vm1327 = vmor %vm1325, %vm1326
        %v1328 = vsel %vm1327, %v1320, %v1324
        %v1329 = vand.u32 2147483647, %v1318
        %vm1330 = vcmp.eq.f32.partialorder %v1329, 8.507059e+37
        %v1331 = vand.u32 %v1318, 2147483648
        %v1332 = vor.u32 1.1754944e-38, %v1331
        %v1333 = vsel %vm1330, %v1332, %v1328
        %v1334 = vmul.f32 1.0, %v1333
        %v1335 = vrcp.pop %v1319
        %v1336 = vmul.f32 %v1319, %v1335
        %v1337 = vsub.f32 1.0, %v1336
        %v1338 = vmul.f32 %v1335, %v1337
        %v1339 = vadd.f32 %v1335, %v1338
        %vm1340 = vweird.f32 %v1319
        %vm1341 = vweird.f32 %v1335
        %vm1342 = vmor %vm1340, %vm1341
        %v1343 = vsel %vm1342, %v1335, %v1339
        %v1344 = vand.u32 2147483647, %v1319
        %vm1345 = vcmp.eq.f32.partialorder %v1344, 8.507059e+37
        %v1346 = vand.u32 %v1319, 2147483648
        %v1347 = vor.u32 1.1754944e-38, %v1346
        %v1348 = vsel %vm1345, %v1347, %v1343
        %v1349 = vmul.f32 1.0, %v1348
        %v1352 = vrot.slane %v1311, 7
        %v1353 = vsel %vm643, %v1352, %v1310
        %v1357 = vrot.slane %v1349, 7
        %v1358 = vsel %vm643, %v1357, %v1334
        %v1360 = vsel %vm567, %v1353, %v1358
        %v1361 = vmul.f32 %v1360, %v1272
        %1363 = vrot.lane.b32.xlu0 %v1360, 64
        %v1364 = vpop.permute.xlu0 %1363
        %v1366 = vmul.f32 %v1360, %v1364
        %1368 = vrot.lane.b32.xlu0 %v1366, 32
        %v1369 = vpop.permute.xlu0 %1368
        %v1371 = vadd.f32 %v1361, %v1369
        %v1372 = vtanh.pop %v1371
        %1374 = vrot.lane.b32.xlu0 %v1372, 64
        %v1375 = vpop.permute.xlu0 %1374
        %v1377 = vmul.f32 %v1360, %v1375
        %1378 = vmatpush.msra.mxu0 0.0
        %1379 = vmatpush.msra.mxu0 0.0
        %1380 = vmatpush.msra.mxu0 0.0
        %1381 = vmatpush.msra.mxu0 0.0
        %1382 = vmatpush.msra.mxu0 0.0
        %1383 = vmatpush.msra.mxu0 0.0
        %1384 = vmatpush.msra.mxu0 0.0
        %1385 = vmatpush.msra.mxu0 0.0
        %1386 = vmatpush.msra.mxu0 0.0
        %1387 = vmatpush.msra.mxu0 0.0
        %1388 = vmatpush.msra.mxu0 0.0
        %1389 = vmatpush.msra.mxu0 0.0
        %1390 = vmatpush.msra.mxu0 %v558
        %1391 = vmatpush.msra.mxu0 %v557
        %1392 = vmatpush.msra.mxu0 %v556
        %1393 = vmatpush.msra.mxu0 %v555
        %1394 = vmatmul.f32.gmra.mxu0 %v570
        %v1395 = vpop.f32.mrf.mxu0
        %v1396 = vadd.f32 0.0, %v1395
        %1397 = vdwg.mxu0
        %v1399 = vrot.slane %v1396, 1
        %v1402 = vadd.f32 %v436, %v1396
        %v1403 = vadd.f32 %v439, %v1399
        %v1404 = vtanh.pop %v1402
        %v1405 = vtanh.pop %v1403
        %v1406 = vsub.f32 0.0, %v1402
        %v1407 = vsub.f32 0.0, %v1403
        %v1408 = vmul.f32 %v1406, 1.442695
        %v1409 = vpow.pop %v1408
        %v1410 = vmul.f32 %v1407, 1.442695
        %v1411 = vpow.pop %v1410
        %v1412 = vadd.f32 %v1409, 1.0
        %v1413 = vadd.f32 %v1411, 1.0
        %v1414 = vrcp.pop %v1412
        %v1415 = vmul.f32 %v1412, %v1414
        %v1416 = vsub.f32 1.0, %v1415
        %v1417 = vmul.f32 %v1414, %v1416
        %v1418 = vadd.f32 %v1414, %v1417
        %vm1419 = vweird.f32 %v1412
        %vm1420 = vweird.f32 %v1414
        %vm1421 = vmor %vm1419, %vm1420
        %v1422 = vsel %vm1421, %v1414, %v1418
        %v1423 = vand.u32 2147483647, %v1412
        %vm1424 = vcmp.eq.f32.partialorder %v1423, 8.507059e+37
        %v1425 = vand.u32 %v1412, 2147483648
        %v1426 = vor.u32 1.1754944e-38, %v1425
        %v1427 = vsel %vm1424, %v1426, %v1422
        %v1428 = vmul.f32 1.0, %v1427
        %v1429 = vrcp.pop %v1413
        %v1430 = vmul.f32 %v1413, %v1429
        %v1431 = vsub.f32 1.0, %v1430
        %v1432 = vmul.f32 %v1429, %v1431
        %v1433 = vadd.f32 %v1429, %v1432
        %vm1434 = vweird.f32 %v1413
        %vm1435 = vweird.f32 %v1429
        %vm1436 = vmor %vm1434, %vm1435
        %v1437 = vsel %vm1436, %v1429, %v1433
        %v1438 = vand.u32 2147483647, %v1413
        %vm1439 = vcmp.eq.f32.partialorder %v1438, 8.507059e+37
        %v1440 = vand.u32 %v1413, 2147483648
        %v1441 = vor.u32 1.1754944e-38, %v1440
        %v1442 = vsel %vm1439, %v1441, %v1437
        %v1443 = vmul.f32 1.0, %v1442
        %v1446 = vrot.slane %v1405, 7
        %v1447 = vsel %vm643, %v1446, %v1404
        %v1451 = vrot.slane %v1443, 7
        %v1452 = vsel %vm643, %v1451, %v1428
        %v1454 = vsel %vm567, %v1447, %v1452
        %v1455 = vmul.f32 %v1454, 0.0
        %1457 = vrot.lane.b32.xlu0 %v1454, 64
        %v1458 = vpop.permute.xlu0 %1457
        %v1460 = vmul.f32 %v1454, %v1458
        %1462 = vrot.lane.b32.xlu0 %v1460, 32
        %v1463 = vpop.permute.xlu0 %1462
        %v1465 = vadd.f32 %v1455, %v1463
        %v1466 = vtanh.pop %v1465
        %1468 = vrot.lane.b32.xlu0 %v1466, 64
        %v1469 = vpop.permute.xlu0 %1468
        %v1471 = vmul.f32 %v1454, %v1469
        %1473 = vrot.lane.b32.xlu0 %v1471, 32
        %v1474 = vpop.permute.xlu0 %1473
        %1477 = vrot.lane.b32.xlu0 %v1377, 64
        %v1478 = vpop.permute.xlu0 %1477
        %v1480 = vsel %vm568, %v1474, %v1478
        %v1482 = vrot.slane %v1480, 1
        %vm1484 = vcmask 516096
        %1485 = vst.msk [vmem:[%s312] sm:$0x1] %vm1484, %v1480
        %1486 = vst.msk [vmem:[%s312 + $0x8] sm:$0x1] %vm1484, %v1482
        %v1487 = vsel %vm568, %v1474, 0
        %1489 = vmatpush.msra.mxu0 0.0
        %1490 = vmatpush.msra.mxu0 0.0
        %1491 = vmatpush.msra.mxu0 0.0
        %1492 = vmatpush.msra.mxu0 0.0
        %1493 = vmatpush.msra.mxu0 0.0
        %1494 = vmatpush.msra.mxu0 0.0
        %1495 = vmatpush.msra.mxu0 0.0
        %1496 = vmatpush.msra.mxu0 0.0
        %1497 = vmatpush.msra.mxu0 0.0
        %1498 = vmatpush.msra.mxu0 0.0
        %1499 = vmatpush.msra.mxu0 0.0
        %1500 = vmatpush.msra.mxu0 0.0
        %1501 = vmatpush.msra.mxu0 %v558
        %1502 = vmatpush.msra.mxu0 %v557
        %1503 = vmatpush.msra.mxu0 %v556
        %1504 = vmatpush.msra.mxu0 %v555
        %1505 = vmatmul.f32.gmra.mxu0 %v1487
        %v1506 = vpop.f32.mrf.mxu0
        %v1507 = vadd.f32 0.0, %v1506
        %1508 = vdwg.mxu0
        %v1510 = vrot.slane %v1507, 7
        %v1513 = vadd.f32 %v436, %v1510
        %v1514 = vadd.f32 %v439, %v1507
        %v1515 = vtanh.pop %v1513
        %v1516 = vtanh.pop %v1514
        %v1517 = vsub.f32 0.0, %v1513
        %v1518 = vsub.f32 0.0, %v1514
        %v1519 = vmul.f32 %v1517, 1.442695
        %v1520 = vpow.pop %v1519
        %v1521 = vmul.f32 %v1518, 1.442695
        %v1522 = vpow.pop %v1521
        %v1523 = vadd.f32 %v1520, 1.0
        %v1524 = vadd.f32 %v1522, 1.0
        %v1525 = vrcp.pop %v1523
        %v1526 = vmul.f32 %v1523, %v1525
        %v1527 = vsub.f32 1.0, %v1526
        %v1528 = vmul.f32 %v1525, %v1527
        %v1529 = vadd.f32 %v1525, %v1528
        %vm1530 = vweird.f32 %v1523
        %vm1531 = vweird.f32 %v1525
        %vm1532 = vmor %vm1530, %vm1531
        %v1533 = vsel %vm1532, %v1525, %v1529
        %v1534 = vand.u32 2147483647, %v1523
        %vm1535 = vcmp.eq.f32.partialorder %v1534, 8.507059e+37
        %v1536 = vand.u32 %v1523, 2147483648
        %v1537 = vor.u32 1.1754944e-38, %v1536
        %v1538 = vsel %vm1535, %v1537, %v1533
        %v1539 = vmul.f32 1.0, %v1538
        %v1540 = vrcp.pop %v1524
        %v1541 = vmul.f32 %v1524, %v1540
        %v1542 = vsub.f32 1.0, %v1541
        %v1543 = vmul.f32 %v1540, %v1542
        %v1544 = vadd.f32 %v1540, %v1543
        %vm1545 = vweird.f32 %v1524
        %vm1546 = vweird.f32 %v1540
        %vm1547 = vmor %vm1545, %vm1546
        %v1548 = vsel %vm1547, %v1540, %v1544
        %v1549 = vand.u32 2147483647, %v1524
        %vm1550 = vcmp.eq.f32.partialorder %v1549, 8.507059e+37
        %v1551 = vand.u32 %v1524, 2147483648
        %v1552 = vor.u32 1.1754944e-38, %v1551
        %v1553 = vsel %vm1550, %v1552, %v1548
        %v1554 = vmul.f32 1.0, %v1553
        %v1557 = vrot.slane %v1515, 1
        %v1558 = vsel %vm643, %v1516, %v1557
        %v1562 = vrot.slane %v1539, 1
        %v1563 = vsel %vm643, %v1554, %v1562
        %v1565 = vsel %vm567, %v1558, %v1563
        %v1566 = vmul.f32 %v1565, %v1465
        %1568 = vrot.lane.b32.xlu0 %v1565, 64
        %v1569 = vpop.permute.xlu0 %1568
        %v1571 = vmul.f32 %v1565, %v1569
        %1573 = vrot.lane.b32.xlu0 %v1571, 32
        %v1574 = vpop.permute.xlu0 %1573
        %v1576 = vadd.f32 %v1566, %v1574
        %v1577 = vtanh.pop %v1576
        %1579 = vrot.lane.b32.xlu0 %v1577, 64
        %v1580 = vpop.permute.xlu0 %1579
        %v1582 = vmul.f32 %v1565, %v1580
        %1584 = vrot.lane.b32.xlu0 %v1582, 32
        %v1585 = vpop.permute.xlu0 %1584
        %1587 = vrot.lane.b32.xlu0 %v1278, 64
        %v1588 = vpop.permute.xlu0 %1587
        %v1590 = vsel %vm568, %v1585, %v1588
        %v1592 = vrot.slane %v1590, 1
        %1594 = vst.msk [vmem:[%s312 + $0x1] sm:$0x1] %vm1484, %v1590
        %1595 = vst.msk [vmem:[%s312 + $0x9] sm:$0x1] %vm1484, %v1592
        %v1596 = vsel %vm568, %v1585, 0
        %1598 = vmatpush.msra.mxu0 0.0
        %1599 = vmatpush.msra.mxu0 0.0
        %1600 = vmatpush.msra.mxu0 0.0
        %1601 = vmatpush.msra.mxu0 0.0
        %1602 = vmatpush.msra.mxu0 0.0
        %1603 = vmatpush.msra.mxu0 0.0
        %1604 = vmatpush.msra.mxu0 0.0
        %1605 = vmatpush.msra.mxu0 0.0
        %1606 = vmatpush.msra.mxu0 0.0
        %1607 = vmatpush.msra.mxu0 0.0
        %1608 = vmatpush.msra.mxu0 0.0
        %1609 = vmatpush.msra.mxu0 0.0
        %1610 = vmatpush.msra.mxu0 %v558
        %1611 = vmatpush.msra.mxu0 %v557
        %1612 = vmatpush.msra.mxu0 %v556
        %1613 = vmatpush.msra.mxu0 %v555
        %1614 = vmatmul.f32.gmra.mxu0 %v1596
        %v1615 = vpop.f32.mrf.mxu0
        %v1616 = vadd.f32 0.0, %v1615
        %1617 = vdwg.mxu0
        %v1619 = vrot.slane %v1616, 6
        %v1620 = vrot.slane %v1616, 7
        %v1623 = vadd.f32 %v436, %v1619
        %v1624 = vadd.f32 %v439, %v1620
        %v1625 = vtanh.pop %v1623
        %v1626 = vtanh.pop %v1624
        %v1627 = vsub.f32 0.0, %v1623
        %v1628 = vsub.f32 0.0, %v1624
        %v1629 = vmul.f32 %v1627, 1.442695
        %v1630 = vpow.pop %v1629
        %v1631 = vmul.f32 %v1628, 1.442695
        %v1632 = vpow.pop %v1631
        %v1633 = vadd.f32 %v1630, 1.0
        %v1634 = vadd.f32 %v1632, 1.0
        %v1635 = vrcp.pop %v1633
        %v1636 = vmul.f32 %v1633, %v1635
        %v1637 = vsub.f32 1.0, %v1636
        %v1638 = vmul.f32 %v1635, %v1637
        %v1639 = vadd.f32 %v1635, %v1638
        %vm1640 = vweird.f32 %v1633
        %vm1641 = vweird.f32 %v1635
        %vm1642 = vmor %vm1640, %vm1641
        %v1643 = vsel %vm1642, %v1635, %v1639
        %v1644 = vand.u32 2147483647, %v1633
        %vm1645 = vcmp.eq.f32.partialorder %v1644, 8.507059e+37
        %v1646 = vand.u32 %v1633, 2147483648
        %v1647 = vor.u32 1.1754944e-38, %v1646
        %v1648 = vsel %vm1645, %v1647, %v1643
        %v1649 = vmul.f32 1.0, %v1648
        %v1650 = vrcp.pop %v1634
        %v1651 = vmul.f32 %v1634, %v1650
        %v1652 = vsub.f32 1.0, %v1651
        %v1653 = vmul.f32 %v1650, %v1652
        %v1654 = vadd.f32 %v1650, %v1653
        %vm1655 = vweird.f32 %v1634
        %vm1656 = vweird.f32 %v1650
        %vm1657 = vmor %vm1655, %vm1656
        %v1658 = vsel %vm1657, %v1650, %v1654
        %v1659 = vand.u32 2147483647, %v1634
        %vm1660 = vcmp.eq.f32.partialorder %v1659, 8.507059e+37
        %v1661 = vand.u32 %v1634, 2147483648
        %v1662 = vor.u32 1.1754944e-38, %v1661
        %v1663 = vsel %vm1660, %v1662, %v1658
        %v1664 = vmul.f32 1.0, %v1663
        %v1667 = vrot.slane %v1625, 2
        %v1668 = vrot.slane %v1626, 1
        %v1669 = vsel %vm643, %v1668, %v1667
        %v1673 = vrot.slane %v1649, 2
        %v1674 = vrot.slane %v1664, 1
        %v1675 = vsel %vm643, %v1674, %v1673
        %v1677 = vsel %vm567, %v1669, %v1675
        %v1678 = vmul.f32 %v1677, %v1576
        %1680 = vrot.lane.b32.xlu0 %v1677, 64
        %v1681 = vpop.permute.xlu0 %1680
        %v1683 = vmul.f32 %v1677, %v1681
        %1685 = vrot.lane.b32.xlu0 %v1683, 32
        %v1686 = vpop.permute.xlu0 %1685
        %v1688 = vadd.f32 %v1678, %v1686
        %v1689 = vtanh.pop %v1688
        %1691 = vrot.lane.b32.xlu0 %v1689, 64
        %v1692 = vpop.permute.xlu0 %1691
        %v1694 = vmul.f32 %v1677, %v1692
        %1696 = vrot.lane.b32.xlu0 %v1694, 32
        %v1697 = vpop.permute.xlu0 %1696
        %1699 = vrot.lane.b32.xlu0 %v1179, 64
        %v1700 = vpop.permute.xlu0 %1699
        %v1702 = vsel %vm568, %v1697, %v1700
        %v1704 = vrot.slane %v1702, 1
        %1706 = vst.msk [vmem:[%s312 + $0x2] sm:$0x1] %vm1484, %v1702
        %1707 = vst.msk [vmem:[%s312 + $0xa] sm:$0x1] %vm1484, %v1704
        %v1708 = vsel %vm568, %v1697, 0
        %1710 = vmatpush.msra.mxu0 0.0
        %1711 = vmatpush.msra.mxu0 0.0
        %1712 = vmatpush.msra.mxu0 0.0
        %1713 = vmatpush.msra.mxu0 0.0
        %1714 = vmatpush.msra.mxu0 0.0
        %1715 = vmatpush.msra.mxu0 0.0
        %1716 = vmatpush.msra.mxu0 0.0
        %1717 = vmatpush.msra.mxu0 0.0
        %1718 = vmatpush.msra.mxu0 0.0
        %1719 = vmatpush.msra.mxu0 0.0
        %1720 = vmatpush.msra.mxu0 0.0
        %1721 = vmatpush.msra.mxu0 0.0
        %1722 = vmatpush.msra.mxu0 %v558
        %1723 = vmatpush.msra.mxu0 %v557
        %1724 = vmatpush.msra.mxu0 %v556
        %1725 = vmatpush.msra.mxu0 %v555
        %1726 = vmatmul.f32.gmra.mxu0 %v1708
        %v1727 = vpop.f32.mrf.mxu0
        %v1728 = vadd.f32 0.0, %v1727
        %1729 = vdwg.mxu0
        %v1731 = vrot.slane %v1728, 5
        %v1732 = vrot.slane %v1728, 6
        %v1735 = vadd.f32 %v436, %v1731
        %v1736 = vadd.f32 %v439, %v1732
        %v1737 = vtanh.pop %v1735
        %v1738 = vtanh.pop %v1736
        %v1739 = vsub.f32 0.0, %v1735
        %v1740 = vsub.f32 0.0, %v1736
        %v1741 = vmul.f32 %v1739, 1.442695
        %v1742 = vpow.pop %v1741
        %v1743 = vmul.f32 %v1740, 1.442695
        %v1744 = vpow.pop %v1743
        %v1745 = vadd.f32 %v1742, 1.0
        %v1746 = vadd.f32 %v1744, 1.0
        %v1747 = vrcp.pop %v1745
        %v1748 = vmul.f32 %v1745, %v1747
        %v1749 = vsub.f32 1.0, %v1748
        %v1750 = vmul.f32 %v1747, %v1749
        %v1751 = vadd.f32 %v1747, %v1750
        %vm1752 = vweird.f32 %v1745
        %vm1753 = vweird.f32 %v1747
        %vm1754 = vmor %vm1752, %vm1753
        %v1755 = vsel %vm1754, %v1747, %v1751
        %v1756 = vand.u32 2147483647, %v1745
        %vm1757 = vcmp.eq.f32.partialorder %v1756, 8.507059e+37
        %v1758 = vand.u32 %v1745, 2147483648
        %v1759 = vor.u32 1.1754944e-38, %v1758
        %v1760 = vsel %vm1757, %v1759, %v1755
        %v1761 = vmul.f32 1.0, %v1760
        %v1762 = vrcp.pop %v1746
        %v1763 = vmul.f32 %v1746, %v1762
        %v1764 = vsub.f32 1.0, %v1763
        %v1765 = vmul.f32 %v1762, %v1764
        %v1766 = vadd.f32 %v1762, %v1765
        %vm1767 = vweird.f32 %v1746
        %vm1768 = vweird.f32 %v1762
        %vm1769 = vmor %vm1767, %vm1768
        %v1770 = vsel %vm1769, %v1762, %v1766
        %v1771 = vand.u32 2147483647, %v1746
        %vm1772 = vcmp.eq.f32.partialorder %v1771, 8.507059e+37
        %v1773 = vand.u32 %v1746, 2147483648
        %v1774 = vor.u32 1.1754944e-38, %v1773
        %v1775 = vsel %vm1772, %v1774, %v1770
        %v1776 = vmul.f32 1.0, %v1775
        %v1779 = vrot.slane %v1737, 3
        %v1780 = vrot.slane %v1738, 2
        %v1781 = vsel %vm643, %v1780, %v1779
        %v1785 = vrot.slane %v1761, 3
        %v1786 = vrot.slane %v1776, 2
        %v1787 = vsel %vm643, %v1786, %v1785
        %v1789 = vsel %vm567, %v1781, %v1787
        %v1790 = vmul.f32 %v1789, %v1688
        %1792 = vrot.lane.b32.xlu0 %v1789, 64
        %v1793 = vpop.permute.xlu0 %1792
        %v1795 = vmul.f32 %v1789, %v1793
        %1797 = vrot.lane.b32.xlu0 %v1795, 32
        %v1798 = vpop.permute.xlu0 %1797
        %v1800 = vadd.f32 %v1790, %v1798
        %v1801 = vtanh.pop %v1800
        %1803 = vrot.lane.b32.xlu0 %v1801, 64
        %v1804 = vpop.permute.xlu0 %1803
        %v1806 = vmul.f32 %v1789, %v1804
        %1808 = vrot.lane.b32.xlu0 %v1806, 32
        %v1809 = vpop.permute.xlu0 %1808
        %1811 = vrot.lane.b32.xlu0 %v1077, 64
        %v1812 = vpop.permute.xlu0 %1811
        %v1814 = vsel %vm568, %v1809, %v1812
        %v1816 = vrot.slane %v1814, 1
        %1818 = vst.msk [vmem:[%s312 + $0x3] sm:$0x1] %vm1484, %v1814
        %1819 = vst.msk [vmem:[%s312 + $0xb] sm:$0x1] %vm1484, %v1816
        %v1820 = vsel %vm568, %v1809, 0
        %1822 = vmatpush.msra.mxu0 0.0
        %1823 = vmatpush.msra.mxu0 0.0
        %1824 = vmatpush.msra.mxu0 0.0
        %1825 = vmatpush.msra.mxu0 0.0
        %1826 = vmatpush.msra.mxu0 0.0
        %1827 = vmatpush.msra.mxu0 0.0
        %1828 = vmatpush.msra.mxu0 0.0
        %1829 = vmatpush.msra.mxu0 0.0
        %1830 = vmatpush.msra.mxu0 0.0
        %1831 = vmatpush.msra.mxu0 0.0
        %1832 = vmatpush.msra.mxu0 0.0
        %1833 = vmatpush.msra.mxu0 0.0
        %1834 = vmatpush.msra.mxu0 %v558
        %1835 = vmatpush.msra.mxu0 %v557
        %1836 = vmatpush.msra.mxu0 %v556
        %1837 = vmatpush.msra.mxu0 %v555
        %1838 = vmatmul.f32.gmra.mxu0 %v1820
        %v1839 = vpop.f32.mrf.mxu0
        %v1840 = vadd.f32 0.0, %v1839
        %1841 = vdwg.mxu0
        %v1843 = vrot.slane %v1840, 4
        %v1844 = vrot.slane %v1840, 5
        %v1847 = vadd.f32 %v436, %v1843
        %v1848 = vadd.f32 %v439, %v1844
        %v1849 = vtanh.pop %v1847
        %v1850 = vtanh.pop %v1848
        %v1851 = vsub.f32 0.0, %v1847
        %v1852 = vsub.f32 0.0, %v1848
        %v1853 = vmul.f32 %v1851, 1.442695
        %v1854 = vpow.pop %v1853
        %v1855 = vmul.f32 %v1852, 1.442695
        %v1856 = vpow.pop %v1855
        %v1857 = vadd.f32 %v1854, 1.0
        %v1858 = vadd.f32 %v1856, 1.0
        %v1859 = vrcp.pop %v1857
        %v1860 = vmul.f32 %v1857, %v1859
        %v1861 = vsub.f32 1.0, %v1860
        %v1862 = vmul.f32 %v1859, %v1861
        %v1863 = vadd.f32 %v1859, %v1862
        %vm1864 = vweird.f32 %v1857
        %vm1865 = vweird.f32 %v1859
        %vm1866 = vmor %vm1864, %vm1865
        %v1867 = vsel %vm1866, %v1859, %v1863
        %v1868 = vand.u32 2147483647, %v1857
        %vm1869 = vcmp.eq.f32.partialorder %v1868, 8.507059e+37
        %v1870 = vand.u32 %v1857, 2147483648
        %v1871 = vor.u32 1.1754944e-38, %v1870
        %v1872 = vsel %vm1869, %v1871, %v1867
        %v1873 = vmul.f32 1.0, %v1872
        %v1874 = vrcp.pop %v1858
        %v1875 = vmul.f32 %v1858, %v1874
        %v1876 = vsub.f32 1.0, %v1875
        %v1877 = vmul.f32 %v1874, %v1876
        %v1878 = vadd.f32 %v1874, %v1877
        %vm1879 = vweird.f32 %v1858
        %vm1880 = vweird.f32 %v1874
        %vm1881 = vmor %vm1879, %vm1880
        %v1882 = vsel %vm1881, %v1874, %v1878
        %v1883 = vand.u32 2147483647, %v1858
        %vm1884 = vcmp.eq.f32.partialorder %v1883, 8.507059e+37
        %v1885 = vand.u32 %v1858, 2147483648
        %v1886 = vor.u32 1.1754944e-38, %v1885
        %v1887 = vsel %vm1884, %v1886, %v1882
        %v1888 = vmul.f32 1.0, %v1887
        %v1891 = vrot.slane %v1849, 4
        %v1892 = vrot.slane %v1850, 3
        %v1893 = vsel %vm643, %v1892, %v1891
        %v1897 = vrot.slane %v1873, 4
        %v1898 = vrot.slane %v1888, 3
        %v1899 = vsel %vm643, %v1898, %v1897
        %v1901 = vsel %vm567, %v1893, %v1899
        %v1902 = vmul.f32 %v1901, %v1800
        %1904 = vrot.lane.b32.xlu0 %v1901, 64
        %v1905 = vpop.permute.xlu0 %1904
        %v1907 = vmul.f32 %v1901, %v1905
        %1909 = vrot.lane.b32.xlu0 %v1907, 32
        %v1910 = vpop.permute.xlu0 %1909
        %v1912 = vadd.f32 %v1902, %v1910
        %v1913 = vtanh.pop %v1912
        %1915 = vrot.lane.b32.xlu0 %v1913, 64
        %v1916 = vpop.permute.xlu0 %1915
        %v1918 = vmul.f32 %v1901, %v1916
        %1920 = vrot.lane.b32.xlu0 %v1918, 32
        %v1921 = vpop.permute.xlu0 %1920
        %1923 = vrot.lane.b32.xlu0 %v975, 64
        %v1924 = vpop.permute.xlu0 %1923
        %v1926 = vsel %vm568, %v1921, %v1924
        %v1928 = vrot.slane %v1926, 1
        %1930 = vst.msk [vmem:[%s312 + $0x4] sm:$0x1] %vm1484, %v1926
        %1931 = vst.msk [vmem:[%s312 + $0xc] sm:$0x1] %vm1484, %v1928
        %v1932 = vsel %vm568, %v1921, 0
        %1934 = vmatpush.msra.mxu0 0.0
        %1935 = vmatpush.msra.mxu0 0.0
        %1936 = vmatpush.msra.mxu0 0.0
        %1937 = vmatpush.msra.mxu0 0.0
        %1938 = vmatpush.msra.mxu0 0.0
        %1939 = vmatpush.msra.mxu0 0.0
        %1940 = vmatpush.msra.mxu0 0.0
        %1941 = vmatpush.msra.mxu0 0.0
        %1942 = vmatpush.msra.mxu0 0.0
        %1943 = vmatpush.msra.mxu0 0.0
        %1944 = vmatpush.msra.mxu0 0.0
        %1945 = vmatpush.msra.mxu0 0.0
        %1946 = vmatpush.msra.mxu0 %v558
        %1947 = vmatpush.msra.mxu0 %v557
        %1948 = vmatpush.msra.mxu0 %v556
        %1949 = vmatpush.msra.mxu0 %v555
        %1950 = vmatmul.f32.gmra.mxu0 %v1932
        %v1951 = vpop.f32.mrf.mxu0
        %v1952 = vadd.f32 0.0, %v1951
        %1953 = vdwg.mxu0
        %v1955 = vrot.slane %v1952, 3
        %v1956 = vrot.slane %v1952, 4
        %v1959 = vadd.f32 %v436, %v1955
        %v1960 = vadd.f32 %v439, %v1956
        %v1961 = vtanh.pop %v1959
        %v1962 = vtanh.pop %v1960
        %v1963 = vsub.f32 0.0, %v1959
        %v1964 = vsub.f32 0.0, %v1960
        %v1965 = vmul.f32 %v1963, 1.442695
        %v1966 = vpow.pop %v1965
        %v1967 = vmul.f32 %v1964, 1.442695
        %v1968 = vpow.pop %v1967
        %v1969 = vadd.f32 %v1966, 1.0
        %v1970 = vadd.f32 %v1968, 1.0
        %v1971 = vrcp.pop %v1969
        %v1972 = vmul.f32 %v1969, %v1971
        %v1973 = vsub.f32 1.0, %v1972
        %v1974 = vmul.f32 %v1971, %v1973
        %v1975 = vadd.f32 %v1971, %v1974
        %vm1976 = vweird.f32 %v1969
        %vm1977 = vweird.f32 %v1971
        %vm1978 = vmor %vm1976, %vm1977
        %v1979 = vsel %vm1978, %v1971, %v1975
        %v1980 = vand.u32 2147483647, %v1969
        %vm1981 = vcmp.eq.f32.partialorder %v1980, 8.507059e+37
        %v1982 = vand.u32 %v1969, 2147483648
        %v1983 = vor.u32 1.1754944e-38, %v1982
        %v1984 = vsel %vm1981, %v1983, %v1979
        %v1985 = vmul.f32 1.0, %v1984
        %v1986 = vrcp.pop %v1970
        %v1987 = vmul.f32 %v1970, %v1986
        %v1988 = vsub.f32 1.0, %v1987
        %v1989 = vmul.f32 %v1986, %v1988
        %v1990 = vadd.f32 %v1986, %v1989
        %vm1991 = vweird.f32 %v1970
        %vm1992 = vweird.f32 %v1986
        %vm1993 = vmor %vm1991, %vm1992
        %v1994 = vsel %vm1993, %v1986, %v1990
        %v1995 = vand.u32 2147483647, %v1970
        %vm1996 = vcmp.eq.f32.partialorder %v1995, 8.507059e+37
        %v1997 = vand.u32 %v1970, 2147483648
        %v1998 = vor.u32 1.1754944e-38, %v1997
        %v1999 = vsel %vm1996, %v1998, %v1994
        %v2000 = vmul.f32 1.0, %v1999
        %v2003 = vrot.slane %v1961, 5
        %v2004 = vrot.slane %v1962, 4
        %v2005 = vsel %vm643, %v2004, %v2003
        %v2009 = vrot.slane %v1985, 5
        %v2010 = vrot.slane %v2000, 4
        %v2011 = vsel %vm643, %v2010, %v2009
        %v2013 = vsel %vm567, %v2005, %v2011
        %v2014 = vmul.f32 %v2013, %v1912
        %2016 = vrot.lane.b32.xlu0 %v2013, 64
        %v2017 = vpop.permute.xlu0 %2016
        %v2019 = vmul.f32 %v2013, %v2017
        %2021 = vrot.lane.b32.xlu0 %v2019, 32
        %v2022 = vpop.permute.xlu0 %2021
        %v2024 = vadd.f32 %v2014, %v2022
        %v2025 = vtanh.pop %v2024
        %2027 = vrot.lane.b32.xlu0 %v2025, 64
        %v2028 = vpop.permute.xlu0 %2027
        %v2030 = vmul.f32 %v2013, %v2028
        %2032 = vrot.lane.b32.xlu0 %v2030, 32
        %v2033 = vpop.permute.xlu0 %2032
        %2035 = vrot.lane.b32.xlu0 %v873, 64
        %v2036 = vpop.permute.xlu0 %2035
        %v2038 = vsel %vm568, %v2033, %v2036
        %v2040 = vrot.slane %v2038, 1
        %2042 = vst.msk [vmem:[%s312 + $0x5] sm:$0x1] %vm1484, %v2038
        %2043 = vst.msk [vmem:[%s312 + $0xd] sm:$0x1] %vm1484, %v2040
        %v2044 = vsel %vm568, %v2033, 0
        %2046 = vmatpush.msra.mxu0 0.0
        %2047 = vmatpush.msra.mxu0 0.0
        %2048 = vmatpush.msra.mxu0 0.0
        %2049 = vmatpush.msra.mxu0 0.0
        %2050 = vmatpush.msra.mxu0 0.0
        %2051 = vmatpush.msra.mxu0 0.0
        %2052 = vmatpush.msra.mxu0 0.0
        %2053 = vmatpush.msra.mxu0 0.0
        %2054 = vmatpush.msra.mxu0 0.0
        %2055 = vmatpush.msra.mxu0 0.0
        %2056 = vmatpush.msra.mxu0 0.0
        %2057 = vmatpush.msra.mxu0 0.0
        %2058 = vmatpush.msra.mxu0 %v558
        %2059 = vmatpush.msra.mxu0 %v557
        %2060 = vmatpush.msra.mxu0 %v556
        %2061 = vmatpush.msra.mxu0 %v555
        %2062 = vmatmul.f32.gmra.mxu0 %v2044
        %v2063 = vpop.f32.mrf.mxu0
        %v2064 = vadd.f32 0.0, %v2063
        %2065 = vdwg.mxu0
        %v2067 = vrot.slane %v2064, 2
        %v2068 = vrot.slane %v2064, 3
        %v2071 = vadd.f32 %v436, %v2067
        %v2072 = vadd.f32 %v439, %v2068
        %v2073 = vtanh.pop %v2071
        %v2074 = vtanh.pop %v2072
        %v2075 = vsub.f32 0.0, %v2071
        %v2076 = vsub.f32 0.0, %v2072
        %v2077 = vmul.f32 %v2075, 1.442695
        %v2078 = vpow.pop %v2077
        %v2079 = vmul.f32 %v2076, 1.442695
        %v2080 = vpow.pop %v2079
        %v2081 = vadd.f32 %v2078, 1.0
        %v2082 = vadd.f32 %v2080, 1.0
        %v2083 = vrcp.pop %v2081
        %v2084 = vmul.f32 %v2081, %v2083
        %v2085 = vsub.f32 1.0, %v2084
        %v2086 = vmul.f32 %v2083, %v2085
        %v2087 = vadd.f32 %v2083, %v2086
        %vm2088 = vweird.f32 %v2081
        %vm2089 = vweird.f32 %v2083
        %vm2090 = vmor %vm2088, %vm2089
        %v2091 = vsel %vm2090, %v2083, %v2087
        %v2092 = vand.u32 2147483647, %v2081
        %vm2093 = vcmp.eq.f32.partialorder %v2092, 8.507059e+37
        %v2094 = vand.u32 %v2081, 2147483648
        %v2095 = vor.u32 1.1754944e-38, %v2094
        %v2096 = vsel %vm2093, %v2095, %v2091
        %v2097 = vmul.f32 1.0, %v2096
        %v2098 = vrcp.pop %v2082
        %v2099 = vmul.f32 %v2082, %v2098
        %v2100 = vsub.f32 1.0, %v2099
        %v2101 = vmul.f32 %v2098, %v2100
        %v2102 = vadd.f32 %v2098, %v2101
        %vm2103 = vweird.f32 %v2082
        %vm2104 = vweird.f32 %v2098
        %vm2105 = vmor %vm2103, %vm2104
        %v2106 = vsel %vm2105, %v2098, %v2102
        %v2107 = vand.u32 2147483647, %v2082
        %vm2108 = vcmp.eq.f32.partialorder %v2107, 8.507059e+37
        %v2109 = vand.u32 %v2082, 2147483648
        %v2110 = vor.u32 1.1754944e-38, %v2109
        %v2111 = vsel %vm2108, %v2110, %v2106
        %v2112 = vmul.f32 1.0, %v2111
        %v2115 = vrot.slane %v2073, 6
        %v2116 = vrot.slane %v2074, 5
        %v2117 = vsel %vm643, %v2116, %v2115
        %v2121 = vrot.slane %v2097, 6
        %v2122 = vrot.slane %v2112, 5
        %v2123 = vsel %vm643, %v2122, %v2121
        %v2125 = vsel %vm567, %v2117, %v2123
        %v2126 = vmul.f32 %v2125, %v2024
        %2128 = vrot.lane.b32.xlu0 %v2125, 64
        %v2129 = vpop.permute.xlu0 %2128
        %v2131 = vmul.f32 %v2125, %v2129
        %2133 = vrot.lane.b32.xlu0 %v2131, 32
        %v2134 = vpop.permute.xlu0 %2133
        %v2136 = vadd.f32 %v2126, %v2134
        %v2137 = vtanh.pop %v2136
        %2139 = vrot.lane.b32.xlu0 %v2137, 64
        %v2140 = vpop.permute.xlu0 %2139
        %v2142 = vmul.f32 %v2125, %v2140
        %2144 = vrot.lane.b32.xlu0 %v2142, 32
        %v2145 = vpop.permute.xlu0 %2144
        %2147 = vrot.lane.b32.xlu0 %v771, 64
        %v2148 = vpop.permute.xlu0 %2147
        %v2150 = vsel %vm568, %v2145, %v2148
        %v2152 = vrot.slane %v2150, 1
        %2154 = vst.msk [vmem:[%s312 + $0x6] sm:$0x1] %vm1484, %v2150
        %2155 = vst.msk [vmem:[%s312 + $0xe] sm:$0x1] %vm1484, %v2152
        %v2156 = vsel %vm568, %v2145, 0
        %2158 = vmatpush.msra.mxu0 0.0
        %2159 = vmatpush.msra.mxu0 0.0
        %2160 = vmatpush.msra.mxu0 0.0
        %2161 = vmatpush.msra.mxu0 0.0
        %2162 = vmatpush.msra.mxu0 0.0
        %2163 = vmatpush.msra.mxu0 0.0
        %2164 = vmatpush.msra.mxu0 0.0
        %2165 = vmatpush.msra.mxu0 0.0
        %2166 = vmatpush.msra.mxu0 0.0
        %2167 = vmatpush.msra.mxu0 0.0
        %2168 = vmatpush.msra.mxu0 0.0
        %2169 = vmatpush.msra.mxu0 0.0
        %2170 = vmatpush.msra.mxu0 %v558
        %2171 = vmatpush.msra.mxu0 %v557
        %2172 = vmatpush.msra.mxu0 %v556
        %2173 = vmatpush.msra.mxu0 %v555
        %2174 = vmatmul.f32.gmra.mxu0 %v2156
        %v2175 = vpop.f32.mrf.mxu0
        %v2176 = vadd.f32 0.0, %v2175
        %2177 = vdwg.mxu0
        %v2179 = vrot.slane %v2176, 1
        %v2180 = vrot.slane %v2176, 2
        %v2183 = vadd.f32 %v436, %v2179
        %v2184 = vadd.f32 %v439, %v2180
        %v2185 = vtanh.pop %v2183
        %v2186 = vtanh.pop %v2184
        %v2187 = vsub.f32 0.0, %v2183
        %v2188 = vsub.f32 0.0, %v2184
        %v2189 = vmul.f32 %v2187, 1.442695
        %v2190 = vpow.pop %v2189
        %v2191 = vmul.f32 %v2188, 1.442695
        %v2192 = vpow.pop %v2191
        %v2193 = vadd.f32 %v2190, 1.0
        %v2194 = vadd.f32 %v2192, 1.0
        %v2195 = vrcp.pop %v2193
        %v2196 = vmul.f32 %v2193, %v2195
        %v2197 = vsub.f32 1.0, %v2196
        %v2198 = vmul.f32 %v2195, %v2197
        %v2199 = vadd.f32 %v2195, %v2198
        %vm2200 = vweird.f32 %v2193
        %vm2201 = vweird.f32 %v2195
        %vm2202 = vmor %vm2200, %vm2201
        %v2203 = vsel %vm2202, %v2195, %v2199
        %v2204 = vand.u32 2147483647, %v2193
        %vm2205 = vcmp.eq.f32.partialorder %v2204, 8.507059e+37
        %v2206 = vand.u32 %v2193, 2147483648
        %v2207 = vor.u32 1.1754944e-38, %v2206
        %v2208 = vsel %vm2205, %v2207, %v2203
        %v2209 = vmul.f32 1.0, %v2208
        %v2210 = vrcp.pop %v2194
        %v2211 = vmul.f32 %v2194, %v2210
        %v2212 = vsub.f32 1.0, %v2211
        %v2213 = vmul.f32 %v2210, %v2212
        %v2214 = vadd.f32 %v2210, %v2213
        %vm2215 = vweird.f32 %v2194
        %vm2216 = vweird.f32 %v2210
        %vm2217 = vmor %vm2215, %vm2216
        %v2218 = vsel %vm2217, %v2210, %v2214
        %v2219 = vand.u32 2147483647, %v2194
        %vm2220 = vcmp.eq.f32.partialorder %v2219, 8.507059e+37
        %v2221 = vand.u32 %v2194, 2147483648
        %v2222 = vor.u32 1.1754944e-38, %v2221
        %v2223 = vsel %vm2220, %v2222, %v2218
        %v2224 = vmul.f32 1.0, %v2223
        %v2227 = vrot.slane %v2185, 7
        %v2228 = vrot.slane %v2186, 6
        %v2229 = vsel %vm643, %v2228, %v2227
        %v2233 = vrot.slane %v2209, 7
        %v2234 = vrot.slane %v2224, 6
        %v2235 = vsel %vm643, %v2234, %v2233
        %v2237 = vsel %vm567, %v2229, %v2235
        %v2238 = vmul.f32 %v2237, %v2136
        %2240 = vrot.lane.b32.xlu0 %v2237, 64
        %v2241 = vpop.permute.xlu0 %2240
        %v2243 = vmul.f32 %v2237, %v2241
        %2245 = vrot.lane.b32.xlu0 %v2243, 32
        %v2246 = vpop.permute.xlu0 %2245
        %v2248 = vadd.f32 %v2238, %v2246
        %v2249 = vtanh.pop %v2248
        %2251 = vrot.lane.b32.xlu0 %v2249, 64
        %v2252 = vpop.permute.xlu0 %2251
        %v2254 = vmul.f32 %v2237, %v2252
        %2256 = vrot.lane.b32.xlu0 %v2254, 32
        %v2257 = vpop.permute.xlu0 %2256
        %2259 = vrot.lane.b32.xlu0 %v669, 64
        %v2260 = vpop.permute.xlu0 %2259
        %v2262 = vsel %vm568, %v2257, %v2260
        %v2264 = vrot.slane %v2262, 1
        %2266 = vst.msk [vmem:[%s312 + $0x7] sm:$0x1] %vm1484, %v2262
        %2267 = vst.msk [vmem:[%s312 + $0xf] sm:$0x1] %vm1484, %v2264
        %p2268 = scmp.lt.s32.totalorder %s20, 1
        %s2269 = scalar_select %p2268, %s20, 1
        %s2270 = smul.addr %s2269, 2
        %s2271 = smul.addr %s2270, 8
        %s2272 = scalar_lea.vmem %s7, %s2271
        // Predicated region
        $region57: #{_lambda_.2} parent=47 // pred_check
          %p2273 = pneg %p190
        $region58: #{_lambda_.2} parent=47 // pred_check_branch
          %2275 = sbr.rel (%p2273) target = $region60
        $region59: #{_lambda_.2} parent=47 // pred_region
          _
        $region60: #{_lambda_.2} parent=47 // pred_fallthru
          _
      $region48: #{_lambda_.2} parent=5 // pred_fallthru
        _
      %p2276 = scmp.le.s32.totalorder 2, %s15
      // Predicated region
      $region61: #{_lambda_.2} parent=5 // pred_check
        %p2277 = pneg %p2276
      $region62: #{_lambda_.2} parent=5 // pred_check_branch
        %2279 = sbr.rel (%p2277) target = $region64
      $region63: #{_lambda_.2} parent=5 // pred_region
        %s2280 = ssub.s32 %s15, 2
        // Predicated region
        $region65: #{_lambda_.2} parent=63 // pred_check
          %p2281 = pneg %p196
        $region66: #{_lambda_.2} parent=63 // pred_check_branch
          %2283 = sbr.rel (%p2281) target = $region68
        $region67: #{_lambda_.2} parent=63 // pred_region
          %p2284 = scmp.lt.s32.totalorder %s21, 1
          %s2285 = scalar_select %p2284, %s21, 1
          %s2286 = smul.addr %s2285, 2
          %s2287 = smul.addr %s2286, 8
          %s2288 = scalar_lea.vmem %s7, %s2287
        $region68: #{_lambda_.2} parent=63 // pred_fallthru
          _
      $region64: #{_lambda_.2} parent=5 // pred_fallthru
        _
    $region6: #{_lambda_.2} parent=1 // loop_footer
      %s19 = sadd.s32 1, %s15
    $region7: #{_lambda_.2} parent=1 // loop_footer_branch
      %14 = sbr.rel target = $region3
    $region8: #{_lambda_.2} parent=1 // loop_exit
      _
    %2289 = vsyncpa [#allocation3], 1
    %s2290 = scalar_lea.sflag [#allocation3], 1
    %2291 = vsyncpa %s2290, 1
    %2292 = vsyncpa [#allocation5], 1

// kernel: _lambda_.3
$region0: #{_lambda_.3}
  #allocation0 [shape = 'u32[]', space=smem, size = 0x4, offset = 0x4, fixed_abs, tag = 'smem constant byte address 0x4 - core index']
  #allocation1 [shape = 'u32[72,128]{1,0:T(1,128)}', space=vmem, size = 0x9000, scoped, tag = 'internal scratch']
  %s0 = inlined_call_operand.vmem [shape: f32[2,2,8,64], index: 0, kind: input, shape index: {}]
  %s1 = inlined_call_operand.vmem [shape: f32[2,2,8], index: 1, kind: input, shape index: {}]
  %s2 = inlined_call_operand.vmem [shape: f32[256,128], index: 2, kind: input, shape index: {}]
  %s3 = inlined_call_operand.vmem [shape: f32[32,128], index: 3, kind: input, shape index: {}]
  %s4 = inlined_call_operand.vmem [shape: f32[1,128], index: 4, kind: input, shape index: {}]
  %s5 = inlined_call_operand.vmem [shape: f32[1,128], index: 5, kind: input, shape index: {}]
  %s6 = inlined_call_operand.vmem [shape: f32[1,128], index: 6, kind: input, shape index: {}]
  %s7 = inlined_call_operand.vmem [shape: f32[128,64], index: 7, kind: input, shape index: {}]
  %s8 = inlined_call_operand.vmem [shape: f32[1,64], index: 8, kind: input, shape index: {}]
  %s9 = inlined_call_operand.vmem [shape: f32[1,64], index: 9, kind: input, shape index: {}, may-alias: {9,13}]
  %s10 = inlined_call_operand.vmem [shape: f32[1,64], index: 10, kind: input, shape index: {}, may-alias: {10,14}]
  %s11 = inlined_call_operand.vmem [shape: f32[64,64], index: 11, kind: input, shape index: {}]
  %s12 = inlined_call_operand.vmem [shape: f32[1,64], index: 12, kind: input, shape index: {}]
  %s13 = inlined_call_operand.vmem [shape: f32[1,64], index: 13, kind: input, shape index: {}, may-alias: {9,13}]
  %s14 = inlined_call_operand.vmem [shape: f32[1,64], index: 14, kind: input, shape index: {}, may-alias: {10,14}]
  %s15 = inlined_call_operand.hbm [shape: f32[64,2], index: 15, kind: input, shape index: {}]
  %s16 = inlined_call_operand.vmem [shape: f32[1,2], index: 16, kind: input, shape index: {}]
  %s17 = inlined_call_operand.hbm [shape: f32[2,2], index: 17, kind: output, shape index: {}]
  %s18 = sld [smem:[#allocation0]]
  $region82: #{_lambda_.3} parent=0
    _
  %s20 = ssub.s32 1, %s18
  %s21 = scalar_select 0, %s20, %s18
  $region1: #{_lambda_.3} parent=0
    #allocation2 [shape = 'u8[32768]{0}', space=vmem, size = 0x8000, scoped, tag = 'input window, operand 15, single buffered']
    #allocation3 [shape = 's32[1]{0}', space=sflag, size = 0x4, scoped, tag = 'scoped memory for _lambda_.3']
    #allocation4 [shape = 's32[1]{0}', space=sflag, size = 0x4, scoped, tag = 'scoped memory for _lambda_.3']
    #allocation5 [shape = 'u8[1024]{0}', space=vmem, size = 0x400, scoped, tag = 'output window, operand 0, single buffered']
    %22 = vsyncpa [#allocation3], 0
    %23 = vsyncpa [#allocation4], 0
    // Predicated region
    $region2: #{_lambda_.3} parent=1 // pred_check
      _
    $region3: #{_lambda_.3} parent=1 // pred_check_branch
      %25 = sbr.rel (0) target = $region5
    $region4: #{_lambda_.3} parent=1 // pred_region
      _
    $region5: #{_lambda_.3} parent=1 // pred_fallthru
      _
    // Predicated region
    $region6: #{_lambda_.3} parent=1 // pred_check
      _
    $region7: #{_lambda_.3} parent=1 // pred_check_branch
      %27 = sbr.rel (0) target = $region9
    $region8: #{_lambda_.3} parent=1 // pred_region
      _
    $region9: #{_lambda_.3} parent=1 // pred_fallthru
      _
    // Predicated region
    $region10: #{_lambda_.3} parent=1 // pred_check
      _
    $region11: #{_lambda_.3} parent=1 // pred_check_branch
      %29 = sbr.rel (0) target = $region13
    $region12: #{_lambda_.3} parent=1 // pred_region
      _
    $region13: #{_lambda_.3} parent=1 // pred_fallthru
      _
    // Predicated region
    $region14: #{_lambda_.3} parent=1 // pred_check
      _
    $region15: #{_lambda_.3} parent=1 // pred_check_branch
      %31 = sbr.rel (0) target = $region17
    $region16: #{_lambda_.3} parent=1 // pred_region
      _
    $region17: #{_lambda_.3} parent=1 // pred_fallthru
      _
    // Predicated region
    $region18: #{_lambda_.3} parent=1 // pred_check
      _
    $region19: #{_lambda_.3} parent=1 // pred_check_branch
      %33 = sbr.rel (0) target = $region21
    $region20: #{_lambda_.3} parent=1 // pred_region
      _
    $region21: #{_lambda_.3} parent=1 // pred_fallthru
      _
    // Predicated region
    $region22: #{_lambda_.3} parent=1 // pred_check
      _
    $region23: #{_lambda_.3} parent=1 // pred_check_branch
      %35 = sbr.rel (0) target = $region25
    $region24: #{_lambda_.3} parent=1 // pred_region
      _
    $region25: #{_lambda_.3} parent=1 // pred_fallthru
      _
    // Predicated region
    $region26: #{_lambda_.3} parent=1 // pred_check
      _
    $region27: #{_lambda_.3} parent=1 // pred_check_branch
      %37 = sbr.rel (0) target = $region29
    $region28: #{_lambda_.3} parent=1 // pred_region
      _
    $region29: #{_lambda_.3} parent=1 // pred_fallthru
      _
    // Predicated region
    $region30: #{_lambda_.3} parent=1 // pred_check
      _
    $region31: #{_lambda_.3} parent=1 // pred_check_branch
      %39 = sbr.rel (0) target = $region33
    $region32: #{_lambda_.3} parent=1 // pred_region
      _
    $region33: #{_lambda_.3} parent=1 // pred_fallthru
      _
    // Predicated region
    $region34: #{_lambda_.3} parent=1 // pred_check
      _
    $region35: #{_lambda_.3} parent=1 // pred_check_branch
      %41 = sbr.rel (0) target = $region37
    $region36: #{_lambda_.3} parent=1 // pred_region
      _
    $region37: #{_lambda_.3} parent=1 // pred_fallthru
      _
    // Predicated region
    $region38: #{_lambda_.3} parent=1 // pred_check
      _
    $region39: #{_lambda_.3} parent=1 // pred_check_branch
      %43 = sbr.rel (0) target = $region41
    $region40: #{_lambda_.3} parent=1 // pred_region
      _
    $region41: #{_lambda_.3} parent=1 // pred_fallthru
      _
    // Predicated region
    $region42: #{_lambda_.3} parent=1 // pred_check
      _
    $region43: #{_lambda_.3} parent=1 // pred_check_branch
      %45 = sbr.rel (0) target = $region45
    $region44: #{_lambda_.3} parent=1 // pred_region
      _
    $region45: #{_lambda_.3} parent=1 // pred_fallthru
      _
    // Predicated region
    $region46: #{_lambda_.3} parent=1 // pred_check
      _
    $region47: #{_lambda_.3} parent=1 // pred_check_branch
      %47 = sbr.rel (0) target = $region49
    $region48: #{_lambda_.3} parent=1 // pred_region
      _
    $region49: #{_lambda_.3} parent=1 // pred_fallthru
      _
    // Predicated region
    $region50: #{_lambda_.3} parent=1 // pred_check
      _
    $region51: #{_lambda_.3} parent=1 // pred_check_branch
      %49 = sbr.rel (0) target = $region53
    $region52: #{_lambda_.3} parent=1 // pred_region
      _
    $region53: #{_lambda_.3} parent=1 // pred_fallthru
      _
    // Predicated region
    $region54: #{_lambda_.3} parent=1 // pred_check
      _
    $region55: #{_lambda_.3} parent=1 // pred_check_branch
      %51 = sbr.rel (0) target = $region57
    $region56: #{_lambda_.3} parent=1 // pred_region
      _
    $region57: #{_lambda_.3} parent=1 // pred_fallthru
      _
    // Predicated region
    $region58: #{_lambda_.3} parent=1 // pred_check
      _
    $region59: #{_lambda_.3} parent=1 // pred_check_branch
      %53 = sbr.rel (0) target = $region61
    $region60: #{_lambda_.3} parent=1 // pred_region
      _
    $region61: #{_lambda_.3} parent=1 // pred_fallthru
      _
    // Predicated region
    $region62: #{_lambda_.3} parent=1 // pred_check
      _
    $region63: #{_lambda_.3} parent=1 // pred_check_branch
      %55 = sbr.rel (0) target = $region65
    $region64: #{_lambda_.3} parent=1 // pred_region
      %57 = vsyncadd [#allocation3], 0
      %s58 = sshll.u32 %s15, 4
      %s59 = int_to_ptr.hbm [resolvable:$true] %s58
      %s60 = sshll.u32 [#allocation2], 4
      %s61 = int_to_ptr.vmem [resolvable:$true] %s60
      %66 = dma.hbm_to_vmem [thread:$0]  %s59, 1024, %s61, [#allocation3], 128, 128, 8
    $region65: #{_lambda_.3} parent=1 // pred_fallthru
      _
    // Predicated region
    $region66: #{_lambda_.3} parent=1 // pred_check
      _
    $region67: #{_lambda_.3} parent=1 // pred_check_branch
      %68 = sbr.rel (0) target = $region69
    $region68: #{_lambda_.3} parent=1 // pred_region
      _
    $region69: #{_lambda_.3} parent=1 // pred_fallthru
      _
    // Predicated region
    $region70: #{_lambda_.3} parent=1 // pred_check
      _
    $region71: #{_lambda_.3} parent=1 // pred_check_branch
      %70 = sbr.rel (0) target = $region73
    $region72: #{_lambda_.3} parent=1 // pred_region
      %72 = dma.done [#allocation3], 1024
    $region73: #{_lambda_.3} parent=1 // pred_fallthru
      _
    %v73 = vld [vmem:[%s0] sm:$0xff]
    %v74 = vld [vmem:[%s0 + $0x8] sm:$0xff]
    %s75 = scalar_lea.vmem %s0, 16
    %v76 = vld [vmem:[%s75] sm:$0xff]
    %v77 = vld [vmem:[%s75 + $0x8] sm:$0xff]
    %v78 = vld [vmem:[%s1] sm:$0x3]
    %s79 = scalar_lea.vmem %s1, 2
    %v80 = vld [vmem:[%s79] sm:$0x3]
    %v82 = vrot.slane %v78, 1
    %v83 = vperm.slane %v78, 0
    %v84 = vperm.slane %v82, 0
    %vm87 = vcmask 523264
    %v89 = vsel %vm87, %v76, 0
    %v92 = vsel %vm87, %v73, 0
    %94 = vmatpush.xpose.msra.mxu0 0.0
    %95 = vmatpush.xpose.msra.mxu0 0.0
    %96 = vmatpush.xpose.msra.mxu0 0.0
    %97 = vmatpush.xpose.msra.mxu0 0.0
    %98 = vmatpush.xpose.msra.mxu0 0.0
    %99 = vmatpush.xpose.msra.mxu0 0.0
    %100 = vmatpush.xpose.msra.mxu0 0.0
    %101 = vmatpush.xpose.msra.mxu0 0.0
    %102 = vmatpush.xpose.msra.mxu0 0.0
    %103 = vmatpush.xpose.msra.mxu0 0.0
    %104 = vmatpush.xpose.msra.mxu0 0.0
    %105 = vmatpush.xpose.msra.mxu0 0.0
    %106 = vmatpush.xpose.msra.mxu0 0.0
    %107 = vmatpush.xpose.msra.mxu0 0.0
    %108 = vmatpush.xpose.msra.mxu0 0.0
    %109 = vmatpush.xpose.msra.mxu0 %v92
    %110 = vmatmul.f32.gmra.mxu0 %v89
    %v111 = vpop.f32.mrf.mxu0
    %v112 = vadd.f32 %v83, %v111
    %113 = vdwg.mxu0
    %v115 = vsel %vm87, %v77, 0
    %v118 = vsel %vm87, %v74, 0
    %120 = vmatpush.xpose.msra.mxu0 0.0
    %121 = vmatpush.xpose.msra.mxu0 0.0
    %122 = vmatpush.xpose.msra.mxu0 0.0
    %123 = vmatpush.xpose.msra.mxu0 0.0
    %124 = vmatpush.xpose.msra.mxu0 0.0
    %125 = vmatpush.xpose.msra.mxu0 0.0
    %126 = vmatpush.xpose.msra.mxu0 0.0
    %127 = vmatpush.xpose.msra.mxu0 0.0
    %128 = vmatpush.xpose.msra.mxu0 0.0
    %129 = vmatpush.xpose.msra.mxu0 0.0
    %130 = vmatpush.xpose.msra.mxu0 0.0
    %131 = vmatpush.xpose.msra.mxu0 0.0
    %132 = vmatpush.xpose.msra.mxu0 0.0
    %133 = vmatpush.xpose.msra.mxu0 0.0
    %134 = vmatpush.xpose.msra.mxu0 0.0
    %135 = vmatpush.xpose.msra.mxu0 %v118
    %136 = vmatmul.f32.gmra.mxu0 %v115
    %v137 = vpop.f32.mrf.mxu0
    %v138 = vadd.f32 %v84, %v137
    %139 = vdwg.mxu0
    %vm140 = vcmask 64512
    %v141 = vsel %vm140, %v112, -inf
    %142 = vmax.xlane.f32.xlu0 %v141
    %v143 = vpop.xlane.xlu0 %142
    %v144 = vsel %vm140, %v138, -inf
    %145 = vmax.xlane.f32.xlu0 %v144
    %v146 = vpop.xlane.xlu0 %145
    %v147 = vsub.f32 %v112, %v143
    %v148 = vsub.f32 %v138, %v146
    %v149 = vmul.f32 %v147, 1.442695
    %v150 = vpow.pop %v149
    %v151 = vmul.f32 %v148, 1.442695
    %v152 = vpow.pop %v151
    %v153 = vsel %vm140, %v150, 0.0
    %154 = vadd.xlane.f32.xlu0 %v153
    %v155 = vpop.xlane.xlu0 %154
    %v156 = vsel %vm140, %v152, 0.0
    %157 = vadd.xlane.f32.xlu0 %v156
    %v158 = vpop.xlane.xlu0 %157
    %v159 = vrcp.pop %v155
    %v160 = vmul.f32 %v155, %v159
    %v161 = vsub.f32 1.0, %v160
    %v162 = vmul.f32 %v159, %v161
    %v163 = vadd.f32 %v159, %v162
    %vm164 = vweird.f32 %v155
    %vm165 = vweird.f32 %v159
    %vm166 = vmor %vm164, %vm165
    %v167 = vsel %vm166, %v159, %v163
    %v168 = vand.u32 2147483647, %v155
    %vm169 = vcmp.eq.f32.partialorder %v168, 8.507059e+37
    %v170 = vand.u32 %v155, 2147483648
    %v171 = vor.u32 1.1754944e-38, %v170
    %v172 = vsel %vm169, %v171, %v167
    %v173 = vrcp.pop %v158
    %v174 = vmul.f32 %v158, %v173
    %v175 = vsub.f32 1.0, %v174
    %v176 = vmul.f32 %v173, %v175
    %v177 = vadd.f32 %v173, %v176
    %vm178 = vweird.f32 %v158
    %vm179 = vweird.f32 %v173
    %vm180 = vmor %vm178, %vm179
    %v181 = vsel %vm180, %v173, %v177
    %v182 = vand.u32 2147483647, %v158
    %vm183 = vcmp.eq.f32.partialorder %v182, 8.507059e+37
    %v184 = vand.u32 %v158, 2147483648
    %v185 = vor.u32 1.1754944e-38, %v184
    %v186 = vsel %vm183, %v185, %v181
    %v187 = vmul.f32 %v150, %v172
    %v188 = vmul.f32 %v152, %v186
    %v190 = vsel %vm140, %v187, 0
    %192 = vmatpush.msra.mxu0 0.0
    %193 = vmatpush.msra.mxu0 0.0
    %194 = vmatpush.msra.mxu0 0.0
    %195 = vmatpush.msra.mxu0 0.0
    %196 = vmatpush.msra.mxu0 0.0
    %197 = vmatpush.msra.mxu0 0.0
    %198 = vmatpush.msra.mxu0 0.0
    %199 = vmatpush.msra.mxu0 0.0
    %200 = vmatpush.msra.mxu0 0.0
    %201 = vmatpush.msra.mxu0 0.0
    %202 = vmatpush.msra.mxu0 0.0
    %203 = vmatpush.msra.mxu0 0.0
    %204 = vmatpush.msra.mxu0 0.0
    %205 = vmatpush.msra.mxu0 0.0
    %206 = vmatpush.msra.mxu0 0.0
    %207 = vmatpush.msra.mxu0 %v73
    %208 = vmatmul.f32.gmra.mxu0 %v190
    %v209 = vpop.f32.mrf.mxu0
    %v210 = vadd.f32 0.0, %v209
    %211 = vdwg.mxu0
    %v213 = vsel %vm140, %v188, 0
    %215 = vmatpush.msra.mxu0 0.0
    %216 = vmatpush.msra.mxu0 0.0
    %217 = vmatpush.msra.mxu0 0.0
    %218 = vmatpush.msra.mxu0 0.0
    %219 = vmatpush.msra.mxu0 0.0
    %220 = vmatpush.msra.mxu0 0.0
    %221 = vmatpush.msra.mxu0 0.0
    %222 = vmatpush.msra.mxu0 0.0
    %223 = vmatpush.msra.mxu0 0.0
    %224 = vmatpush.msra.mxu0 0.0
    %225 = vmatpush.msra.mxu0 0.0
    %226 = vmatpush.msra.mxu0 0.0
    %227 = vmatpush.msra.mxu0 0.0
    %228 = vmatpush.msra.mxu0 0.0
    %229 = vmatpush.msra.mxu0 0.0
    %230 = vmatpush.msra.mxu0 %v74
    %231 = vmatmul.f32.gmra.mxu0 %v213
    %v232 = vpop.f32.mrf.mxu0
    %v233 = vadd.f32 0.0, %v232
    %234 = vdwg.mxu0
    %v236 = vrot.slane %v80, 1
    %v237 = vperm.slane %v80, 0
    %v238 = vperm.slane %v236, 0
    %241 = vmatpush.xpose.msra.mxu0 0.0
    %242 = vmatpush.xpose.msra.mxu0 0.0
    %243 = vmatpush.xpose.msra.mxu0 0.0
    %244 = vmatpush.xpose.msra.mxu0 0.0
    %245 = vmatpush.xpose.msra.mxu0 0.0
    %246 = vmatpush.xpose.msra.mxu0 0.0
    %247 = vmatpush.xpose.msra.mxu0 0.0
    %248 = vmatpush.xpose.msra.mxu0 0.0
    %249 = vmatpush.xpose.msra.mxu0 0.0
    %250 = vmatpush.xpose.msra.mxu0 0.0
    %251 = vmatpush.xpose.msra.mxu0 0.0
    %252 = vmatpush.xpose.msra.mxu0 0.0
    %253 = vmatpush.xpose.msra.mxu0 0.0
    %254 = vmatpush.xpose.msra.mxu0 0.0
    %255 = vmatpush.xpose.msra.mxu0 0.0
    %256 = vmatpush.xpose.msra.mxu0 %v89
    %257 = vmatmul.f32.gmra.mxu0 %v92
    %v258 = vpop.f32.mrf.mxu0
    %v259 = vadd.f32 %v237, %v258
    %260 = vdwg.mxu0
    %261 = vmatpush.xpose.msra.mxu0 0.0
    %262 = vmatpush.xpose.msra.mxu0 0.0
    %263 = vmatpush.xpose.msra.mxu0 0.0
    %264 = vmatpush.xpose.msra.mxu0 0.0
    %265 = vmatpush.xpose.msra.mxu0 0.0
    %266 = vmatpush.xpose.msra.mxu0 0.0
    %267 = vmatpush.xpose.msra.mxu0 0.0
    %268 = vmatpush.xpose.msra.mxu0 0.0
    %269 = vmatpush.xpose.msra.mxu0 0.0
    %270 = vmatpush.xpose.msra.mxu0 0.0
    %271 = vmatpush.xpose.msra.mxu0 0.0
    %272 = vmatpush.xpose.msra.mxu0 0.0
    %273 = vmatpush.xpose.msra.mxu0 0.0
    %274 = vmatpush.xpose.msra.mxu0 0.0
    %275 = vmatpush.xpose.msra.mxu0 0.0
    %276 = vmatpush.xpose.msra.mxu0 %v115
    %277 = vmatmul.f32.gmra.mxu0 %v118
    %v278 = vpop.f32.mrf.mxu0
    %v279 = vadd.f32 %v238, %v278
    %280 = vdwg.mxu0
    %v281 = vsel %vm140, %v259, -inf
    %282 = vmax.xlane.f32.xlu0 %v281
    %v283 = vpop.xlane.xlu0 %282
    %v284 = vsel %vm140, %v279, -inf
    %285 = vmax.xlane.f32.xlu0 %v284
    %v286 = vpop.xlane.xlu0 %285
    %v287 = vsub.f32 %v259, %v283
    %v288 = vsub.f32 %v279, %v286
    %v289 = vmul.f32 %v287, 1.442695
    %v290 = vpow.pop %v289
    %v291 = vmul.f32 %v288, 1.442695
    %v292 = vpow.pop %v291
    %v293 = vsel %vm140, %v290, 0.0
    %294 = vadd.xlane.f32.xlu0 %v293
    %v295 = vpop.xlane.xlu0 %294
    %v296 = vsel %vm140, %v292, 0.0
    %297 = vadd.xlane.f32.xlu0 %v296
    %v298 = vpop.xlane.xlu0 %297
    %v299 = vrcp.pop %v295
    %v300 = vmul.f32 %v295, %v299
    %v301 = vsub.f32 1.0, %v300
    %v302 = vmul.f32 %v299, %v301
    %v303 = vadd.f32 %v299, %v302
    %vm304 = vweird.f32 %v295
    %vm305 = vweird.f32 %v299
    %vm306 = vmor %vm304, %vm305
    %v307 = vsel %vm306, %v299, %v303
    %v308 = vand.u32 2147483647, %v295
    %vm309 = vcmp.eq.f32.partialorder %v308, 8.507059e+37
    %v310 = vand.u32 %v295, 2147483648
    %v311 = vor.u32 1.1754944e-38, %v310
    %v312 = vsel %vm309, %v311, %v307
    %v313 = vrcp.pop %v298
    %v314 = vmul.f32 %v298, %v313
    %v315 = vsub.f32 1.0, %v314
    %v316 = vmul.f32 %v313, %v315
    %v317 = vadd.f32 %v313, %v316
    %vm318 = vweird.f32 %v298
    %vm319 = vweird.f32 %v313
    %vm320 = vmor %vm318, %vm319
    %v321 = vsel %vm320, %v313, %v317
    %v322 = vand.u32 2147483647, %v298
    %vm323 = vcmp.eq.f32.partialorder %v322, 8.507059e+37
    %v324 = vand.u32 %v298, 2147483648
    %v325 = vor.u32 1.1754944e-38, %v324
    %v326 = vsel %vm323, %v325, %v321
    %v327 = vmul.f32 %v290, %v312
    %v328 = vmul.f32 %v292, %v326
    %v330 = vsel %vm140, %v327, 0
    %332 = vmatpush.msra.mxu0 0.0
    %333 = vmatpush.msra.mxu0 0.0
    %334 = vmatpush.msra.mxu0 0.0
    %335 = vmatpush.msra.mxu0 0.0
    %336 = vmatpush.msra.mxu0 0.0
    %337 = vmatpush.msra.mxu0 0.0
    %338 = vmatpush.msra.mxu0 0.0
    %339 = vmatpush.msra.mxu0 0.0
    %340 = vmatpush.msra.mxu0 0.0
    %341 = vmatpush.msra.mxu0 0.0
    %342 = vmatpush.msra.mxu0 0.0
    %343 = vmatpush.msra.mxu0 0.0
    %344 = vmatpush.msra.mxu0 0.0
    %345 = vmatpush.msra.mxu0 0.0
    %346 = vmatpush.msra.mxu0 0.0
    %347 = vmatpush.msra.mxu0 %v76
    %348 = vmatmul.f32.gmra.mxu0 %v330
    %v349 = vpop.f32.mrf.mxu0
    %v350 = vadd.f32 0.0, %v349
    %351 = vdwg.mxu0
    %v353 = vsel %vm140, %v328, 0
    %355 = vmatpush.msra.mxu0 0.0
    %356 = vmatpush.msra.mxu0 0.0
    %357 = vmatpush.msra.mxu0 0.0
    %358 = vmatpush.msra.mxu0 0.0
    %359 = vmatpush.msra.mxu0 0.0
    %360 = vmatpush.msra.mxu0 0.0
    %361 = vmatpush.msra.mxu0 0.0
    %362 = vmatpush.msra.mxu0 0.0
    %363 = vmatpush.msra.mxu0 0.0
    %364 = vmatpush.msra.mxu0 0.0
    %365 = vmatpush.msra.mxu0 0.0
    %366 = vmatpush.msra.mxu0 0.0
    %367 = vmatpush.msra.mxu0 0.0
    %368 = vmatpush.msra.mxu0 0.0
    %369 = vmatpush.msra.mxu0 0.0
    %370 = vmatpush.msra.mxu0 %v77
    %371 = vmatmul.f32.gmra.mxu0 %v353
    %v372 = vpop.f32.mrf.mxu0
    %v373 = vadd.f32 0.0, %v372
    %374 = vdwg.mxu0
    %v375 = vsub.f32 %v73, %v350
    %v376 = vsub.f32 %v74, %v373
    %v377 = vmul.f32 %v73, %v350
    %v378 = vmul.f32 %v74, %v373
    %381 = vrot.lane.b32.xlu0 %v350, 64
    %v382 = vpop.permute.xlu0 %381
    %383 = vrot.lane.b32.xlu0 %v373, 64
    %v384 = vpop.permute.xlu0 %383
    %389 = vrot.lane.b32.xlu0 %v377, 64
    %v390 = vpop.permute.xlu0 %389
    %391 = vrot.lane.b32.xlu0 %v378, 64
    %v392 = vpop.permute.xlu0 %391
    %v395 = vsel %vm87, %v73, %v382
    %v396 = vsel %vm87, %v74, %v384
    %v397 = vsel %vm87, %v375, %v390
    %v398 = vsel %vm87, %v376, %v392
    %v399 = vsub.f32 %v76, %v210
    %v400 = vsub.f32 %v77, %v233
    %v401 = vmul.f32 %v76, %v210
    %v402 = vmul.f32 %v77, %v233
    %405 = vrot.lane.b32.xlu0 %v210, 64
    %v406 = vpop.permute.xlu0 %405
    %407 = vrot.lane.b32.xlu0 %v233, 64
    %v408 = vpop.permute.xlu0 %407
    %413 = vrot.lane.b32.xlu0 %v401, 64
    %v414 = vpop.permute.xlu0 %413
    %415 = vrot.lane.b32.xlu0 %v402, 64
    %v416 = vpop.permute.xlu0 %415
    %v419 = vsel %vm87, %v76, %v406
    %v420 = vsel %vm87, %v77, %v408
    %v421 = vsel %vm87, %v399, %v414
    %v422 = vsel %vm87, %v400, %v416
    %v423 = vld [vmem:[%s2] sm:$0xff]
    %v424 = vld [vmem:[%s2 + $0x8] sm:$0xff]
    %v425 = vld [vmem:[%s2 + $0x10] sm:$0xff]
    %v426 = vld [vmem:[%s2 + $0x18] sm:$0xff]
    %v427 = vld [vmem:[%s2 + $0x20] sm:$0xff]
    %v428 = vld [vmem:[%s2 + $0x28] sm:$0xff]
    %v429 = vld [vmem:[%s2 + $0x30] sm:$0xff]
    %v430 = vld [vmem:[%s2 + $0x38] sm:$0xff]
    %v431 = vld [vmem:[%s2 + $0x40] sm:$0xff]
    %v432 = vld [vmem:[%s2 + $0x48] sm:$0xff]
    %v433 = vld [vmem:[%s2 + $0x50] sm:$0xff]
    %v434 = vld [vmem:[%s2 + $0x58] sm:$0xff]
    %v435 = vld [vmem:[%s2 + $0x60] sm:$0xff]
    %v436 = vld [vmem:[%s2 + $0x68] sm:$0xff]
    %v437 = vld [vmem:[%s2 + $0x70] sm:$0xff]
    %v438 = vld [vmem:[%s2 + $0x78] sm:$0xff]
    %v439 = vld [vmem:[%s2 + $0x80] sm:$0xff]
    %v440 = vld [vmem:[%s2 + $0x88] sm:$0xff]
    %v441 = vld [vmem:[%s2 + $0x90] sm:$0xff]
    %v442 = vld [vmem:[%s2 + $0x98] sm:$0xff]
    %v443 = vld [vmem:[%s2 + $0xa0] sm:$0xff]
    %v444 = vld [vmem:[%s2 + $0xa8] sm:$0xff]
    %v445 = vld [vmem:[%s2 + $0xb0] sm:$0xff]
    %v446 = vld [vmem:[%s2 + $0xb8] sm:$0xff]
    %v447 = vld [vmem:[%s2 + $0xc0] sm:$0xff]
    %v448 = vld [vmem:[%s2 + $0xc8] sm:$0xff]
    %v449 = vld [vmem:[%s2 + $0xd0] sm:$0xff]
    %v450 = vld [vmem:[%s2 + $0xd8] sm:$0xff]
    %v451 = vld [vmem:[%s2 + $0xe0] sm:$0xff]
    %v452 = vld [vmem:[%s2 + $0xe8] sm:$0xff]
    %v453 = vld [vmem:[%s2 + $0xf0] sm:$0xff]
    %v454 = vld [vmem:[%s2 + $0xf8] sm:$0xff]
    %v455 = vld [vmem:[%s3] sm:$0xff]
    %v456 = vld [vmem:[%s3 + $0x8] sm:$0xff]
    %v457 = vld [vmem:[%s3 + $0x10] sm:$0xff]
    %v458 = vld [vmem:[%s3 + $0x18] sm:$0xff]
    %v459 = vld [vmem:[%s4] sm:$0x1]
    %v460 = vlaneseq
    %v461 = vand.u32 %v460, 127
    %vm462 = vcmp.ge.s32.totalorder %v461, 64
    %vm463 = vcmp.lt.s32.totalorder %v461, 96
    %vm464 = vmand %vm462, %vm463
    %v466 = vperm.slane %v459, 0
    %468 = vmatpush.msra.mxu0 %v438
    %469 = vmatpush.msra.mxu0 %v437
    %470 = vmatpush.msra.mxu0 %v436
    %471 = vmatpush.msra.mxu0 %v435
    %472 = vmatpush.msra.mxu0 %v434
    %473 = vmatpush.msra.mxu0 %v433
    %474 = vmatpush.msra.mxu0 %v432
    %475 = vmatpush.msra.mxu0 %v431
    %476 = vmatpush.msra.mxu0 %v430
    %477 = vmatpush.msra.mxu0 %v429
    %478 = vmatpush.msra.mxu0 %v428
    %479 = vmatpush.msra.mxu0 %v427
    %480 = vmatpush.msra.mxu0 %v426
    %481 = vmatpush.msra.mxu0 %v425
    %482 = vmatpush.msra.mxu0 %v424
    %483 = vmatpush.msra.mxu0 %v423
    %484 = vmatmul.f32.gmra.mxu0 %v395
    %v485 = vpop.f32.mrf.mxu0
    %v486 = vadd.f32 %v466, %v485
    %487 = vmatmul.f32.gmra.mxu0 %v396
    %v488 = vpop.f32.mrf.mxu0
    %v489 = vadd.f32 %v466, %v488
    %490 = vdwg.mxu0
    %491 = vmatpush.msra.mxu0 %v454
    %492 = vmatpush.msra.mxu0 %v453
    %493 = vmatpush.msra.mxu0 %v452
    %494 = vmatpush.msra.mxu0 %v451
    %495 = vmatpush.msra.mxu0 %v450
    %496 = vmatpush.msra.mxu0 %v449
    %497 = vmatpush.msra.mxu0 %v448
    %498 = vmatpush.msra.mxu0 %v447
    %499 = vmatpush.msra.mxu0 %v446
    %500 = vmatpush.msra.mxu0 %v445
    %501 = vmatpush.msra.mxu0 %v444
    %502 = vmatpush.msra.mxu0 %v443
    %503 = vmatpush.msra.mxu0 %v442
    %504 = vmatpush.msra.mxu0 %v441
    %505 = vmatpush.msra.mxu0 %v440
    %506 = vmatpush.msra.mxu0 %v439
    %507 = vmatmul.f32.gmra.mxu0 %v397
    %v508 = vpop.f32.mrf.mxu0
    %v509 = vadd.f32 %v486, %v508
    %510 = vmatmul.f32.gmra.mxu0 %v398
    %v511 = vpop.f32.mrf.mxu0
    %v512 = vadd.f32 %v489, %v511
    %513 = vdwg.mxu0
    %vm514 = vcmask 261120
    %v516 = vsel %vm514, 0.0, 0
    %518 = vmatpush.msra.mxu0 0.0
    %519 = vmatpush.msra.mxu0 0.0
    %520 = vmatpush.msra.mxu0 0.0
    %521 = vmatpush.msra.mxu0 0.0
    %522 = vmatpush.msra.mxu0 0.0
    %523 = vmatpush.msra.mxu0 0.0
    %524 = vmatpush.msra.mxu0 0.0
    %525 = vmatpush.msra.mxu0 0.0
    %526 = vmatpush.msra.mxu0 0.0
    %527 = vmatpush.msra.mxu0 0.0
    %528 = vmatpush.msra.mxu0 0.0
    %529 = vmatpush.msra.mxu0 0.0
    %530 = vmatpush.msra.mxu0 %v458
    %531 = vmatpush.msra.mxu0 %v457
    %532 = vmatpush.msra.mxu0 %v456
    %533 = vmatpush.msra.mxu0 %v455
    %534 = vmatmul.f32.gmra.mxu0 %v516
    %v535 = vpop.f32.mrf.mxu0
    %v536 = vadd.f32 0.0, %v535
    %537 = vdwg.mxu0
    %v539 = vrot.slane %v536, 1
    %v542 = vadd.f32 %v509, %v536
    %v543 = vadd.f32 %v512, %v539
    %v544 = vtanh.pop %v542
    %v545 = vtanh.pop %v543
    %v546 = vsub.f32 0.0, %v542
    %v547 = vsub.f32 0.0, %v543
    %v548 = vmul.f32 %v546, 1.442695
    %v549 = vpow.pop %v548
    %v550 = vmul.f32 %v547, 1.442695
    %v551 = vpow.pop %v550
    %v552 = vadd.f32 %v549, 1.0
    %v553 = vadd.f32 %v551, 1.0
    %v554 = vrcp.pop %v552
    %v555 = vmul.f32 %v552, %v554
    %v556 = vsub.f32 1.0, %v555
    %v557 = vmul.f32 %v554, %v556
    %v558 = vadd.f32 %v554, %v557
    %vm559 = vweird.f32 %v552
    %vm560 = vweird.f32 %v554
    %vm561 = vmor %vm559, %vm560
    %v562 = vsel %vm561, %v554, %v558
    %v563 = vand.u32 2147483647, %v552
    %vm564 = vcmp.eq.f32.partialorder %v563, 8.507059e+37
    %v565 = vand.u32 %v552, 2147483648
    %v566 = vor.u32 1.1754944e-38, %v565
    %v567 = vsel %vm564, %v566, %v562
    %v568 = vmul.f32 1.0, %v567
    %v569 = vrcp.pop %v553
    %v570 = vmul.f32 %v553, %v569
    %v571 = vsub.f32 1.0, %v570
    %v572 = vmul.f32 %v569, %v571
    %v573 = vadd.f32 %v569, %v572
    %vm574 = vweird.f32 %v553
    %vm575 = vweird.f32 %v569
    %vm576 = vmor %vm574, %vm575
    %v577 = vsel %vm576, %v569, %v573
    %v578 = vand.u32 2147483647, %v553
    %vm579 = vcmp.eq.f32.partialorder %v578, 8.507059e+37
    %v580 = vand.u32 %v553, 2147483648
    %v581 = vor.u32 1.1754944e-38, %v580
    %v582 = vsel %vm579, %v581, %v577
    %v583 = vmul.f32 1.0, %v582
    %v586 = vrot.slane %v545, 7
    %vm587 = vcmask 1041409
    %v588 = vsel %vm587, %v586, %v544
    %v592 = vrot.slane %v583, 7
    %v593 = vsel %vm587, %v592, %v568
    %v595 = vsel %vm464, %v588, %v593
    %v596 = vmul.f32 %v595, 0.0
    %598 = vrot.lane.b32.xlu0 %v595, 64
    %v599 = vpop.permute.xlu0 %598
    %v601 = vmul.f32 %v595, %v599
    %603 = vrot.lane.b32.xlu0 %v601, 32
    %v604 = vpop.permute.xlu0 %603
    %v606 = vadd.f32 %v596, %v604
    %v607 = vtanh.pop %v606
    %609 = vrot.lane.b32.xlu0 %v607, 64
    %v610 = vpop.permute.xlu0 %609
    %v612 = vmul.f32 %v595, %v610
    %v613 = vadd.f32 %v612, 0.0
    %615 = vrot.lane.b32.xlu0 %v612, 32
    %v616 = vpop.permute.xlu0 %615
    %v617 = vsel %vm514, %v616, 0
    %619 = vmatpush.msra.mxu0 0.0
    %620 = vmatpush.msra.mxu0 0.0
    %621 = vmatpush.msra.mxu0 0.0
    %622 = vmatpush.msra.mxu0 0.0
    %623 = vmatpush.msra.mxu0 0.0
    %624 = vmatpush.msra.mxu0 0.0
    %625 = vmatpush.msra.mxu0 0.0
    %626 = vmatpush.msra.mxu0 0.0
    %627 = vmatpush.msra.mxu0 0.0
    %628 = vmatpush.msra.mxu0 0.0
    %629 = vmatpush.msra.mxu0 0.0
    %630 = vmatpush.msra.mxu0 0.0
    %631 = vmatpush.msra.mxu0 %v458
    %632 = vmatpush.msra.mxu0 %v457
    %633 = vmatpush.msra.mxu0 %v456
    %634 = vmatpush.msra.mxu0 %v455
    %635 = vmatmul.f32.gmra.mxu0 %v617
    %v636 = vpop.f32.mrf.mxu0
    %v637 = vadd.f32 0.0, %v636
    %638 = vdwg.mxu0
    %v640 = vrot.slane %v637, 7
    %v643 = vadd.f32 %v509, %v640
    %v644 = vadd.f32 %v512, %v637
    %v645 = vtanh.pop %v643
    %v646 = vtanh.pop %v644
    %v647 = vsub.f32 0.0, %v643
    %v648 = vsub.f32 0.0, %v644
    %v649 = vmul.f32 %v647, 1.442695
    %v650 = vpow.pop %v649
    %v651 = vmul.f32 %v648, 1.442695
    %v652 = vpow.pop %v651
    %v653 = vadd.f32 %v650, 1.0
    %v654 = vadd.f32 %v652, 1.0
    %v655 = vrcp.pop %v653
    %v656 = vmul.f32 %v653, %v655
    %v657 = vsub.f32 1.0, %v656
    %v658 = vmul.f32 %v655, %v657
    %v659 = vadd.f32 %v655, %v658
    %vm660 = vweird.f32 %v653
    %vm661 = vweird.f32 %v655
    %vm662 = vmor %vm660, %vm661
    %v663 = vsel %vm662, %v655, %v659
    %v664 = vand.u32 2147483647, %v653
    %vm665 = vcmp.eq.f32.partialorder %v664, 8.507059e+37
    %v666 = vand.u32 %v653, 2147483648
    %v667 = vor.u32 1.1754944e-38, %v666
    %v668 = vsel %vm665, %v667, %v663
    %v669 = vmul.f32 1.0, %v668
    %v670 = vrcp.pop %v654
    %v671 = vmul.f32 %v654, %v670
    %v672 = vsub.f32 1.0, %v671
    %v673 = vmul.f32 %v670, %v672
    %v674 = vadd.f32 %v670, %v673
    %vm675 = vweird.f32 %v654
    %vm676 = vweird.f32 %v670
    %vm677 = vmor %vm675, %vm676
    %v678 = vsel %vm677, %v670, %v674
    %v679 = vand.u32 2147483647, %v654
    %vm680 = vcmp.eq.f32.partialorder %v679, 8.507059e+37
    %v681 = vand.u32 %v654, 2147483648
    %v682 = vor.u32 1.1754944e-38, %v681
    %v683 = vsel %vm680, %v682, %v678
    %v684 = vmul.f32 1.0, %v683
    %v687 = vrot.slane %v645, 1
    %v688 = vsel %vm587, %v646, %v687
    %v692 = vrot.slane %v669, 1
    %v693 = vsel %vm587, %v684, %v692
    %v695 = vsel %vm464, %v688, %v693
    %v696 = vmul.f32 %v695, %v606
    %698 = vrot.lane.b32.xlu0 %v695, 64
    %v699 = vpop.permute.xlu0 %698
    %v701 = vmul.f32 %v695, %v699
    %703 = vrot.lane.b32.xlu0 %v701, 32
    %v704 = vpop.permute.xlu0 %703
    %v706 = vadd.f32 %v696, %v704
    %v707 = vtanh.pop %v706
    %709 = vrot.lane.b32.xlu0 %v707, 64
    %v710 = vpop.permute.xlu0 %709
    %v712 = vmul.f32 %v695, %v710
    %v713 = vadd.f32 %v613, %v712
    %v714 = vmax.f32 %v612, %v712
    %716 = vrot.lane.b32.xlu0 %v712, 32
    %v717 = vpop.permute.xlu0 %716
    %v718 = vsel %vm514, %v717, 0
    %720 = vmatpush.msra.mxu0 0.0
    %721 = vmatpush.msra.mxu0 0.0
    %722 = vmatpush.msra.mxu0 0.0
    %723 = vmatpush.msra.mxu0 0.0
    %724 = vmatpush.msra.mxu0 0.0
    %725 = vmatpush.msra.mxu0 0.0
    %726 = vmatpush.msra.mxu0 0.0
    %727 = vmatpush.msra.mxu0 0.0
    %728 = vmatpush.msra.mxu0 0.0
    %729 = vmatpush.msra.mxu0 0.0
    %730 = vmatpush.msra.mxu0 0.0
    %731 = vmatpush.msra.mxu0 0.0
    %732 = vmatpush.msra.mxu0 %v458
    %733 = vmatpush.msra.mxu0 %v457
    %734 = vmatpush.msra.mxu0 %v456
    %735 = vmatpush.msra.mxu0 %v455
    %736 = vmatmul.f32.gmra.mxu0 %v718
    %v737 = vpop.f32.mrf.mxu0
    %v738 = vadd.f32 0.0, %v737
    %739 = vdwg.mxu0
    %v741 = vrot.slane %v738, 6
    %v742 = vrot.slane %v738, 7
    %v745 = vadd.f32 %v509, %v741
    %v746 = vadd.f32 %v512, %v742
    %v747 = vtanh.pop %v745
    %v748 = vtanh.pop %v746
    %v749 = vsub.f32 0.0, %v745
    %v750 = vsub.f32 0.0, %v746
    %v751 = vmul.f32 %v749, 1.442695
    %v752 = vpow.pop %v751
    %v753 = vmul.f32 %v750, 1.442695
    %v754 = vpow.pop %v753
    %v755 = vadd.f32 %v752, 1.0
    %v756 = vadd.f32 %v754, 1.0
    %v757 = vrcp.pop %v755
    %v758 = vmul.f32 %v755, %v757
    %v759 = vsub.f32 1.0, %v758
    %v760 = vmul.f32 %v757, %v759
    %v761 = vadd.f32 %v757, %v760
    %vm762 = vweird.f32 %v755
    %vm763 = vweird.f32 %v757
    %vm764 = vmor %vm762, %vm763
    %v765 = vsel %vm764, %v757, %v761
    %v766 = vand.u32 2147483647, %v755
    %vm767 = vcmp.eq.f32.partialorder %v766, 8.507059e+37
    %v768 = vand.u32 %v755, 2147483648
    %v769 = vor.u32 1.1754944e-38, %v768
    %v770 = vsel %vm767, %v769, %v765
    %v771 = vmul.f32 1.0, %v770
    %v772 = vrcp.pop %v756
    %v773 = vmul.f32 %v756, %v772
    %v774 = vsub.f32 1.0, %v773
    %v775 = vmul.f32 %v772, %v774
    %v776 = vadd.f32 %v772, %v775
    %vm777 = vweird.f32 %v756
    %vm778 = vweird.f32 %v772
    %vm779 = vmor %vm777, %vm778
    %v780 = vsel %vm779, %v772, %v776
    %v781 = vand.u32 2147483647, %v756
    %vm782 = vcmp.eq.f32.partialorder %v781, 8.507059e+37
    %v783 = vand.u32 %v756, 2147483648
    %v784 = vor.u32 1.1754944e-38, %v783
    %v785 = vsel %vm782, %v784, %v780
    %v786 = vmul.f32 1.0, %v785
    %v789 = vrot.slane %v747, 2
    %v790 = vrot.slane %v748, 1
    %v791 = vsel %vm587, %v790, %v789
    %v795 = vrot.slane %v771, 2
    %v796 = vrot.slane %v786, 1
    %v797 = vsel %vm587, %v796, %v795
    %v799 = vsel %vm464, %v791, %v797
    %v800 = vmul.f32 %v799, %v706
    %802 = vrot.lane.b32.xlu0 %v799, 64
    %v803 = vpop.permute.xlu0 %802
    %v805 = vmul.f32 %v799, %v803
    %807 = vrot.lane.b32.xlu0 %v805, 32
    %v808 = vpop.permute.xlu0 %807
    %v810 = vadd.f32 %v800, %v808
    %v811 = vtanh.pop %v810
    %813 = vrot.lane.b32.xlu0 %v811, 64
    %v814 = vpop.permute.xlu0 %813
    %v816 = vmul.f32 %v799, %v814
    %v817 = vadd.f32 %v713, %v816
    %v818 = vmax.f32 %v714, %v816
    %820 = vrot.lane.b32.xlu0 %v816, 32
    %v821 = vpop.permute.xlu0 %820
    %v822 = vsel %vm514, %v821, 0
    %824 = vmatpush.msra.mxu0 0.0
    %825 = vmatpush.msra.mxu0 0.0
    %826 = vmatpush.msra.mxu0 0.0
    %827 = vmatpush.msra.mxu0 0.0
    %828 = vmatpush.msra.mxu0 0.0
    %829 = vmatpush.msra.mxu0 0.0
    %830 = vmatpush.msra.mxu0 0.0
    %831 = vmatpush.msra.mxu0 0.0
    %832 = vmatpush.msra.mxu0 0.0
    %833 = vmatpush.msra.mxu0 0.0
    %834 = vmatpush.msra.mxu0 0.0
    %835 = vmatpush.msra.mxu0 0.0
    %836 = vmatpush.msra.mxu0 %v458
    %837 = vmatpush.msra.mxu0 %v457
    %838 = vmatpush.msra.mxu0 %v456
    %839 = vmatpush.msra.mxu0 %v455
    %840 = vmatmul.f32.gmra.mxu0 %v822
    %v841 = vpop.f32.mrf.mxu0
    %v842 = vadd.f32 0.0, %v841
    %843 = vdwg.mxu0
    %v845 = vrot.slane %v842, 5
    %v846 = vrot.slane %v842, 6
    %v849 = vadd.f32 %v509, %v845
    %v850 = vadd.f32 %v512, %v846
    %v851 = vtanh.pop %v849
    %v852 = vtanh.pop %v850
    %v853 = vsub.f32 0.0, %v849
    %v854 = vsub.f32 0.0, %v850
    %v855 = vmul.f32 %v853, 1.442695
    %v856 = vpow.pop %v855
    %v857 = vmul.f32 %v854, 1.442695
    %v858 = vpow.pop %v857
    %v859 = vadd.f32 %v856, 1.0
    %v860 = vadd.f32 %v858, 1.0
    %v861 = vrcp.pop %v859
    %v862 = vmul.f32 %v859, %v861
    %v863 = vsub.f32 1.0, %v862
    %v864 = vmul.f32 %v861, %v863
    %v865 = vadd.f32 %v861, %v864
    %vm866 = vweird.f32 %v859
    %vm867 = vweird.f32 %v861
    %vm868 = vmor %vm866, %vm867
    %v869 = vsel %vm868, %v861, %v865
    %v870 = vand.u32 2147483647, %v859
    %vm871 = vcmp.eq.f32.partialorder %v870, 8.507059e+37
    %v872 = vand.u32 %v859, 2147483648
    %v873 = vor.u32 1.1754944e-38, %v872
    %v874 = vsel %vm871, %v873, %v869
    %v875 = vmul.f32 1.0, %v874
    %v876 = vrcp.pop %v860
    %v877 = vmul.f32 %v860, %v876
    %v878 = vsub.f32 1.0, %v877
    %v879 = vmul.f32 %v876, %v878
    %v880 = vadd.f32 %v876, %v879
    %vm881 = vweird.f32 %v860
    %vm882 = vweird.f32 %v876
    %vm883 = vmor %vm881, %vm882
    %v884 = vsel %vm883, %v876, %v880
    %v885 = vand.u32 2147483647, %v860
    %vm886 = vcmp.eq.f32.partialorder %v885, 8.507059e+37
    %v887 = vand.u32 %v860, 2147483648
    %v888 = vor.u32 1.1754944e-38, %v887
    %v889 = vsel %vm886, %v888, %v884
    %v890 = vmul.f32 1.0, %v889
    %v893 = vrot.slane %v851, 3
    %v894 = vrot.slane %v852, 2
    %v895 = vsel %vm587, %v894, %v893
    %v899 = vrot.slane %v875, 3
    %v900 = vrot.slane %v890, 2
    %v901 = vsel %vm587, %v900, %v899
    %v903 = vsel %vm464, %v895, %v901
    %v904 = vmul.f32 %v903, %v810
    %906 = vrot.lane.b32.xlu0 %v903, 64
    %v907 = vpop.permute.xlu0 %906
    %v909 = vmul.f32 %v903, %v907
    %911 = vrot.lane.b32.xlu0 %v909, 32
    %v912 = vpop.permute.xlu0 %911
    %v914 = vadd.f32 %v904, %v912
    %v915 = vtanh.pop %v914
    %917 = vrot.lane.b32.xlu0 %v915, 64
    %v918 = vpop.permute.xlu0 %917
    %v920 = vmul.f32 %v903, %v918
    %v921 = vadd.f32 %v817, %v920
    %v922 = vmax.f32 %v818, %v920
    %924 = vrot.lane.b32.xlu0 %v920, 32
    %v925 = vpop.permute.xlu0 %924
    %v926 = vsel %vm514, %v925, 0
    %928 = vmatpush.msra.mxu0 0.0
    %929 = vmatpush.msra.mxu0 0.0
    %930 = vmatpush.msra.mxu0 0.0
    %931 = vmatpush.msra.mxu0 0.0
    %932 = vmatpush.msra.mxu0 0.0
    %933 = vmatpush.msra.mxu0 0.0
    %934 = vmatpush.msra.mxu0 0.0
    %935 = vmatpush.msra.mxu0 0.0
    %936 = vmatpush.msra.mxu0 0.0
    %937 = vmatpush.msra.mxu0 0.0
    %938 = vmatpush.msra.mxu0 0.0
    %939 = vmatpush.msra.mxu0 0.0
    %940 = vmatpush.msra.mxu0 %v458
    %941 = vmatpush.msra.mxu0 %v457
    %942 = vmatpush.msra.mxu0 %v456
    %943 = vmatpush.msra.mxu0 %v455
    %944 = vmatmul.f32.gmra.mxu0 %v926
    %v945 = vpop.f32.mrf.mxu0
    %v946 = vadd.f32 0.0, %v945
    %947 = vdwg.mxu0
    %v949 = vrot.slane %v946, 4
    %v950 = vrot.slane %v946, 5
    %v953 = vadd.f32 %v509, %v949
    %v954 = vadd.f32 %v512, %v950
    %v955 = vtanh.pop %v953
    %v956 = vtanh.pop %v954
    %v957 = vsub.f32 0.0, %v953
    %v958 = vsub.f32 0.0, %v954
    %v959 = vmul.f32 %v957, 1.442695
    %v960 = vpow.pop %v959
    %v961 = vmul.f32 %v958, 1.442695
    %v962 = vpow.pop %v961
    %v963 = vadd.f32 %v960, 1.0
    %v964 = vadd.f32 %v962, 1.0
    %v965 = vrcp.pop %v963
    %v966 = vmul.f32 %v963, %v965
    %v967 = vsub.f32 1.0, %v966
    %v968 = vmul.f32 %v965, %v967
    %v969 = vadd.f32 %v965, %v968
    %vm970 = vweird.f32 %v963
    %vm971 = vweird.f32 %v965
    %vm972 = vmor %vm970, %vm971
    %v973 = vsel %vm972, %v965, %v969
    %v974 = vand.u32 2147483647, %v963
    %vm975 = vcmp.eq.f32.partialorder %v974, 8.507059e+37
    %v976 = vand.u32 %v963, 2147483648
    %v977 = vor.u32 1.1754944e-38, %v976
    %v978 = vsel %vm975, %v977, %v973
    %v979 = vmul.f32 1.0, %v978
    %v980 = vrcp.pop %v964
    %v981 = vmul.f32 %v964, %v980
    %v982 = vsub.f32 1.0, %v981
    %v983 = vmul.f32 %v980, %v982
    %v984 = vadd.f32 %v980, %v983
    %vm985 = vweird.f32 %v964
    %vm986 = vweird.f32 %v980
    %vm987 = vmor %vm985, %vm986
    %v988 = vsel %vm987, %v980, %v984
    %v989 = vand.u32 2147483647, %v964
    %vm990 = vcmp.eq.f32.partialorder %v989, 8.507059e+37
    %v991 = vand.u32 %v964, 2147483648
    %v992 = vor.u32 1.1754944e-38, %v991
    %v993 = vsel %vm990, %v992, %v988
    %v994 = vmul.f32 1.0, %v993
    %v997 = vrot.slane %v955, 4
    %v998 = vrot.slane %v956, 3
    %v999 = vsel %vm587, %v998, %v997
    %v1003 = vrot.slane %v979, 4
    %v1004 = vrot.slane %v994, 3
    %v1005 = vsel %vm587, %v1004, %v1003
    %v1007 = vsel %vm464, %v999, %v1005
    %v1008 = vmul.f32 %v1007, %v914
    %1010 = vrot.lane.b32.xlu0 %v1007, 64
    %v1011 = vpop.permute.xlu0 %1010
    %v1013 = vmul.f32 %v1007, %v1011
    %1015 = vrot.lane.b32.xlu0 %v1013, 32
    %v1016 = vpop.permute.xlu0 %1015
    %v1018 = vadd.f32 %v1008, %v1016
    %v1019 = vtanh.pop %v1018
    %1021 = vrot.lane.b32.xlu0 %v1019, 64
    %v1022 = vpop.permute.xlu0 %1021
    %v1024 = vmul.f32 %v1007, %v1022
    %v1025 = vadd.f32 %v921, %v1024
    %v1026 = vmax.f32 %v922, %v1024
    %1028 = vrot.lane.b32.xlu0 %v1024, 32
    %v1029 = vpop.permute.xlu0 %1028
    %v1030 = vsel %vm514, %v1029, 0
    %1032 = vmatpush.msra.mxu0 0.0
    %1033 = vmatpush.msra.mxu0 0.0
    %1034 = vmatpush.msra.mxu0 0.0
    %1035 = vmatpush.msra.mxu0 0.0
    %1036 = vmatpush.msra.mxu0 0.0
    %1037 = vmatpush.msra.mxu0 0.0
    %1038 = vmatpush.msra.mxu0 0.0
    %1039 = vmatpush.msra.mxu0 0.0
    %1040 = vmatpush.msra.mxu0 0.0
    %1041 = vmatpush.msra.mxu0 0.0
    %1042 = vmatpush.msra.mxu0 0.0
    %1043 = vmatpush.msra.mxu0 0.0
    %1044 = vmatpush.msra.mxu0 %v458
    %1045 = vmatpush.msra.mxu0 %v457
    %1046 = vmatpush.msra.mxu0 %v456
    %1047 = vmatpush.msra.mxu0 %v455
    %1048 = vmatmul.f32.gmra.mxu0 %v1030
    %v1049 = vpop.f32.mrf.mxu0
    %v1050 = vadd.f32 0.0, %v1049
    %1051 = vdwg.mxu0
    %v1053 = vrot.slane %v1050, 3
    %v1054 = vrot.slane %v1050, 4
    %v1057 = vadd.f32 %v509, %v1053
    %v1058 = vadd.f32 %v512, %v1054
    %v1059 = vtanh.pop %v1057
    %v1060 = vtanh.pop %v1058
    %v1061 = vsub.f32 0.0, %v1057
    %v1062 = vsub.f32 0.0, %v1058
    %v1063 = vmul.f32 %v1061, 1.442695
    %v1064 = vpow.pop %v1063
    %v1065 = vmul.f32 %v1062, 1.442695
    %v1066 = vpow.pop %v1065
    %v1067 = vadd.f32 %v1064, 1.0
    %v1068 = vadd.f32 %v1066, 1.0
    %v1069 = vrcp.pop %v1067
    %v1070 = vmul.f32 %v1067, %v1069
    %v1071 = vsub.f32 1.0, %v1070
    %v1072 = vmul.f32 %v1069, %v1071
    %v1073 = vadd.f32 %v1069, %v1072
    %vm1074 = vweird.f32 %v1067
    %vm1075 = vweird.f32 %v1069
    %vm1076 = vmor %vm1074, %vm1075
    %v1077 = vsel %vm1076, %v1069, %v1073
    %v1078 = vand.u32 2147483647, %v1067
    %vm1079 = vcmp.eq.f32.partialorder %v1078, 8.507059e+37
    %v1080 = vand.u32 %v1067, 2147483648
    %v1081 = vor.u32 1.1754944e-38, %v1080
    %v1082 = vsel %vm1079, %v1081, %v1077
    %v1083 = vmul.f32 1.0, %v1082
    %v1084 = vrcp.pop %v1068
    %v1085 = vmul.f32 %v1068, %v1084
    %v1086 = vsub.f32 1.0, %v1085
    %v1087 = vmul.f32 %v1084, %v1086
    %v1088 = vadd.f32 %v1084, %v1087
    %vm1089 = vweird.f32 %v1068
    %vm1090 = vweird.f32 %v1084
    %vm1091 = vmor %vm1089, %vm1090
    %v1092 = vsel %vm1091, %v1084, %v1088
    %v1093 = vand.u32 2147483647, %v1068
    %vm1094 = vcmp.eq.f32.partialorder %v1093, 8.507059e+37
    %v1095 = vand.u32 %v1068, 2147483648
    %v1096 = vor.u32 1.1754944e-38, %v1095
    %v1097 = vsel %vm1094, %v1096, %v1092
    %v1098 = vmul.f32 1.0, %v1097
    %v1101 = vrot.slane %v1059, 5
    %v1102 = vrot.slane %v1060, 4
    %v1103 = vsel %vm587, %v1102, %v1101
    %v1107 = vrot.slane %v1083, 5
    %v1108 = vrot.slane %v1098, 4
    %v1109 = vsel %vm587, %v1108, %v1107
    %v1111 = vsel %vm464, %v1103, %v1109
    %v1112 = vmul.f32 %v1111, %v1018
    %1114 = vrot.lane.b32.xlu0 %v1111, 64
    %v1115 = vpop.permute.xlu0 %1114
    %v1117 = vmul.f32 %v1111, %v1115
    %1119 = vrot.lane.b32.xlu0 %v1117, 32
    %v1120 = vpop.permute.xlu0 %1119
    %v1122 = vadd.f32 %v1112, %v1120
    %v1123 = vtanh.pop %v1122
    %1125 = vrot.lane.b32.xlu0 %v1123, 64
    %v1126 = vpop.permute.xlu0 %1125
    %v1128 = vmul.f32 %v1111, %v1126
    %v1129 = vadd.f32 %v1025, %v1128
    %v1130 = vmax.f32 %v1026, %v1128
    %1132 = vrot.lane.b32.xlu0 %v1128, 32
    %v1133 = vpop.permute.xlu0 %1132
    %v1134 = vsel %vm514, %v1133, 0
    %1136 = vmatpush.msra.mxu0 0.0
    %1137 = vmatpush.msra.mxu0 0.0
    %1138 = vmatpush.msra.mxu0 0.0
    %1139 = vmatpush.msra.mxu0 0.0
    %1140 = vmatpush.msra.mxu0 0.0
    %1141 = vmatpush.msra.mxu0 0.0
    %1142 = vmatpush.msra.mxu0 0.0
    %1143 = vmatpush.msra.mxu0 0.0
    %1144 = vmatpush.msra.mxu0 0.0
    %1145 = vmatpush.msra.mxu0 0.0
    %1146 = vmatpush.msra.mxu0 0.0
    %1147 = vmatpush.msra.mxu0 0.0
    %1148 = vmatpush.msra.mxu0 %v458
    %1149 = vmatpush.msra.mxu0 %v457
    %1150 = vmatpush.msra.mxu0 %v456
    %1151 = vmatpush.msra.mxu0 %v455
    %1152 = vmatmul.f32.gmra.mxu0 %v1134
    %v1153 = vpop.f32.mrf.mxu0
    %v1154 = vadd.f32 0.0, %v1153
    %1155 = vdwg.mxu0
    %v1157 = vrot.slane %v1154, 2
    %v1158 = vrot.slane %v1154, 3
    %v1161 = vadd.f32 %v509, %v1157
    %v1162 = vadd.f32 %v512, %v1158
    %v1163 = vtanh.pop %v1161
    %v1164 = vtanh.pop %v1162
    %v1165 = vsub.f32 0.0, %v1161
    %v1166 = vsub.f32 0.0, %v1162
    %v1167 = vmul.f32 %v1165, 1.442695
    %v1168 = vpow.pop %v1167
    %v1169 = vmul.f32 %v1166, 1.442695
    %v1170 = vpow.pop %v1169
    %v1171 = vadd.f32 %v1168, 1.0
    %v1172 = vadd.f32 %v1170, 1.0
    %v1173 = vrcp.pop %v1171
    %v1174 = vmul.f32 %v1171, %v1173
    %v1175 = vsub.f32 1.0, %v1174
    %v1176 = vmul.f32 %v1173, %v1175
    %v1177 = vadd.f32 %v1173, %v1176
    %vm1178 = vweird.f32 %v1171
    %vm1179 = vweird.f32 %v1173
    %vm1180 = vmor %vm1178, %vm1179
    %v1181 = vsel %vm1180, %v1173, %v1177
    %v1182 = vand.u32 2147483647, %v1171
    %vm1183 = vcmp.eq.f32.partialorder %v1182, 8.507059e+37
    %v1184 = vand.u32 %v1171, 2147483648
    %v1185 = vor.u32 1.1754944e-38, %v1184
    %v1186 = vsel %vm1183, %v1185, %v1181
    %v1187 = vmul.f32 1.0, %v1186
    %v1188 = vrcp.pop %v1172
    %v1189 = vmul.f32 %v1172, %v1188
    %v1190 = vsub.f32 1.0, %v1189
    %v1191 = vmul.f32 %v1188, %v1190
    %v1192 = vadd.f32 %v1188, %v1191
    %vm1193 = vweird.f32 %v1172
    %vm1194 = vweird.f32 %v1188
    %vm1195 = vmor %vm1193, %vm1194
    %v1196 = vsel %vm1195, %v1188, %v1192
    %v1197 = vand.u32 2147483647, %v1172
    %vm1198 = vcmp.eq.f32.partialorder %v1197, 8.507059e+37
    %v1199 = vand.u32 %v1172, 2147483648
    %v1200 = vor.u32 1.1754944e-38, %v1199
    %v1201 = vsel %vm1198, %v1200, %v1196
    %v1202 = vmul.f32 1.0, %v1201
    %v1205 = vrot.slane %v1163, 6
    %v1206 = vrot.slane %v1164, 5
    %v1207 = vsel %vm587, %v1206, %v1205
    %v1211 = vrot.slane %v1187, 6
    %v1212 = vrot.slane %v1202, 5
    %v1213 = vsel %vm587, %v1212, %v1211
    %v1215 = vsel %vm464, %v1207, %v1213
    %v1216 = vmul.f32 %v1215, %v1122
    %1218 = vrot.lane.b32.xlu0 %v1215, 64
    %v1219 = vpop.permute.xlu0 %1218
    %v1221 = vmul.f32 %v1215, %v1219
    %1223 = vrot.lane.b32.xlu0 %v1221, 32
    %v1224 = vpop.permute.xlu0 %1223
    %v1226 = vadd.f32 %v1216, %v1224
    %v1227 = vtanh.pop %v1226
    %1229 = vrot.lane.b32.xlu0 %v1227, 64
    %v1230 = vpop.permute.xlu0 %1229
    %v1232 = vmul.f32 %v1215, %v1230
    %v1233 = vadd.f32 %v1129, %v1232
    %v1234 = vmax.f32 %v1130, %v1232
    %1236 = vrot.lane.b32.xlu0 %v1232, 32
    %v1237 = vpop.permute.xlu0 %1236
    %v1238 = vsel %vm514, %v1237, 0
    %1240 = vmatpush.msra.mxu0 0.0
    %1241 = vmatpush.msra.mxu0 0.0
    %1242 = vmatpush.msra.mxu0 0.0
    %1243 = vmatpush.msra.mxu0 0.0
    %1244 = vmatpush.msra.mxu0 0.0
    %1245 = vmatpush.msra.mxu0 0.0
    %1246 = vmatpush.msra.mxu0 0.0
    %1247 = vmatpush.msra.mxu0 0.0
    %1248 = vmatpush.msra.mxu0 0.0
    %1249 = vmatpush.msra.mxu0 0.0
    %1250 = vmatpush.msra.mxu0 0.0
    %1251 = vmatpush.msra.mxu0 0.0
    %1252 = vmatpush.msra.mxu0 %v458
    %1253 = vmatpush.msra.mxu0 %v457
    %1254 = vmatpush.msra.mxu0 %v456
    %1255 = vmatpush.msra.mxu0 %v455
    %1256 = vmatmul.f32.gmra.mxu0 %v1238
    %v1257 = vpop.f32.mrf.mxu0
    %v1258 = vadd.f32 0.0, %v1257
    %1259 = vdwg.mxu0
    %v1261 = vrot.slane %v1258, 1
    %v1262 = vrot.slane %v1258, 2
    %v1265 = vadd.f32 %v509, %v1261
    %v1266 = vadd.f32 %v512, %v1262
    %v1267 = vtanh.pop %v1265
    %v1268 = vtanh.pop %v1266
    %v1269 = vsub.f32 0.0, %v1265
    %v1270 = vsub.f32 0.0, %v1266
    %v1271 = vmul.f32 %v1269, 1.442695
    %v1272 = vpow.pop %v1271
    %v1273 = vmul.f32 %v1270, 1.442695
    %v1274 = vpow.pop %v1273
    %v1275 = vadd.f32 %v1272, 1.0
    %v1276 = vadd.f32 %v1274, 1.0
    %v1277 = vrcp.pop %v1275
    %v1278 = vmul.f32 %v1275, %v1277
    %v1279 = vsub.f32 1.0, %v1278
    %v1280 = vmul.f32 %v1277, %v1279
    %v1281 = vadd.f32 %v1277, %v1280
    %vm1282 = vweird.f32 %v1275
    %vm1283 = vweird.f32 %v1277
    %vm1284 = vmor %vm1282, %vm1283
    %v1285 = vsel %vm1284, %v1277, %v1281
    %v1286 = vand.u32 2147483647, %v1275
    %vm1287 = vcmp.eq.f32.partialorder %v1286, 8.507059e+37
    %v1288 = vand.u32 %v1275, 2147483648
    %v1289 = vor.u32 1.1754944e-38, %v1288
    %v1290 = vsel %vm1287, %v1289, %v1285
    %v1291 = vmul.f32 1.0, %v1290
    %v1292 = vrcp.pop %v1276
    %v1293 = vmul.f32 %v1276, %v1292
    %v1294 = vsub.f32 1.0, %v1293
    %v1295 = vmul.f32 %v1292, %v1294
    %v1296 = vadd.f32 %v1292, %v1295
    %vm1297 = vweird.f32 %v1276
    %vm1298 = vweird.f32 %v1292
    %vm1299 = vmor %vm1297, %vm1298
    %v1300 = vsel %vm1299, %v1292, %v1296
    %v1301 = vand.u32 2147483647, %v1276
    %vm1302 = vcmp.eq.f32.partialorder %v1301, 8.507059e+37
    %v1303 = vand.u32 %v1276, 2147483648
    %v1304 = vor.u32 1.1754944e-38, %v1303
    %v1305 = vsel %vm1302, %v1304, %v1300
    %v1306 = vmul.f32 1.0, %v1305
    %v1309 = vrot.slane %v1267, 7
    %v1310 = vrot.slane %v1268, 6
    %v1311 = vsel %vm587, %v1310, %v1309
    %v1315 = vrot.slane %v1291, 7
    %v1316 = vrot.slane %v1306, 6
    %v1317 = vsel %vm587, %v1316, %v1315
    %v1319 = vsel %vm464, %v1311, %v1317
    %v1320 = vmul.f32 %v1319, %v1226
    %1322 = vrot.lane.b32.xlu0 %v1319, 64
    %v1323 = vpop.permute.xlu0 %1322
    %v1325 = vmul.f32 %v1319, %v1323
    %1327 = vrot.lane.b32.xlu0 %v1325, 32
    %v1328 = vpop.permute.xlu0 %1327
    %v1330 = vadd.f32 %v1320, %v1328
    %v1331 = vtanh.pop %v1330
    %1333 = vrot.lane.b32.xlu0 %v1331, 64
    %v1334 = vpop.permute.xlu0 %1333
    %v1336 = vmul.f32 %v1319, %v1334
    %v1337 = vadd.f32 %v1233, %v1336
    %v1338 = vmax.f32 %v1234, %v1336
    %v1339 = vmul.f32 %v1337, 0.125
    %1341 = vrot.lane.b32.xlu0 %v1339, 32
    %v1342 = vpop.permute.xlu0 %1341
    %1345 = vrot.lane.b32.xlu0 %v1338, 64
    %v1346 = vpop.permute.xlu0 %1345
    %v1348 = vsel %vm514, %v1342, %v1346
    %1349 = vmatpush.msra.mxu0 %v438
    %1350 = vmatpush.msra.mxu0 %v437
    %1351 = vmatpush.msra.mxu0 %v436
    %1352 = vmatpush.msra.mxu0 %v435
    %1353 = vmatpush.msra.mxu0 %v434
    %1354 = vmatpush.msra.mxu0 %v433
    %1355 = vmatpush.msra.mxu0 %v432
    %1356 = vmatpush.msra.mxu0 %v431
    %1357 = vmatpush.msra.mxu0 %v430
    %1358 = vmatpush.msra.mxu0 %v429
    %1359 = vmatpush.msra.mxu0 %v428
    %1360 = vmatpush.msra.mxu0 %v427
    %1361 = vmatpush.msra.mxu0 %v426
    %1362 = vmatpush.msra.mxu0 %v425
    %1363 = vmatpush.msra.mxu0 %v424
    %1364 = vmatpush.msra.mxu0 %v423
    %1365 = vmatmul.f32.gmra.mxu0 %v419
    %v1366 = vpop.f32.mrf.mxu0
    %v1367 = vadd.f32 %v466, %v1366
    %1368 = vmatmul.f32.gmra.mxu0 %v420
    %v1369 = vpop.f32.mrf.mxu0
    %v1370 = vadd.f32 %v466, %v1369
    %1371 = vdwg.mxu0
    %1372 = vmatpush.msra.mxu0 %v454
    %1373 = vmatpush.msra.mxu0 %v453
    %1374 = vmatpush.msra.mxu0 %v452
    %1375 = vmatpush.msra.mxu0 %v451
    %1376 = vmatpush.msra.mxu0 %v450
    %1377 = vmatpush.msra.mxu0 %v449
    %1378 = vmatpush.msra.mxu0 %v448
    %1379 = vmatpush.msra.mxu0 %v447
    %1380 = vmatpush.msra.mxu0 %v446
    %1381 = vmatpush.msra.mxu0 %v445
    %1382 = vmatpush.msra.mxu0 %v444
    %1383 = vmatpush.msra.mxu0 %v443
    %1384 = vmatpush.msra.mxu0 %v442
    %1385 = vmatpush.msra.mxu0 %v441
    %1386 = vmatpush.msra.mxu0 %v440
    %1387 = vmatpush.msra.mxu0 %v439
    %1388 = vmatmul.f32.gmra.mxu0 %v421
    %v1389 = vpop.f32.mrf.mxu0
    %v1390 = vadd.f32 %v1367, %v1389
    %1391 = vmatmul.f32.gmra.mxu0 %v422
    %v1392 = vpop.f32.mrf.mxu0
    %v1393 = vadd.f32 %v1370, %v1392
    %1394 = vdwg.mxu0
    %v1395 = vadd.f32 %v1390, %v536
    %v1396 = vadd.f32 %v1393, %v539
    %v1397 = vtanh.pop %v1395
    %v1398 = vtanh.pop %v1396
    %v1399 = vsub.f32 0.0, %v1395
    %v1400 = vsub.f32 0.0, %v1396
    %v1401 = vmul.f32 %v1399, 1.442695
    %v1402 = vpow.pop %v1401
    %v1403 = vmul.f32 %v1400, 1.442695
    %v1404 = vpow.pop %v1403
    %v1405 = vadd.f32 %v1402, 1.0
    %v1406 = vadd.f32 %v1404, 1.0
    %v1407 = vrcp.pop %v1405
    %v1408 = vmul.f32 %v1405, %v1407
    %v1409 = vsub.f32 1.0, %v1408
    %v1410 = vmul.f32 %v1407, %v1409
    %v1411 = vadd.f32 %v1407, %v1410
    %vm1412 = vweird.f32 %v1405
    %vm1413 = vweird.f32 %v1407
    %vm1414 = vmor %vm1412, %vm1413
    %v1415 = vsel %vm1414, %v1407, %v1411
    %v1416 = vand.u32 2147483647, %v1405
    %vm1417 = vcmp.eq.f32.partialorder %v1416, 8.507059e+37
    %v1418 = vand.u32 %v1405, 2147483648
    %v1419 = vor.u32 1.1754944e-38, %v1418
    %v1420 = vsel %vm1417, %v1419, %v1415
    %v1421 = vmul.f32 1.0, %v1420
    %v1422 = vrcp.pop %v1406
    %v1423 = vmul.f32 %v1406, %v1422
    %v1424 = vsub.f32 1.0, %v1423
    %v1425 = vmul.f32 %v1422, %v1424
    %v1426 = vadd.f32 %v1422, %v1425
    %vm1427 = vweird.f32 %v1406
    %vm1428 = vweird.f32 %v1422
    %vm1429 = vmor %vm1427, %vm1428
    %v1430 = vsel %vm1429, %v1422, %v1426
    %v1431 = vand.u32 2147483647, %v1406
    %vm1432 = vcmp.eq.f32.partialorder %v1431, 8.507059e+37
    %v1433 = vand.u32 %v1406, 2147483648
    %v1434 = vor.u32 1.1754944e-38, %v1433
    %v1435 = vsel %vm1432, %v1434, %v1430
    %v1436 = vmul.f32 1.0, %v1435
    %v1439 = vrot.slane %v1398, 7
    %v1440 = vsel %vm587, %v1439, %v1397
    %v1444 = vrot.slane %v1436, 7
    %v1445 = vsel %vm587, %v1444, %v1421
    %v1447 = vsel %vm464, %v1440, %v1445
    %v1448 = vmul.f32 %v1447, 0.0
    %1450 = vrot.lane.b32.xlu0 %v1447, 64
    %v1451 = vpop.permute.xlu0 %1450
    %v1453 = vmul.f32 %v1447, %v1451
    %1455 = vrot.lane.b32.xlu0 %v1453, 32
    %v1456 = vpop.permute.xlu0 %1455
    %v1458 = vadd.f32 %v1448, %v1456
    %v1459 = vtanh.pop %v1458
    %1461 = vrot.lane.b32.xlu0 %v1459, 64
    %v1462 = vpop.permute.xlu0 %1461
    %v1464 = vmul.f32 %v1447, %v1462
    %v1465 = vadd.f32 %v1464, 0.0
    %1467 = vrot.lane.b32.xlu0 %v1464, 32
    %v1468 = vpop.permute.xlu0 %1467
    %v1469 = vsel %vm514, %v1468, 0
    %1471 = vmatpush.msra.mxu0 0.0
    %1472 = vmatpush.msra.mxu0 0.0
    %1473 = vmatpush.msra.mxu0 0.0
    %1474 = vmatpush.msra.mxu0 0.0
    %1475 = vmatpush.msra.mxu0 0.0
    %1476 = vmatpush.msra.mxu0 0.0
    %1477 = vmatpush.msra.mxu0 0.0
    %1478 = vmatpush.msra.mxu0 0.0
    %1479 = vmatpush.msra.mxu0 0.0
    %1480 = vmatpush.msra.mxu0 0.0
    %1481 = vmatpush.msra.mxu0 0.0
    %1482 = vmatpush.msra.mxu0 0.0
    %1483 = vmatpush.msra.mxu0 %v458
    %1484 = vmatpush.msra.mxu0 %v457
    %1485 = vmatpush.msra.mxu0 %v456
    %1486 = vmatpush.msra.mxu0 %v455
    %1487 = vmatmul.f32.gmra.mxu0 %v1469
    %v1488 = vpop.f32.mrf.mxu0
    %v1489 = vadd.f32 0.0, %v1488
    %1490 = vdwg.mxu0
    %v1492 = vrot.slane %v1489, 7
    %v1495 = vadd.f32 %v1390, %v1492
    %v1496 = vadd.f32 %v1393, %v1489
    %v1497 = vtanh.pop %v1495
    %v1498 = vtanh.pop %v1496
    %v1499 = vsub.f32 0.0, %v1495
    %v1500 = vsub.f32 0.0, %v1496
    %v1501 = vmul.f32 %v1499, 1.442695
    %v1502 = vpow.pop %v1501
    %v1503 = vmul.f32 %v1500, 1.442695
    %v1504 = vpow.pop %v1503
    %v1505 = vadd.f32 %v1502, 1.0
    %v1506 = vadd.f32 %v1504, 1.0
    %v1507 = vrcp.pop %v1505
    %v1508 = vmul.f32 %v1505, %v1507
    %v1509 = vsub.f32 1.0, %v1508
    %v1510 = vmul.f32 %v1507, %v1509
    %v1511 = vadd.f32 %v1507, %v1510
    %vm1512 = vweird.f32 %v1505
    %vm1513 = vweird.f32 %v1507
    %vm1514 = vmor %vm1512, %vm1513
    %v1515 = vsel %vm1514, %v1507, %v1511
    %v1516 = vand.u32 2147483647, %v1505
    %vm1517 = vcmp.eq.f32.partialorder %v1516, 8.507059e+37
    %v1518 = vand.u32 %v1505, 2147483648
    %v1519 = vor.u32 1.1754944e-38, %v1518
    %v1520 = vsel %vm1517, %v1519, %v1515
    %v1521 = vmul.f32 1.0, %v1520
    %v1522 = vrcp.pop %v1506
    %v1523 = vmul.f32 %v1506, %v1522
    %v1524 = vsub.f32 1.0, %v1523
    %v1525 = vmul.f32 %v1522, %v1524
    %v1526 = vadd.f32 %v1522, %v1525
    %vm1527 = vweird.f32 %v1506
    %vm1528 = vweird.f32 %v1522
    %vm1529 = vmor %vm1527, %vm1528
    %v1530 = vsel %vm1529, %v1522, %v1526
    %v1531 = vand.u32 2147483647, %v1506
    %vm1532 = vcmp.eq.f32.partialorder %v1531, 8.507059e+37
    %v1533 = vand.u32 %v1506, 2147483648
    %v1534 = vor.u32 1.1754944e-38, %v1533
    %v1535 = vsel %vm1532, %v1534, %v1530
    %v1536 = vmul.f32 1.0, %v1535
    %v1539 = vrot.slane %v1497, 1
    %v1540 = vsel %vm587, %v1498, %v1539
    %v1544 = vrot.slane %v1521, 1
    %v1545 = vsel %vm587, %v1536, %v1544
    %v1547 = vsel %vm464, %v1540, %v1545
    %v1548 = vmul.f32 %v1547, %v1458
    %1550 = vrot.lane.b32.xlu0 %v1547, 64
    %v1551 = vpop.permute.xlu0 %1550
    %v1553 = vmul.f32 %v1547, %v1551
    %1555 = vrot.lane.b32.xlu0 %v1553, 32
    %v1556 = vpop.permute.xlu0 %1555
    %v1558 = vadd.f32 %v1548, %v1556
    %v1559 = vtanh.pop %v1558
    %1561 = vrot.lane.b32.xlu0 %v1559, 64
    %v1562 = vpop.permute.xlu0 %1561
    %v1564 = vmul.f32 %v1547, %v1562
    %v1565 = vadd.f32 %v1465, %v1564
    %v1566 = vmax.f32 %v1464, %v1564
    %1568 = vrot.lane.b32.xlu0 %v1564, 32
    %v1569 = vpop.permute.xlu0 %1568
    %v1570 = vsel %vm514, %v1569, 0
    %1572 = vmatpush.msra.mxu0 0.0
    %1573 = vmatpush.msra.mxu0 0.0
    %1574 = vmatpush.msra.mxu0 0.0
    %1575 = vmatpush.msra.mxu0 0.0
    %1576 = vmatpush.msra.mxu0 0.0
    %1577 = vmatpush.msra.mxu0 0.0
    %1578 = vmatpush.msra.mxu0 0.0
    %1579 = vmatpush.msra.mxu0 0.0
    %1580 = vmatpush.msra.mxu0 0.0
    %1581 = vmatpush.msra.mxu0 0.0
    %1582 = vmatpush.msra.mxu0 0.0
    %1583 = vmatpush.msra.mxu0 0.0
    %1584 = vmatpush.msra.mxu0 %v458
    %1585 = vmatpush.msra.mxu0 %v457
    %1586 = vmatpush.msra.mxu0 %v456
    %1587 = vmatpush.msra.mxu0 %v455
    %1588 = vmatmul.f32.gmra.mxu0 %v1570
    %v1589 = vpop.f32.mrf.mxu0
    %v1590 = vadd.f32 0.0, %v1589
    %1591 = vdwg.mxu0
    %v1593 = vrot.slane %v1590, 6
    %v1594 = vrot.slane %v1590, 7
    %v1597 = vadd.f32 %v1390, %v1593
    %v1598 = vadd.f32 %v1393, %v1594
    %v1599 = vtanh.pop %v1597
    %v1600 = vtanh.pop %v1598
    %v1601 = vsub.f32 0.0, %v1597
    %v1602 = vsub.f32 0.0, %v1598
    %v1603 = vmul.f32 %v1601, 1.442695
    %v1604 = vpow.pop %v1603
    %v1605 = vmul.f32 %v1602, 1.442695
    %v1606 = vpow.pop %v1605
    %v1607 = vadd.f32 %v1604, 1.0
    %v1608 = vadd.f32 %v1606, 1.0
    %v1609 = vrcp.pop %v1607
    %v1610 = vmul.f32 %v1607, %v1609
    %v1611 = vsub.f32 1.0, %v1610
    %v1612 = vmul.f32 %v1609, %v1611
    %v1613 = vadd.f32 %v1609, %v1612
    %vm1614 = vweird.f32 %v1607
    %vm1615 = vweird.f32 %v1609
    %vm1616 = vmor %vm1614, %vm1615
    %v1617 = vsel %vm1616, %v1609, %v1613
    %v1618 = vand.u32 2147483647, %v1607
    %vm1619 = vcmp.eq.f32.partialorder %v1618, 8.507059e+37
    %v1620 = vand.u32 %v1607, 2147483648
    %v1621 = vor.u32 1.1754944e-38, %v1620
    %v1622 = vsel %vm1619, %v1621, %v1617
    %v1623 = vmul.f32 1.0, %v1622
    %v1624 = vrcp.pop %v1608
    %v1625 = vmul.f32 %v1608, %v1624
    %v1626 = vsub.f32 1.0, %v1625
    %v1627 = vmul.f32 %v1624, %v1626
    %v1628 = vadd.f32 %v1624, %v1627
    %vm1629 = vweird.f32 %v1608
    %vm1630 = vweird.f32 %v1624
    %vm1631 = vmor %vm1629, %vm1630
    %v1632 = vsel %vm1631, %v1624, %v1628
    %v1633 = vand.u32 2147483647, %v1608
    %vm1634 = vcmp.eq.f32.partialorder %v1633, 8.507059e+37
    %v1635 = vand.u32 %v1608, 2147483648
    %v1636 = vor.u32 1.1754944e-38, %v1635
    %v1637 = vsel %vm1634, %v1636, %v1632
    %v1638 = vmul.f32 1.0, %v1637
    %v1641 = vrot.slane %v1599, 2
    %v1642 = vrot.slane %v1600, 1
    %v1643 = vsel %vm587, %v1642, %v1641
    %v1647 = vrot.slane %v1623, 2
    %v1648 = vrot.slane %v1638, 1
    %v1649 = vsel %vm587, %v1648, %v1647
    %v1651 = vsel %vm464, %v1643, %v1649
    %v1652 = vmul.f32 %v1651, %v1558
    %1654 = vrot.lane.b32.xlu0 %v1651, 64
    %v1655 = vpop.permute.xlu0 %1654
    %v1657 = vmul.f32 %v1651, %v1655
    %1659 = vrot.lane.b32.xlu0 %v1657, 32
    %v1660 = vpop.permute.xlu0 %1659
    %v1662 = vadd.f32 %v1652, %v1660
    %v1663 = vtanh.pop %v1662
    %1665 = vrot.lane.b32.xlu0 %v1663, 64
    %v1666 = vpop.permute.xlu0 %1665
    %v1668 = vmul.f32 %v1651, %v1666
    %v1669 = vadd.f32 %v1565, %v1668
    %v1670 = vmax.f32 %v1566, %v1668
    %1672 = vrot.lane.b32.xlu0 %v1668, 32
    %v1673 = vpop.permute.xlu0 %1672
    %v1674 = vsel %vm514, %v1673, 0
    %1676 = vmatpush.msra.mxu0 0.0
    %1677 = vmatpush.msra.mxu0 0.0
    %1678 = vmatpush.msra.mxu0 0.0
    %1679 = vmatpush.msra.mxu0 0.0
    %1680 = vmatpush.msra.mxu0 0.0
    %1681 = vmatpush.msra.mxu0 0.0
    %1682 = vmatpush.msra.mxu0 0.0
    %1683 = vmatpush.msra.mxu0 0.0
    %1684 = vmatpush.msra.mxu0 0.0
    %1685 = vmatpush.msra.mxu0 0.0
    %1686 = vmatpush.msra.mxu0 0.0
    %1687 = vmatpush.msra.mxu0 0.0
    %1688 = vmatpush.msra.mxu0 %v458
    %1689 = vmatpush.msra.mxu0 %v457
    %1690 = vmatpush.msra.mxu0 %v456
    %1691 = vmatpush.msra.mxu0 %v455
    %1692 = vmatmul.f32.gmra.mxu0 %v1674
    %v1693 = vpop.f32.mrf.mxu0
    %v1694 = vadd.f32 0.0, %v1693
    %1695 = vdwg.mxu0
    %v1697 = vrot.slane %v1694, 5
    %v1698 = vrot.slane %v1694, 6
    %v1701 = vadd.f32 %v1390, %v1697
    %v1702 = vadd.f32 %v1393, %v1698
    %v1703 = vtanh.pop %v1701
    %v1704 = vtanh.pop %v1702
    %v1705 = vsub.f32 0.0, %v1701
    %v1706 = vsub.f32 0.0, %v1702
    %v1707 = vmul.f32 %v1705, 1.442695
    %v1708 = vpow.pop %v1707
    %v1709 = vmul.f32 %v1706, 1.442695
    %v1710 = vpow.pop %v1709
    %v1711 = vadd.f32 %v1708, 1.0
    %v1712 = vadd.f32 %v1710, 1.0
    %v1713 = vrcp.pop %v1711
    %v1714 = vmul.f32 %v1711, %v1713
    %v1715 = vsub.f32 1.0, %v1714
    %v1716 = vmul.f32 %v1713, %v1715
    %v1717 = vadd.f32 %v1713, %v1716
    %vm1718 = vweird.f32 %v1711
    %vm1719 = vweird.f32 %v1713
    %vm1720 = vmor %vm1718, %vm1719
    %v1721 = vsel %vm1720, %v1713, %v1717
    %v1722 = vand.u32 2147483647, %v1711
    %vm1723 = vcmp.eq.f32.partialorder %v1722, 8.507059e+37
    %v1724 = vand.u32 %v1711, 2147483648
    %v1725 = vor.u32 1.1754944e-38, %v1724
    %v1726 = vsel %vm1723, %v1725, %v1721
    %v1727 = vmul.f32 1.0, %v1726
    %v1728 = vrcp.pop %v1712
    %v1729 = vmul.f32 %v1712, %v1728
    %v1730 = vsub.f32 1.0, %v1729
    %v1731 = vmul.f32 %v1728, %v1730
    %v1732 = vadd.f32 %v1728, %v1731
    %vm1733 = vweird.f32 %v1712
    %vm1734 = vweird.f32 %v1728
    %vm1735 = vmor %vm1733, %vm1734
    %v1736 = vsel %vm1735, %v1728, %v1732
    %v1737 = vand.u32 2147483647, %v1712
    %vm1738 = vcmp.eq.f32.partialorder %v1737, 8.507059e+37
    %v1739 = vand.u32 %v1712, 2147483648
    %v1740 = vor.u32 1.1754944e-38, %v1739
    %v1741 = vsel %vm1738, %v1740, %v1736
    %v1742 = vmul.f32 1.0, %v1741
    %v1745 = vrot.slane %v1703, 3
    %v1746 = vrot.slane %v1704, 2
    %v1747 = vsel %vm587, %v1746, %v1745
    %v1751 = vrot.slane %v1727, 3
    %v1752 = vrot.slane %v1742, 2
    %v1753 = vsel %vm587, %v1752, %v1751
    %v1755 = vsel %vm464, %v1747, %v1753
    %v1756 = vmul.f32 %v1755, %v1662
    %1758 = vrot.lane.b32.xlu0 %v1755, 64
    %v1759 = vpop.permute.xlu0 %1758
    %v1761 = vmul.f32 %v1755, %v1759
    %1763 = vrot.lane.b32.xlu0 %v1761, 32
    %v1764 = vpop.permute.xlu0 %1763
    %v1766 = vadd.f32 %v1756, %v1764
    %v1767 = vtanh.pop %v1766
    %1769 = vrot.lane.b32.xlu0 %v1767, 64
    %v1770 = vpop.permute.xlu0 %1769
    %v1772 = vmul.f32 %v1755, %v1770
    %v1773 = vadd.f32 %v1669, %v1772
    %v1774 = vmax.f32 %v1670, %v1772
    %1776 = vrot.lane.b32.xlu0 %v1772, 32
    %v1777 = vpop.permute.xlu0 %1776
    %v1778 = vsel %vm514, %v1777, 0
    %1780 = vmatpush.msra.mxu0 0.0
    %1781 = vmatpush.msra.mxu0 0.0
    %1782 = vmatpush.msra.mxu0 0.0
    %1783 = vmatpush.msra.mxu0 0.0
    %1784 = vmatpush.msra.mxu0 0.0
    %1785 = vmatpush.msra.mxu0 0.0
    %1786 = vmatpush.msra.mxu0 0.0
    %1787 = vmatpush.msra.mxu0 0.0
    %1788 = vmatpush.msra.mxu0 0.0
    %1789 = vmatpush.msra.mxu0 0.0
    %1790 = vmatpush.msra.mxu0 0.0
    %1791 = vmatpush.msra.mxu0 0.0
    %1792 = vmatpush.msra.mxu0 %v458
    %1793 = vmatpush.msra.mxu0 %v457
    %1794 = vmatpush.msra.mxu0 %v456
    %1795 = vmatpush.msra.mxu0 %v455
    %1796 = vmatmul.f32.gmra.mxu0 %v1778
    %v1797 = vpop.f32.mrf.mxu0
    %v1798 = vadd.f32 0.0, %v1797
    %1799 = vdwg.mxu0
    %v1801 = vrot.slane %v1798, 4
    %v1802 = vrot.slane %v1798, 5
    %v1805 = vadd.f32 %v1390, %v1801
    %v1806 = vadd.f32 %v1393, %v1802
    %v1807 = vtanh.pop %v1805
    %v1808 = vtanh.pop %v1806
    %v1809 = vsub.f32 0.0, %v1805
    %v1810 = vsub.f32 0.0, %v1806
    %v1811 = vmul.f32 %v1809, 1.442695
    %v1812 = vpow.pop %v1811
    %v1813 = vmul.f32 %v1810, 1.442695
    %v1814 = vpow.pop %v1813
    %v1815 = vadd.f32 %v1812, 1.0
    %v1816 = vadd.f32 %v1814, 1.0
    %v1817 = vrcp.pop %v1815
    %v1818 = vmul.f32 %v1815, %v1817
    %v1819 = vsub.f32 1.0, %v1818
    %v1820 = vmul.f32 %v1817, %v1819
    %v1821 = vadd.f32 %v1817, %v1820
    %vm1822 = vweird.f32 %v1815
    %vm1823 = vweird.f32 %v1817
    %vm1824 = vmor %vm1822, %vm1823
    %v1825 = vsel %vm1824, %v1817, %v1821
    %v1826 = vand.u32 2147483647, %v1815
    %vm1827 = vcmp.eq.f32.partialorder %v1826, 8.507059e+37
    %v1828 = vand.u32 %v1815, 2147483648
    %v1829 = vor.u32 1.1754944e-38, %v1828
    %v1830 = vsel %vm1827, %v1829, %v1825
    %v1831 = vmul.f32 1.0, %v1830
    %v1832 = vrcp.pop %v1816
    %v1833 = vmul.f32 %v1816, %v1832
    %v1834 = vsub.f32 1.0, %v1833
    %v1835 = vmul.f32 %v1832, %v1834
    %v1836 = vadd.f32 %v1832, %v1835
    %vm1837 = vweird.f32 %v1816
    %vm1838 = vweird.f32 %v1832
    %vm1839 = vmor %vm1837, %vm1838
    %v1840 = vsel %vm1839, %v1832, %v1836
    %v1841 = vand.u32 2147483647, %v1816
    %vm1842 = vcmp.eq.f32.partialorder %v1841, 8.507059e+37
    %v1843 = vand.u32 %v1816, 2147483648
    %v1844 = vor.u32 1.1754944e-38, %v1843
    %v1845 = vsel %vm1842, %v1844, %v1840
    %v1846 = vmul.f32 1.0, %v1845
    %v1849 = vrot.slane %v1807, 4
    %v1850 = vrot.slane %v1808, 3
    %v1851 = vsel %vm587, %v1850, %v1849
    %v1855 = vrot.slane %v1831, 4
    %v1856 = vrot.slane %v1846, 3
    %v1857 = vsel %vm587, %v1856, %v1855
    %v1859 = vsel %vm464, %v1851, %v1857
    %v1860 = vmul.f32 %v1859, %v1766
    %1862 = vrot.lane.b32.xlu0 %v1859, 64
    %v1863 = vpop.permute.xlu0 %1862
    %v1865 = vmul.f32 %v1859, %v1863
    %1867 = vrot.lane.b32.xlu0 %v1865, 32
    %v1868 = vpop.permute.xlu0 %1867
    %v1870 = vadd.f32 %v1860, %v1868
    %v1871 = vtanh.pop %v1870
    %1873 = vrot.lane.b32.xlu0 %v1871, 64
    %v1874 = vpop.permute.xlu0 %1873
    %v1876 = vmul.f32 %v1859, %v1874
    %v1877 = vadd.f32 %v1773, %v1876
    %v1878 = vmax.f32 %v1774, %v1876
    %1880 = vrot.lane.b32.xlu0 %v1876, 32
    %v1881 = vpop.permute.xlu0 %1880
    %v1882 = vsel %vm514, %v1881, 0
    %1884 = vmatpush.msra.mxu0 0.0
    %1885 = vmatpush.msra.mxu0 0.0
    %1886 = vmatpush.msra.mxu0 0.0
    %1887 = vmatpush.msra.mxu0 0.0
    %1888 = vmatpush.msra.mxu0 0.0
    %1889 = vmatpush.msra.mxu0 0.0
    %1890 = vmatpush.msra.mxu0 0.0
    %1891 = vmatpush.msra.mxu0 0.0
    %1892 = vmatpush.msra.mxu0 0.0
    %1893 = vmatpush.msra.mxu0 0.0
    %1894 = vmatpush.msra.mxu0 0.0
    %1895 = vmatpush.msra.mxu0 0.0
    %1896 = vmatpush.msra.mxu0 %v458
    %1897 = vmatpush.msra.mxu0 %v457
    %1898 = vmatpush.msra.mxu0 %v456
    %1899 = vmatpush.msra.mxu0 %v455
    %1900 = vmatmul.f32.gmra.mxu0 %v1882
    %v1901 = vpop.f32.mrf.mxu0
    %v1902 = vadd.f32 0.0, %v1901
    %1903 = vdwg.mxu0
    %v1905 = vrot.slane %v1902, 3
    %v1906 = vrot.slane %v1902, 4
    %v1909 = vadd.f32 %v1390, %v1905
    %v1910 = vadd.f32 %v1393, %v1906
    %v1911 = vtanh.pop %v1909
    %v1912 = vtanh.pop %v1910
    %v1913 = vsub.f32 0.0, %v1909
    %v1914 = vsub.f32 0.0, %v1910
    %v1915 = vmul.f32 %v1913, 1.442695
    %v1916 = vpow.pop %v1915
    %v1917 = vmul.f32 %v1914, 1.442695
    %v1918 = vpow.pop %v1917
    %v1919 = vadd.f32 %v1916, 1.0
    %v1920 = vadd.f32 %v1918, 1.0
    %v1921 = vrcp.pop %v1919
    %v1922 = vmul.f32 %v1919, %v1921
    %v1923 = vsub.f32 1.0, %v1922
    %v1924 = vmul.f32 %v1921, %v1923
    %v1925 = vadd.f32 %v1921, %v1924
    %vm1926 = vweird.f32 %v1919
    %vm1927 = vweird.f32 %v1921
    %vm1928 = vmor %vm1926, %vm1927
    %v1929 = vsel %vm1928, %v1921, %v1925
    %v1930 = vand.u32 2147483647, %v1919
    %vm1931 = vcmp.eq.f32.partialorder %v1930, 8.507059e+37
    %v1932 = vand.u32 %v1919, 2147483648
    %v1933 = vor.u32 1.1754944e-38, %v1932
    %v1934 = vsel %vm1931, %v1933, %v1929
    %v1935 = vmul.f32 1.0, %v1934
    %v1936 = vrcp.pop %v1920
    %v1937 = vmul.f32 %v1920, %v1936
    %v1938 = vsub.f32 1.0, %v1937
    %v1939 = vmul.f32 %v1936, %v1938
    %v1940 = vadd.f32 %v1936, %v1939
    %vm1941 = vweird.f32 %v1920
    %vm1942 = vweird.f32 %v1936
    %vm1943 = vmor %vm1941, %vm1942
    %v1944 = vsel %vm1943, %v1936, %v1940
    %v1945 = vand.u32 2147483647, %v1920
    %vm1946 = vcmp.eq.f32.partialorder %v1945, 8.507059e+37
    %v1947 = vand.u32 %v1920, 2147483648
    %v1948 = vor.u32 1.1754944e-38, %v1947
    %v1949 = vsel %vm1946, %v1948, %v1944
    %v1950 = vmul.f32 1.0, %v1949
    %v1953 = vrot.slane %v1911, 5
    %v1954 = vrot.slane %v1912, 4
    %v1955 = vsel %vm587, %v1954, %v1953
    %v1959 = vrot.slane %v1935, 5
    %v1960 = vrot.slane %v1950, 4
    %v1961 = vsel %vm587, %v1960, %v1959
    %v1963 = vsel %vm464, %v1955, %v1961
    %v1964 = vmul.f32 %v1963, %v1870
    %1966 = vrot.lane.b32.xlu0 %v1963, 64
    %v1967 = vpop.permute.xlu0 %1966
    %v1969 = vmul.f32 %v1963, %v1967
    %1971 = vrot.lane.b32.xlu0 %v1969, 32
    %v1972 = vpop.permute.xlu0 %1971
    %v1974 = vadd.f32 %v1964, %v1972
    %v1975 = vtanh.pop %v1974
    %1977 = vrot.lane.b32.xlu0 %v1975, 64
    %v1978 = vpop.permute.xlu0 %1977
    %v1980 = vmul.f32 %v1963, %v1978
    %v1981 = vadd.f32 %v1877, %v1980
    %v1982 = vmax.f32 %v1878, %v1980
    %1984 = vrot.lane.b32.xlu0 %v1980, 32
    %v1985 = vpop.permute.xlu0 %1984
    %v1986 = vsel %vm514, %v1985, 0
    %1988 = vmatpush.msra.mxu0 0.0
    %1989 = vmatpush.msra.mxu0 0.0
    %1990 = vmatpush.msra.mxu0 0.0
    %1991 = vmatpush.msra.mxu0 0.0
    %1992 = vmatpush.msra.mxu0 0.0
    %1993 = vmatpush.msra.mxu0 0.0
    %1994 = vmatpush.msra.mxu0 0.0
    %1995 = vmatpush.msra.mxu0 0.0
    %1996 = vmatpush.msra.mxu0 0.0
    %1997 = vmatpush.msra.mxu0 0.0
    %1998 = vmatpush.msra.mxu0 0.0
    %1999 = vmatpush.msra.mxu0 0.0
    %2000 = vmatpush.msra.mxu0 %v458
    %2001 = vmatpush.msra.mxu0 %v457
    %2002 = vmatpush.msra.mxu0 %v456
    %2003 = vmatpush.msra.mxu0 %v455
    %2004 = vmatmul.f32.gmra.mxu0 %v1986
    %v2005 = vpop.f32.mrf.mxu0
    %v2006 = vadd.f32 0.0, %v2005
    %2007 = vdwg.mxu0
    %v2009 = vrot.slane %v2006, 2
    %v2010 = vrot.slane %v2006, 3
    %v2013 = vadd.f32 %v1390, %v2009
    %v2014 = vadd.f32 %v1393, %v2010
    %v2015 = vtanh.pop %v2013
    %v2016 = vtanh.pop %v2014
    %v2017 = vsub.f32 0.0, %v2013
    %v2018 = vsub.f32 0.0, %v2014
    %v2019 = vmul.f32 %v2017, 1.442695
    %v2020 = vpow.pop %v2019
    %v2021 = vmul.f32 %v2018, 1.442695
    %v2022 = vpow.pop %v2021
    %v2023 = vadd.f32 %v2020, 1.0
    %v2024 = vadd.f32 %v2022, 1.0
    %v2025 = vrcp.pop %v2023
    %v2026 = vmul.f32 %v2023, %v2025
    %v2027 = vsub.f32 1.0, %v2026
    %v2028 = vmul.f32 %v2025, %v2027
    %v2029 = vadd.f32 %v2025, %v2028
    %vm2030 = vweird.f32 %v2023
    %vm2031 = vweird.f32 %v2025
    %vm2032 = vmor %vm2030, %vm2031
    %v2033 = vsel %vm2032, %v2025, %v2029
    %v2034 = vand.u32 2147483647, %v2023
    %vm2035 = vcmp.eq.f32.partialorder %v2034, 8.507059e+37
    %v2036 = vand.u32 %v2023, 2147483648
    %v2037 = vor.u32 1.1754944e-38, %v2036
    %v2038 = vsel %vm2035, %v2037, %v2033
    %v2039 = vmul.f32 1.0, %v2038
    %v2040 = vrcp.pop %v2024
    %v2041 = vmul.f32 %v2024, %v2040
    %v2042 = vsub.f32 1.0, %v2041
    %v2043 = vmul.f32 %v2040, %v2042
    %v2044 = vadd.f32 %v2040, %v2043
    %vm2045 = vweird.f32 %v2024
    %vm2046 = vweird.f32 %v2040
    %vm2047 = vmor %vm2045, %vm2046
    %v2048 = vsel %vm2047, %v2040, %v2044
    %v2049 = vand.u32 2147483647, %v2024
    %vm2050 = vcmp.eq.f32.partialorder %v2049, 8.507059e+37
    %v2051 = vand.u32 %v2024, 2147483648
    %v2052 = vor.u32 1.1754944e-38, %v2051
    %v2053 = vsel %vm2050, %v2052, %v2048
    %v2054 = vmul.f32 1.0, %v2053
    %v2057 = vrot.slane %v2015, 6
    %v2058 = vrot.slane %v2016, 5
    %v2059 = vsel %vm587, %v2058, %v2057
    %v2063 = vrot.slane %v2039, 6
    %v2064 = vrot.slane %v2054, 5
    %v2065 = vsel %vm587, %v2064, %v2063
    %v2067 = vsel %vm464, %v2059, %v2065
    %v2068 = vmul.f32 %v2067, %v1974
    %2070 = vrot.lane.b32.xlu0 %v2067, 64
    %v2071 = vpop.permute.xlu0 %2070
    %v2073 = vmul.f32 %v2067, %v2071
    %2075 = vrot.lane.b32.xlu0 %v2073, 32
    %v2076 = vpop.permute.xlu0 %2075
    %v2078 = vadd.f32 %v2068, %v2076
    %v2079 = vtanh.pop %v2078
    %2081 = vrot.lane.b32.xlu0 %v2079, 64
    %v2082 = vpop.permute.xlu0 %2081
    %v2084 = vmul.f32 %v2067, %v2082
    %v2085 = vadd.f32 %v1981, %v2084
    %v2086 = vmax.f32 %v1982, %v2084
    %2088 = vrot.lane.b32.xlu0 %v2084, 32
    %v2089 = vpop.permute.xlu0 %2088
    %v2090 = vsel %vm514, %v2089, 0
    %2092 = vmatpush.msra.mxu0 0.0
    %2093 = vmatpush.msra.mxu0 0.0
    %2094 = vmatpush.msra.mxu0 0.0
    %2095 = vmatpush.msra.mxu0 0.0
    %2096 = vmatpush.msra.mxu0 0.0
    %2097 = vmatpush.msra.mxu0 0.0
    %2098 = vmatpush.msra.mxu0 0.0
    %2099 = vmatpush.msra.mxu0 0.0
    %2100 = vmatpush.msra.mxu0 0.0
    %2101 = vmatpush.msra.mxu0 0.0
    %2102 = vmatpush.msra.mxu0 0.0
    %2103 = vmatpush.msra.mxu0 0.0
    %2104 = vmatpush.msra.mxu0 %v458
    %2105 = vmatpush.msra.mxu0 %v457
    %2106 = vmatpush.msra.mxu0 %v456
    %2107 = vmatpush.msra.mxu0 %v455
    %2108 = vmatmul.f32.gmra.mxu0 %v2090
    %v2109 = vpop.f32.mrf.mxu0
    %v2110 = vadd.f32 0.0, %v2109
    %2111 = vdwg.mxu0
    %v2113 = vrot.slane %v2110, 1
    %v2114 = vrot.slane %v2110, 2
    %v2117 = vadd.f32 %v1390, %v2113
    %v2118 = vadd.f32 %v1393, %v2114
    %v2119 = vtanh.pop %v2117
    %v2120 = vtanh.pop %v2118
    %v2121 = vsub.f32 0.0, %v2117
    %v2122 = vsub.f32 0.0, %v2118
    %v2123 = vmul.f32 %v2121, 1.442695
    %v2124 = vpow.pop %v2123
    %v2125 = vmul.f32 %v2122, 1.442695
    %v2126 = vpow.pop %v2125
    %v2127 = vadd.f32 %v2124, 1.0
    %v2128 = vadd.f32 %v2126, 1.0
    %v2129 = vrcp.pop %v2127
    %v2130 = vmul.f32 %v2127, %v2129
    %v2131 = vsub.f32 1.0, %v2130
    %v2132 = vmul.f32 %v2129, %v2131
    %v2133 = vadd.f32 %v2129, %v2132
    %vm2134 = vweird.f32 %v2127
    %vm2135 = vweird.f32 %v2129
    %vm2136 = vmor %vm2134, %vm2135
    %v2137 = vsel %vm2136, %v2129, %v2133
    %v2138 = vand.u32 2147483647, %v2127
    %vm2139 = vcmp.eq.f32.partialorder %v2138, 8.507059e+37
    %v2140 = vand.u32 %v2127, 2147483648
    %v2141 = vor.u32 1.1754944e-38, %v2140
    %v2142 = vsel %vm2139, %v2141, %v2137
    %v2143 = vmul.f32 1.0, %v2142
    %v2144 = vrcp.pop %v2128
    %v2145 = vmul.f32 %v2128, %v2144
    %v2146 = vsub.f32 1.0, %v2145
    %v2147 = vmul.f32 %v2144, %v2146
    %v2148 = vadd.f32 %v2144, %v2147
    %vm2149 = vweird.f32 %v2128
    %vm2150 = vweird.f32 %v2144
    %vm2151 = vmor %vm2149, %vm2150
    %v2152 = vsel %vm2151, %v2144, %v2148
    %v2153 = vand.u32 2147483647, %v2128
    %vm2154 = vcmp.eq.f32.partialorder %v2153, 8.507059e+37
    %v2155 = vand.u32 %v2128, 2147483648
    %v2156 = vor.u32 1.1754944e-38, %v2155
    %v2157 = vsel %vm2154, %v2156, %v2152
    %v2158 = vmul.f32 1.0, %v2157
    %v2161 = vrot.slane %v2119, 7
    %v2162 = vrot.slane %v2120, 6
    %v2163 = vsel %vm587, %v2162, %v2161
    %v2167 = vrot.slane %v2143, 7
    %v2168 = vrot.slane %v2158, 6
    %v2169 = vsel %vm587, %v2168, %v2167
    %v2171 = vsel %vm464, %v2163, %v2169
    %v2172 = vmul.f32 %v2171, %v2078
    %2174 = vrot.lane.b32.xlu0 %v2171, 64
    %v2175 = vpop.permute.xlu0 %2174
    %v2177 = vmul.f32 %v2171, %v2175
    %2179 = vrot.lane.b32.xlu0 %v2177, 32
    %v2180 = vpop.permute.xlu0 %2179
    %v2182 = vadd.f32 %v2172, %v2180
    %v2183 = vtanh.pop %v2182
    %2185 = vrot.lane.b32.xlu0 %v2183, 64
    %v2186 = vpop.permute.xlu0 %2185
    %v2188 = vmul.f32 %v2171, %v2186
    %v2189 = vadd.f32 %v2085, %v2188
    %v2190 = vmax.f32 %v2086, %v2188
    %v2191 = vmul.f32 %v2189, 0.125
    %2193 = vrot.lane.b32.xlu0 %v2191, 32
    %v2194 = vpop.permute.xlu0 %2193
    %2197 = vrot.lane.b32.xlu0 %v2190, 64
    %v2198 = vpop.permute.xlu0 %2197
    %v2200 = vsel %vm514, %v2194, %v2198
    %2202 = vrot.lane.b32.xlu0 %v2200, 64
    %v2203 = vpop.permute.xlu0 %2202
    %v2205 = vsel %vm87, %v1348, %v2203
    %v2206 = vld [vmem:[%s5] sm:$0x1]
    %v2208 = vperm.slane %v2206, 0
    %v2210 = vmul.f32 %v2205, %v2208
    %v2211 = vld [vmem:[%s6] sm:$0x1]
    %v2213 = vperm.slane %v2211, 0
    %v2215 = vadd.f32 %v2210, %v2213
    %v2216 = vld [vmem:[%s7] sm:$0xff]
    %v2217 = vld [vmem:[%s7 + $0x8] sm:$0xff]
    %v2218 = vld [vmem:[%s7 + $0x10] sm:$0xff]
    %v2219 = vld [vmem:[%s7 + $0x18] sm:$0xff]
    %v2220 = vld [vmem:[%s7 + $0x20] sm:$0xff]
    %v2221 = vld [vmem:[%s7 + $0x28] sm:$0xff]
    %v2222 = vld [vmem:[%s7 + $0x30] sm:$0xff]
    %v2223 = vld [vmem:[%s7 + $0x38] sm:$0xff]
    %v2224 = vld [vmem:[%s7 + $0x40] sm:$0xff]
    %v2225 = vld [vmem:[%s7 + $0x48] sm:$0xff]
    %v2226 = vld [vmem:[%s7 + $0x50] sm:$0xff]
    %v2227 = vld [vmem:[%s7 + $0x58] sm:$0xff]
    %v2228 = vld [vmem:[%s7 + $0x60] sm:$0xff]
    %v2229 = vld [vmem:[%s7 + $0x68] sm:$0xff]
    %v2230 = vld [vmem:[%s7 + $0x70] sm:$0xff]
    %v2231 = vld [vmem:[%s7 + $0x78] sm:$0xff]
    %v2232 = vld [vmem:[%s8] sm:$0x1]
    %v2234 = vperm.slane %v2232, 0
    %2236 = vmatpush.msra.mxu0 %v2231
    %2237 = vmatpush.msra.mxu0 %v2230
    %2238 = vmatpush.msra.mxu0 %v2229
    %2239 = vmatpush.msra.mxu0 %v2228
    %2240 = vmatpush.msra.mxu0 %v2227
    %2241 = vmatpush.msra.mxu0 %v2226
    %2242 = vmatpush.msra.mxu0 %v2225
    %2243 = vmatpush.msra.mxu0 %v2224
    %2244 = vmatpush.msra.mxu0 %v2223
    %2245 = vmatpush.msra.mxu0 %v2222
    %2246 = vmatpush.msra.mxu0 %v2221
    %2247 = vmatpush.msra.mxu0 %v2220
    %2248 = vmatpush.msra.mxu0 %v2219
    %2249 = vmatpush.msra.mxu0 %v2218
    %2250 = vmatpush.msra.mxu0 %v2217
    %2251 = vmatpush.msra.mxu0 %v2216
    %2252 = vmatmul.f32.gmra.mxu0 %v2215
    %v2253 = vpop.f32.mrf.mxu0
    %v2254 = vadd.f32 %v2234, %v2253
    %2255 = vdwg.mxu0
    %vm2256 = vcmp.gt.f32.partialorder %v2254, 0.0
    %v2257 = vmul.f32 %v2254, 1.442695
    %v2258 = vpow.pop %v2257
    %v2259 = vsub.f32 %v2258, 1.0
    %v2260 = vsel %vm2256, %v2254, %v2259
    %v2261 = vld [vmem:[%s9] sm:$0x1]
    %v2263 = vperm.slane %v2261, 0
    %v2265 = vmul.f32 %v2260, %v2263
    %v2266 = vld [vmem:[%s10] sm:$0x1]
    %v2268 = vperm.slane %v2266, 0
    %v2270 = vadd.f32 %v2265, %v2268
    %v2271 = vld [vmem:[%s11] sm:$0xff]
    %v2272 = vld [vmem:[%s11 + $0x8] sm:$0xff]
    %v2273 = vld [vmem:[%s11 + $0x10] sm:$0xff]
    %v2274 = vld [vmem:[%s11 + $0x18] sm:$0xff]
    %v2275 = vld [vmem:[%s11 + $0x20] sm:$0xff]
    %v2276 = vld [vmem:[%s11 + $0x28] sm:$0xff]
    %v2277 = vld [vmem:[%s11 + $0x30] sm:$0xff]
    %v2278 = vld [vmem:[%s11 + $0x38] sm:$0xff]
    %v2279 = vld [vmem:[%s12] sm:$0x1]
    %v2281 = vperm.slane %v2279, 0
    %v2284 = vsel %vm87, %v2270, 0
    %2286 = vmatpush.msra.mxu0 0.0
    %2287 = vmatpush.msra.mxu0 0.0
    %2288 = vmatpush.msra.mxu0 0.0
    %2289 = vmatpush.msra.mxu0 0.0
    %2290 = vmatpush.msra.mxu0 0.0
    %2291 = vmatpush.msra.mxu0 0.0
    %2292 = vmatpush.msra.mxu0 0.0
    %2293 = vmatpush.msra.mxu0 0.0
    %2294 = vmatpush.msra.mxu0 %v2278
    %2295 = vmatpush.msra.mxu0 %v2277
    %2296 = vmatpush.msra.mxu0 %v2276
    %2297 = vmatpush.msra.mxu0 %v2275
    %2298 = vmatpush.msra.mxu0 %v2274
    %2299 = vmatpush.msra.mxu0 %v2273
    %2300 = vmatpush.msra.mxu0 %v2272
    %2301 = vmatpush.msra.mxu0 %v2271
    %2302 = vmatmul.f32.gmra.mxu0 %v2284
    %v2303 = vpop.f32.mrf.mxu0
    %v2304 = vadd.f32 %v2281, %v2303
    %2305 = vdwg.mxu0
    %vm2306 = vcmp.gt.f32.partialorder %v2304, 0.0
    %v2307 = vmul.f32 %v2304, 1.442695
    %v2308 = vpow.pop %v2307
    %v2309 = vsub.f32 %v2308, 1.0
    %v2310 = vsel %vm2306, %v2304, %v2309
    %v2311 = vld [vmem:[%s13] sm:$0x1]
    %v2313 = vperm.slane %v2311, 0
    %v2315 = vmul.f32 %v2310, %v2313
    %v2316 = vld [vmem:[%s14] sm:$0x1]
    %v2318 = vperm.slane %v2316, 0
    %v2320 = vadd.f32 %v2315, %v2318
    %v2321 = vld [vmem:[#allocation2] sm:$0xff]
    %v2322 = vld [vmem:[#allocation2 + $0x8] sm:$0xff]
    %v2323 = vld [vmem:[#allocation2 + $0x10] sm:$0xff]
    %v2324 = vld [vmem:[#allocation2 + $0x18] sm:$0xff]
    %v2325 = vld [vmem:[#allocation2 + $0x20] sm:$0xff]
    %v2326 = vld [vmem:[#allocation2 + $0x28] sm:$0xff]
    %v2327 = vld [vmem:[#allocation2 + $0x30] sm:$0xff]
    %v2328 = vld [vmem:[#allocation2 + $0x38] sm:$0xff]
    %v2329 = vld [vmem:[%s16] sm:$0x1]
    %v2331 = vperm.slane %v2329, 0
    %v2334 = vsel %vm87, %v2320, 0
    %2336 = vmatpush.msra.mxu0 0.0
    %2337 = vmatpush.msra.mxu0 0.0
    %2338 = vmatpush.msra.mxu0 0.0
    %2339 = vmatpush.msra.mxu0 0.0
    %2340 = vmatpush.msra.mxu0 0.0
    %2341 = vmatpush.msra.mxu0 0.0
    %2342 = vmatpush.msra.mxu0 0.0
    %2343 = vmatpush.msra.mxu0 0.0
    %2344 = vmatpush.msra.mxu0 %v2328
    %2345 = vmatpush.msra.mxu0 %v2327
    %2346 = vmatpush.msra.mxu0 %v2326
    %2347 = vmatpush.msra.mxu0 %v2325
    %2348 = vmatpush.msra.mxu0 %v2324
    %2349 = vmatpush.msra.mxu0 %v2323
    %2350 = vmatpush.msra.mxu0 %v2322
    %2351 = vmatpush.msra.mxu0 %v2321
    %2352 = vmatmul.f32.gmra.mxu0 %v2334
    %v2353 = vpop.f32.mrf.mxu0
    %v2354 = vadd.f32 %v2331, %v2353
    %2355 = vdwg.mxu0
    %vm2356 = vcmask 9216
    %2357 = vst.msk [vmem:[#allocation5] sm:$0x3] %vm2356, %v2354
    // Predicated region
    $region74: #{_lambda_.3} parent=1 // pred_check
      _
    $region75: #{_lambda_.3} parent=1 // pred_check_branch
      %2359 = sbr.rel (0) target = $region77
    $region76: #{_lambda_.3} parent=1 // pred_region
      %2361 = vsyncadd [#allocation4], 0
      %s2363 = sshll.u32 [#allocation5], 4
      %s2364 = int_to_ptr.vmem [resolvable:$true] %s2363
      %s2365 = sshll.u32 %s17, 4
      %s2366 = int_to_ptr.hbm [resolvable:$true] %s2365
      %2368 = dma.vmem_to_hbm [thread:$0]  %s2364, 32, %s2366, [#allocation4]
    $region77: #{_lambda_.3} parent=1 // pred_fallthru
      _
    // Predicated region
    $region78: #{_lambda_.3} parent=1 // pred_check
      _
    $region79: #{_lambda_.3} parent=1 // pred_check_branch
      %2370 = sbr.rel (0) target = $region81
    $region80: #{_lambda_.3} parent=1 // pred_region
      %2372 = dma.done [#allocation4], 32
    $region81: #{_lambda_.3} parent=1 // pred_fallthru
      _
    %2373 = vsyncpa [#allocation3], 1
    %2374 = vsyncpa [#allocation4], 1

</llo_original>
